<compile_context>
chip_gen: v7x
topology: tpu7x:2x2x1
jax: 0.10.0
libtpu: 0.0.40
codegen_flags: <defaults>
</compile_context>

<pallas_src>
import jax
import jax.numpy as jnp
from jax.experimental import pallas as pl
from jax.experimental.pallas import tpu as pltpu

OUT_PAD = 384        # 300 padded to a multiple of 128 (lane-dense end-to-end)
K_PAD = 32           # im2col contraction dim (9*Cin = 27) padded to 32


# ----------------------------------------------------------------------------
# One fused kernel: conv-stem (im2col matmul + ReLU + GAP + FC->300[384])
# followed by the MMNet head (Linear + BatchNorm1d(train, eps=1e-3) + ReLU,
# Linear, Linear).  Whole batch in a single block so BN batch stats are exact.
# ----------------------------------------------------------------------------
def fused_kernel(patches_ref, wc_ref, bc_ref, pool_ref, wf_ref, bf_ref,
                 w1_ref, s1_ref, b1_ref, gamma_ref, beta_ref,
                 w2_ref, s2_ref, b2_ref, w3_ref, s3_ref, b3_ref, o_ref):
    def deq(ref):
        # int8 -> f32 -> bf16 (int8 values are exactly representable in bf16);
        # per-output-channel scale is applied after the matmul on the VPU.
        return ref[...].astype(jnp.float32).astype(jnp.bfloat16)

    # ---- conv stem: single im2col matmul (K=32) + bias + ReLU ---------------
    acc = jnp.dot(patches_ref[...], wc_ref[...],
                  preferred_element_type=jnp.float32)             # (B*H*W, Cout)
    acc = jnp.maximum(acc + bc_ref[...], 0.0)

    # ---- global average pool as an MXU matmul (1/(H*W) folded into pool) ----
    feat = jnp.dot(pool_ref[...], acc.astype(jnp.bfloat16),
                   preferred_element_type=jnp.float32)            # (B, Cout)

    # ---- CNN head FC -> 300 (padded to 384; pad cols of wf/bf are zero) -----
    feat = jnp.dot(feat.astype(jnp.bfloat16), wf_ref[...],
                   preferred_element_type=jnp.float32) + bf_ref[...]   # (B, 384)

    # ---- MMNet fc_i_1 (int8 weight) + BatchNorm1d(training, eps=1e-3) + ReLU
    h = (jnp.dot(feat.astype(jnp.bfloat16), deq(w1_ref),
                 preferred_element_type=jnp.float32)
         * s1_ref[...] + b1_ref[...])                             # (B, 1024)
    mean = jnp.mean(h, axis=0, keepdims=True)
    var = jnp.mean((h - mean) * (h - mean), axis=0, keepdims=True)
    h = (h - mean) * jax.lax.rsqrt(var + 0.001) * gamma_ref[...] + beta_ref[...]
    h = jnp.maximum(h, 0.0)

    # ---- fc_i_2 (int8 weight) ------------------------------------------------
    h = (jnp.dot(h.astype(jnp.bfloat16), deq(w2_ref),
                 preferred_element_type=jnp.float32)
         * s2_ref[...] + b2_ref[...])                             # (B, 1024)

    # ---- fc_i_3 (int8 weight; output N padded to 384, sliced in wrapper) ----
    o_ref[...] = (jnp.dot(h.astype(jnp.bfloat16), deq(w3_ref),
                          preferred_element_type=jnp.float32)
                  * s3_ref[...] + b3_ref[...])


def _vmem():
    return pl.BlockSpec(memory_space=pltpu.MemorySpace.VMEM)


def _im2col(img_nchw):
    """NCHW -> lane-dense (B*H*W, K_PAD) bf16 patch matrix (3x3 conv, pad=1).

    Plain XLA; pad + 9 static slices + concat + pad fuse into one small fusion.
    TODO(synk): move the tap gather into the kernel if xprof shows this fusion
    adding non-overlapped latency in front of the pallas_call.
    """
    x = jnp.transpose(img_nchw, (0, 2, 3, 1)).astype(jnp.float32)   # NHWC
    B, H, W, C = x.shape
    xpad = jnp.pad(x, ((0, 0), (1, 1), (1, 1), (0, 0)))
    taps = [xpad[:, kh:kh + H, kw:kw + W, :]
            for kh in range(3) for kw in range(3)]
    patches = jnp.concatenate(taps, axis=-1).reshape(B * H * W, 9 * C)
    patches = jnp.pad(patches, ((0, 0), (0, K_PAD - 9 * C)))
    return patches.astype(jnp.bfloat16)


@jax.jit
def model_forward(img, params):
    B = img.shape[0]
    patches = _im2col(img)
    out = pl.pallas_call(
        fused_kernel,
        out_shape=jax.ShapeDtypeStruct((B, OUT_PAD), jnp.float32),
        in_specs=[_vmem()] * 17,
        out_specs=_vmem(),
    )(patches, params["wc"], params["bc"], params["pool"],
      params["wf"], params["bf"],
      params["w1"], params["s1"], params["b1"],
      params["gamma"], params["beta"],
      params["w2"], params["s2"], params["b2"],
      params["w3"], params["s3"], params["b3"])
    return out[:, :300]


def _quantize_int8(w):
    """Symmetric per-output-channel (per-column) int8 quantization."""
    amax = jnp.max(jnp.abs(w), axis=0, keepdims=True)
    scale = jnp.where(amax > 0, amax / 127.0, 1.0).astype(jnp.float32)
    wq = jnp.clip(jnp.round(w / scale), -127.0, 127.0).astype(jnp.int8)
    return wq, scale


def init_params(key, *, batch=2, hw=16, cin=3, conv_ch=32):
    ks = jax.random.split(key, 5)
    k_taps = 9 * cin
    # Conv: normal(0, sqrt(2/n)), n = kH*kW*out_channels; bias zero.
    n = 3 * 3 * conv_ch
    wc = (jax.random.normal(ks[0], (k_taps, conv_ch), jnp.float32)
          * jnp.sqrt(2.0 / n))
    wc = jnp.pad(wc, ((0, K_PAD - k_taps), (0, 0))).astype(jnp.bfloat16)
    bc = jnp.zeros((1, conv_ch), jnp.float32)
    # Block-diagonal mean-pool matrix (GAP as a matmul), 1/(H*W) folded in.
    pool = (jnp.repeat(jnp.eye(batch, dtype=jnp.float32), hw * hw, axis=1)
            * (1.0 / (hw * hw))).astype(jnp.bfloat16)              # (B, B*H*W)
    # CNN head FC -> 300: normal(0, 0.01), bias zero; cols zero-padded to 384.
    wf = jax.random.normal(ks[1], (conv_ch, 300), jnp.float32) * 0.01
    wf = jnp.pad(wf, ((0, 0), (0, OUT_PAD - 300))).astype(jnp.bfloat16)
    bf = jnp.zeros((1, OUT_PAD), jnp.float32)
    # MMNet fc_i_1 (300 -> 1024): contraction rows zero-padded 300 -> 384.
    w1 = jax.random.normal(ks[2], (300, 1024), jnp.float32) * 0.01
    w1 = jnp.pad(w1, ((0, OUT_PAD - 300), (0, 0)))
    w1q, s1 = _quantize_int8(w1)
    b1 = jnp.zeros((1, 1024), jnp.float32)
    gamma = jnp.ones((1, 1024), jnp.float32)    # BN weight = 1
    beta = jnp.zeros((1, 1024), jnp.float32)    # BN bias = 0
    # fc_i_2 (1024 -> 1024)
    w2q, s2 = _quantize_int8(
        jax.random.normal(ks[3], (1024, 1024), jnp.float32) * 0.01)
    b2 = jnp.zeros((1, 1024), jnp.float32)
    # fc_i_3 (1024 -> 300): output cols zero-padded 300 -> 384.
    w3 = jax.random.normal(ks[4], (1024, 300), jnp.float32) * 0.01
    w3 = jnp.pad(w3, ((0, 0), (0, OUT_PAD - 300)))
    w3q, s3 = _quantize_int8(w3)
    b3 = jnp.zeros((1, OUT_PAD), jnp.float32)
    return dict(wc=wc, bc=bc, pool=pool, wf=wf, bf=bf,
                w1=w1q, s1=s1, b1=b1, gamma=gamma, beta=beta,
                w2=w2q, s2=s2, b2=b2, w3=w3q, s3=s3, b3=b3)


if __name__ == "__main__":
    key = jax.random.PRNGKey(0)
    k_img, k_par = jax.random.split(key)
    # Small image batch, PyTorch NCHW convention: (B=2, C=3, H=16, W=16)
    img = jax.random.normal(k_img, (2, 3, 16, 16), jnp.float32)
    params = init_params(k_par, batch=2, hw=16, cin=3, conv_ch=32)

    out = model_forward(img, params)
    out = jax.block_until_ready(out)
    assert out.shape == (2, 300), out.shape
    assert jnp.all(jnp.isfinite(out))
    print("KERNEL_OK")
</pallas_src>

<mosaic_0001>
module attributes {stable_mosaic.version = 11 : i64} {
  func.func @fused_kernel(%arg0: memref<512x32xbf16, #tpu.memory_space<vmem>>, %arg1: memref<32x32xbf16, #tpu.memory_space<vmem>>, %arg2: memref<1x32xf32, #tpu.memory_space<vmem>>, %arg3: memref<2x512xbf16, #tpu.memory_space<vmem>>, %arg4: memref<32x384xbf16, #tpu.memory_space<vmem>>, %arg5: memref<1x384xf32, #tpu.memory_space<vmem>>, %arg6: memref<384x1024xi8, #tpu.memory_space<vmem>>, %arg7: memref<1x1024xf32, #tpu.memory_space<vmem>>, %arg8: memref<1x1024xf32, #tpu.memory_space<vmem>>, %arg9: memref<1x1024xf32, #tpu.memory_space<vmem>>, %arg10: memref<1x1024xf32, #tpu.memory_space<vmem>>, %arg11: memref<1024x1024xi8, #tpu.memory_space<vmem>>, %arg12: memref<1x1024xf32, #tpu.memory_space<vmem>>, %arg13: memref<1x1024xf32, #tpu.memory_space<vmem>>, %arg14: memref<1024x384xi8, #tpu.memory_space<vmem>>, %arg15: memref<1x384xf32, #tpu.memory_space<vmem>>, %arg16: memref<1x384xf32, #tpu.memory_space<vmem>>, %arg17: memref<2x384xf32, #tpu.memory_space<vmem>>) attributes {dimension_semantics = [], scalar_prefetch = 0 : i64, scratch_operands = 0 : i64, tpu.core_type = #tpu.core_type<tc>} {
    %c0 = arith.constant 0 : index
    %c0_0 = arith.constant 0 : index
    %0 = vector.load %arg0[%c0, %c0_0] : memref<512x32xbf16, #tpu.memory_space<vmem>>, vector<512x32xbf16>
    %c0_1 = arith.constant 0 : index
    %c0_2 = arith.constant 0 : index
    %1 = vector.load %arg1[%c0_1, %c0_2] : memref<32x32xbf16, #tpu.memory_space<vmem>>, vector<32x32xbf16>
    %cst = arith.constant dense<0.000000e+00> : vector<512x32xf32>
    %2 = tpu.matmul %0, %1, %cst {dimension_numbers = #tpu.dot_dimension_numbers<[1], [0], [0], [1], [0, 0, 1, 1], [], []>} : vector<512x32xbf16>, vector<32x32xbf16>, vector<512x32xf32> -> vector<512x32xf32>
    %c0_3 = arith.constant 0 : index
    %c0_4 = arith.constant 0 : index
    %3 = vector.load %arg2[%c0_3, %c0_4] : memref<1x32xf32, #tpu.memory_space<vmem>>, vector<1x32xf32>
    %4 = vector.broadcast %3 : vector<1x32xf32> to vector<512x32xf32>
    %5 = arith.addf %2, %4 : vector<512x32xf32>
    %cst_5 = arith.constant 0.000000e+00 : f32
    %6 = vector.broadcast %cst_5 : f32 to vector<512x32xf32>
    %7 = arith.maximumf %5, %6 : vector<512x32xf32>
    %c0_6 = arith.constant 0 : index
    %c0_7 = arith.constant 0 : index
    %8 = vector.load %arg3[%c0_6, %c0_7] : memref<2x512xbf16, #tpu.memory_space<vmem>>, vector<2x512xbf16>
    %9 = arith.truncf %7 : vector<512x32xf32> to vector<512x32xbf16>
    %cst_8 = arith.constant dense<0.000000e+00> : vector<2x32xf32>
    %10 = tpu.matmul %8, %9, %cst_8 {dimension_numbers = #tpu.dot_dimension_numbers<[1], [0], [0], [1], [0, 0, 1, 1], [], []>} : vector<2x512xbf16>, vector<512x32xbf16>, vector<2x32xf32> -> vector<2x32xf32>
    %11 = arith.truncf %10 : vector<2x32xf32> to vector<2x32xbf16>
    %c0_9 = arith.constant 0 : index
    %c0_10 = arith.constant 0 : index
    %12 = vector.load %arg4[%c0_9, %c0_10] : memref<32x384xbf16, #tpu.memory_space<vmem>>, vector<32x384xbf16>
    %cst_11 = arith.constant dense<0.000000e+00> : vector<2x384xf32>
    %13 = tpu.matmul %11, %12, %cst_11 {dimension_numbers = #tpu.dot_dimension_numbers<[1], [0], [0], [1], [0, 0, 1, 1], [], []>} : vector<2x32xbf16>, vector<32x384xbf16>, vector<2x384xf32> -> vector<2x384xf32>
    %c0_12 = arith.constant 0 : index
    %c0_13 = arith.constant 0 : index
    %14 = vector.load %arg5[%c0_12, %c0_13] : memref<1x384xf32, #tpu.memory_space<vmem>>, vector<1x384xf32>
    %15 = vector.broadcast %14 : vector<1x384xf32> to vector<2x384xf32>
    %16 = arith.addf %13, %15 : vector<2x384xf32>
    %17 = arith.truncf %16 : vector<2x384xf32> to vector<2x384xbf16>
    %c0_14 = arith.constant 0 : index
    %c0_15 = arith.constant 0 : index
    %18 = vector.load %arg6[%c0_14, %c0_15] : memref<384x1024xi8, #tpu.memory_space<vmem>>, vector<384x1024xi8>
    %19 = arith.sitofp %18 : vector<384x1024xi8> to vector<384x1024xf32>
    %20 = arith.truncf %19 : vector<384x1024xf32> to vector<384x1024xbf16>
    %cst_16 = arith.constant dense<0.000000e+00> : vector<2x1024xf32>
    %21 = tpu.matmul %17, %20, %cst_16 {dimension_numbers = #tpu.dot_dimension_numbers<[1], [0], [0], [1], [0, 0, 1, 1], [], []>} : vector<2x384xbf16>, vector<384x1024xbf16>, vector<2x1024xf32> -> vector<2x1024xf32>
    %c0_17 = arith.constant 0 : index
    %c0_18 = arith.constant 0 : index
    %22 = vector.load %arg7[%c0_17, %c0_18] : memref<1x1024xf32, #tpu.memory_space<vmem>>, vector<1x1024xf32>
    %23 = vector.broadcast %22 : vector<1x1024xf32> to vector<2x1024xf32>
    %24 = arith.mulf %21, %23 : vector<2x1024xf32>
    %c0_19 = arith.constant 0 : index
    %c0_20 = arith.constant 0 : index
    %25 = vector.load %arg8[%c0_19, %c0_20] : memref<1x1024xf32, #tpu.memory_space<vmem>>, vector<1x1024xf32>
    %26 = vector.broadcast %25 : vector<1x1024xf32> to vector<2x1024xf32>
    %27 = arith.addf %24, %26 : vector<2x1024xf32>
    %cst_21 = arith.constant dense<0.000000e+00> : vector<1024xf32>
    %28 = vector.multi_reduction <add>, %27, %cst_21 [0] : vector<2x1024xf32> to vector<1024xf32>
    %29 = vector.shape_cast %28 : vector<1024xf32> to vector<1x1024xf32>
    %cst_22 = arith.constant 2.000000e+00 : f32
    %30 = vector.broadcast %cst_22 : f32 to vector<1x1024xf32>
    %31 = arith.divf %29, %30 : vector<1x1024xf32>
    %32 = vector.broadcast %31 : vector<1x1024xf32> to vector<2x1024xf32>
    %33 = arith.subf %27, %32 : vector<2x1024xf32>
    %34 = vector.broadcast %31 : vector<1x1024xf32> to vector<2x1024xf32>
    %35 = arith.subf %27, %34 : vector<2x1024xf32>
    %36 = arith.mulf %33, %35 : vector<2x1024xf32>
    %cst_23 = arith.constant dense<0.000000e+00> : vector<1024xf32>
    %37 = vector.multi_reduction <add>, %36, %cst_23 [0] : vector<2x1024xf32> to vector<1024xf32>
    %38 = vector.shape_cast %37 : vector<1024xf32> to vector<1x1024xf32>
    %cst_24 = arith.constant 2.000000e+00 : f32
    %39 = vector.broadcast %cst_24 : f32 to vector<1x1024xf32>
    %40 = arith.divf %38, %39 : vector<1x1024xf32>
    %41 = vector.broadcast %31 : vector<1x1024xf32> to vector<2x1024xf32>
    %42 = arith.subf %27, %41 : vector<2x1024xf32>
    %cst_25 = arith.constant 1.000000e-03 : f32
    %43 = vector.broadcast %cst_25 : f32 to vector<1x1024xf32>
    %44 = arith.addf %40, %43 : vector<1x1024xf32>
    %45 = math.rsqrt %44 : vector<1x1024xf32>
    %46 = vector.broadcast %45 : vector<1x1024xf32> to vector<2x1024xf32>
    %47 = arith.mulf %42, %46 : vector<2x1024xf32>
    %c0_26 = arith.constant 0 : index
    %c0_27 = arith.constant 0 : index
    %48 = vector.load %arg9[%c0_26, %c0_27] : memref<1x1024xf32, #tpu.memory_space<vmem>>, vector<1x1024xf32>
    %49 = vector.broadcast %48 : vector<1x1024xf32> to vector<2x1024xf32>
    %50 = arith.mulf %47, %49 : vector<2x1024xf32>
    %c0_28 = arith.constant 0 : index
    %c0_29 = arith.constant 0 : index
    %51 = vector.load %arg10[%c0_28, %c0_29] : memref<1x1024xf32, #tpu.memory_space<vmem>>, vector<1x1024xf32>
    %52 = vector.broadcast %51 : vector<1x1024xf32> to vector<2x1024xf32>
    %53 = arith.addf %50, %52 : vector<2x1024xf32>
    %cst_30 = arith.constant 0.000000e+00 : f32
    %54 = vector.broadcast %cst_30 : f32 to vector<2x1024xf32>
    %55 = arith.maximumf %53, %54 : vector<2x1024xf32>
    %56 = arith.truncf %55 : vector<2x1024xf32> to vector<2x1024xbf16>
    %c0_31 = arith.constant 0 : index
    %c0_32 = arith.constant 0 : index
    %57 = vector.load %arg11[%c0_31, %c0_32] : memref<1024x1024xi8, #tpu.memory_space<vmem>>, vector<1024x1024xi8>
    %58 = arith.sitofp %57 : vector<1024x1024xi8> to vector<1024x1024xf32>
    %59 = arith.truncf %58 : vector<1024x1024xf32> to vector<1024x1024xbf16>
    %cst_33 = arith.constant dense<0.000000e+00> : vector<2x1024xf32>
    %60 = tpu.matmul %56, %59, %cst_33 {dimension_numbers = #tpu.dot_dimension_numbers<[1], [0], [0], [1], [0, 0, 1, 1], [], []>} : vector<2x1024xbf16>, vector<1024x1024xbf16>, vector<2x1024xf32> -> vector<2x1024xf32>
    %c0_34 = arith.constant 0 : index
    %c0_35 = arith.constant 0 : index
    %61 = vector.load %arg12[%c0_34, %c0_35] : memref<1x1024xf32, #tpu.memory_space<vmem>>, vector<1x1024xf32>
    %62 = vector.broadcast %61 : vector<1x1024xf32> to vector<2x1024xf32>
    %63 = arith.mulf %60, %62 : vector<2x1024xf32>
    %c0_36 = arith.constant 0 : index
    %c0_37 = arith.constant 0 : index
    %64 = vector.load %arg13[%c0_36, %c0_37] : memref<1x1024xf32, #tpu.memory_space<vmem>>, vector<1x1024xf32>
    %65 = vector.broadcast %64 : vector<1x1024xf32> to vector<2x1024xf32>
    %66 = arith.addf %63, %65 : vector<2x1024xf32>
    %67 = arith.truncf %66 : vector<2x1024xf32> to vector<2x1024xbf16>
    %c0_38 = arith.constant 0 : index
    %c0_39 = arith.constant 0 : index
    %68 = vector.load %arg14[%c0_38, %c0_39] : memref<1024x384xi8, #tpu.memory_space<vmem>>, vector<1024x384xi8>
    %69 = arith.sitofp %68 : vector<1024x384xi8> to vector<1024x384xf32>
    %70 = arith.truncf %69 : vector<1024x384xf32> to vector<1024x384xbf16>
    %cst_40 = arith.constant dense<0.000000e+00> : vector<2x384xf32>
    %71 = tpu.matmul %67, %70, %cst_40 {dimension_numbers = #tpu.dot_dimension_numbers<[1], [0], [0], [1], [0, 0, 1, 1], [], []>} : vector<2x1024xbf16>, vector<1024x384xbf16>, vector<2x384xf32> -> vector<2x384xf32>
    %c0_41 = arith.constant 0 : index
    %c0_42 = arith.constant 0 : index
    %72 = vector.load %arg15[%c0_41, %c0_42] : memref<1x384xf32, #tpu.memory_space<vmem>>, vector<1x384xf32>
    %73 = vector.broadcast %72 : vector<1x384xf32> to vector<2x384xf32>
    %74 = arith.mulf %71, %73 : vector<2x384xf32>
    %c0_43 = arith.constant 0 : index
    %c0_44 = arith.constant 0 : index
    %75 = vector.load %arg16[%c0_43, %c0_44] : memref<1x384xf32, #tpu.memory_space<vmem>>, vector<1x384xf32>
    %76 = vector.broadcast %75 : vector<1x384xf32> to vector<2x384xf32>
    %77 = arith.addf %74, %76 : vector<2x384xf32>
    %c0_45 = arith.constant 0 : index
    %c0_46 = arith.constant 0 : index
    %78 = vector.load %arg17[%c0_45, %c0_46] : memref<2x384xf32, #tpu.memory_space<vmem>>, vector<2x384xf32>
    tpu.vector_store %arg17[%c0_45, %c0_46], %77 {strides = array<i32>} : memref<2x384xf32, #tpu.memory_space<vmem>>, vector<2x384xf32>,
    return
  }
}

</mosaic_0001>

<llo_original>
// kernel: model_forward.1
$region0: #{model_forward.1}
  #allocation0 [shape = 'u32[]', space=smem, size = 0x4, offset = 0x4, fixed_abs, tag = 'smem constant byte address 0x4 - core index']
  #allocation1 [shape = 'u32[144,128]{1,0:T(1,128)}', space=vmem, size = 0x12000, scoped, tag = 'internal scratch']
  %s0 = inlined_call_operand.vmem [shape: bf16[512,32], index: 0, kind: input, shape index: {}]
  %s1 = inlined_call_operand.vmem [shape: bf16[32,32], index: 1, kind: input, shape index: {}]
  %s2 = inlined_call_operand.vmem [shape: f32[1,32], index: 2, kind: input, shape index: {}]
  %s3 = inlined_call_operand.vmem [shape: bf16[2,512], index: 3, kind: input, shape index: {}]
  %s4 = inlined_call_operand.vmem [shape: bf16[32,384], index: 4, kind: input, shape index: {}]
  %s5 = inlined_call_operand.vmem [shape: f32[1,384], index: 5, kind: input, shape index: {}]
  %s6 = inlined_call_operand.hbm [shape: s8[384,1024], index: 6, kind: input, shape index: {}]
  %s7 = inlined_call_operand.vmem [shape: f32[1,1024], index: 7, kind: input, shape index: {}]
  %s8 = inlined_call_operand.vmem [shape: f32[1,1024], index: 8, kind: input, shape index: {}]
  %s9 = inlined_call_operand.vmem [shape: f32[1,1024], index: 9, kind: input, shape index: {}]
  %s10 = inlined_call_operand.vmem [shape: f32[1,1024], index: 10, kind: input, shape index: {}]
  %s11 = inlined_call_operand.vmem [shape: s8[1024,1024], index: 11, kind: input, shape index: {}]
  %s12 = inlined_call_operand.vmem [shape: f32[1,1024], index: 12, kind: input, shape index: {}]
  %s13 = inlined_call_operand.vmem [shape: f32[1,1024], index: 13, kind: input, shape index: {}]
  %s14 = inlined_call_operand.hbm [shape: s8[1024,384], index: 14, kind: input, shape index: {}]
  %s15 = inlined_call_operand.vmem [shape: f32[1,384], index: 15, kind: input, shape index: {}]
  %s16 = inlined_call_operand.vmem [shape: f32[1,384], index: 16, kind: input, shape index: {}]
  %s17 = inlined_call_operand.hbm [shape: f32[2,384], index: 17, kind: output, shape index: {}]
  %s18 = sld [smem:[#allocation0]]
  $region86: #{model_forward.1} parent=0
    _
  %s20 = ssub.s32 1, %s18
  %s21 = scalar_select 0, %s20, %s18
  $region1: #{model_forward.1} parent=0
    #allocation2 [shape = 'u8[393216]{0}', space=vmem, size = 0x60000, scoped, tag = 'input window, operand 6, single buffered']
    #allocation3 [shape = 's32[1]{0}', space=sflag, size = 0x4, scoped, tag = 'scoped memory for model_forward.1']
    #allocation4 [shape = 's32[1]{0}', space=sflag, size = 0x4, scoped, tag = 'scoped memory for model_forward.1']
    #allocation5 [shape = 'u8[393216]{0}', space=vmem, size = 0x60000, scoped, tag = 'input window, operand 14, single buffered']
    #allocation6 [shape = 's32[1]{0}', space=sflag, size = 0x4, scoped, tag = 'scoped memory for model_forward.1']
    #allocation7 [shape = 'u8[3072]{0}', space=vmem, size = 0xc00, scoped, tag = 'output window, operand 0, single buffered']
    %22 = vsyncpa [#allocation3], 0
    %23 = vsyncpa [#allocation6], 0
    %24 = vsyncpa [#allocation4], 0
    // Predicated region
    $region2: #{model_forward.1} parent=1 // pred_check
      _
    $region3: #{model_forward.1} parent=1 // pred_check_branch
      %26 = sbr.rel (0) target = $region5
    $region4: #{model_forward.1} parent=1 // pred_region
      _
    $region5: #{model_forward.1} parent=1 // pred_fallthru
      _
    // Predicated region
    $region6: #{model_forward.1} parent=1 // pred_check
      _
    $region7: #{model_forward.1} parent=1 // pred_check_branch
      %28 = sbr.rel (0) target = $region9
    $region8: #{model_forward.1} parent=1 // pred_region
      _
    $region9: #{model_forward.1} parent=1 // pred_fallthru
      _
    // Predicated region
    $region10: #{model_forward.1} parent=1 // pred_check
      _
    $region11: #{model_forward.1} parent=1 // pred_check_branch
      %30 = sbr.rel (0) target = $region13
    $region12: #{model_forward.1} parent=1 // pred_region
      _
    $region13: #{model_forward.1} parent=1 // pred_fallthru
      _
    // Predicated region
    $region14: #{model_forward.1} parent=1 // pred_check
      _
    $region15: #{model_forward.1} parent=1 // pred_check_branch
      %32 = sbr.rel (0) target = $region17
    $region16: #{model_forward.1} parent=1 // pred_region
      _
    $region17: #{model_forward.1} parent=1 // pred_fallthru
      _
    // Predicated region
    $region18: #{model_forward.1} parent=1 // pred_check
      _
    $region19: #{model_forward.1} parent=1 // pred_check_branch
      %34 = sbr.rel (0) target = $region21
    $region20: #{model_forward.1} parent=1 // pred_region
      _
    $region21: #{model_forward.1} parent=1 // pred_fallthru
      _
    // Predicated region
    $region22: #{model_forward.1} parent=1 // pred_check
      _
    $region23: #{model_forward.1} parent=1 // pred_check_branch
      %36 = sbr.rel (0) target = $region25
    $region24: #{model_forward.1} parent=1 // pred_region
      _
    $region25: #{model_forward.1} parent=1 // pred_fallthru
      _
    // Predicated region
    $region26: #{model_forward.1} parent=1 // pred_check
      _
    $region27: #{model_forward.1} parent=1 // pred_check_branch
      %38 = sbr.rel (0) target = $region29
    $region28: #{model_forward.1} parent=1 // pred_region
      %s40 = ssub.s32 12288, 12288
      %41 = vsyncadd [#allocation3], %s40
      %s42 = sshll.u32 [#allocation2], 4
      %s43 = int_to_ptr.vmem [resolvable:$true] %s42
      %48 = dma.hbm_to_vmem [thread:$0]  %s6, 12288, %s43, [#allocation3], 1024, 1024, 64
    $region29: #{model_forward.1} parent=1 // pred_fallthru
      _
    // Predicated region
    $region30: #{model_forward.1} parent=1 // pred_check
      _
    $region31: #{model_forward.1} parent=1 // pred_check_branch
      %50 = sbr.rel (0) target = $region33
    $region32: #{model_forward.1} parent=1 // pred_region
      _
    $region33: #{model_forward.1} parent=1 // pred_fallthru
      _
    // Predicated region
    $region34: #{model_forward.1} parent=1 // pred_check
      _
    $region35: #{model_forward.1} parent=1 // pred_check_branch
      %52 = sbr.rel (0) target = $region37
    $region36: #{model_forward.1} parent=1 // pred_region
      _
    $region37: #{model_forward.1} parent=1 // pred_fallthru
      _
    // Predicated region
    $region38: #{model_forward.1} parent=1 // pred_check
      _
    $region39: #{model_forward.1} parent=1 // pred_check_branch
      %54 = sbr.rel (0) target = $region41
    $region40: #{model_forward.1} parent=1 // pred_region
      _
    $region41: #{model_forward.1} parent=1 // pred_fallthru
      _
    // Predicated region
    $region42: #{model_forward.1} parent=1 // pred_check
      _
    $region43: #{model_forward.1} parent=1 // pred_check_branch
      %56 = sbr.rel (0) target = $region45
    $region44: #{model_forward.1} parent=1 // pred_region
      _
    $region45: #{model_forward.1} parent=1 // pred_fallthru
      _
    // Predicated region
    $region46: #{model_forward.1} parent=1 // pred_check
      _
    $region47: #{model_forward.1} parent=1 // pred_check_branch
      %58 = sbr.rel (0) target = $region49
    $region48: #{model_forward.1} parent=1 // pred_region
      _
    $region49: #{model_forward.1} parent=1 // pred_fallthru
      _
    // Predicated region
    $region50: #{model_forward.1} parent=1 // pred_check
      _
    $region51: #{model_forward.1} parent=1 // pred_check_branch
      %60 = sbr.rel (0) target = $region53
    $region52: #{model_forward.1} parent=1 // pred_region
      _
    $region53: #{model_forward.1} parent=1 // pred_fallthru
      _
    // Predicated region
    $region54: #{model_forward.1} parent=1 // pred_check
      _
    $region55: #{model_forward.1} parent=1 // pred_check_branch
      %62 = sbr.rel (0) target = $region57
    $region56: #{model_forward.1} parent=1 // pred_region
      _
    $region57: #{model_forward.1} parent=1 // pred_fallthru
      _
    // Predicated region
    $region58: #{model_forward.1} parent=1 // pred_check
      _
    $region59: #{model_forward.1} parent=1 // pred_check_branch
      %64 = sbr.rel (0) target = $region61
    $region60: #{model_forward.1} parent=1 // pred_region
      %s66 = ssub.s32 12288, 12288
      %67 = vsyncadd [#allocation6], %s66
      %s68 = sshll.u32 [#allocation5], 4
      %s69 = int_to_ptr.vmem [resolvable:$true] %s68
      %74 = dma.hbm_to_vmem [thread:$0]  %s14, 12288, %s69, [#allocation6], 384, 384, 24
    $region61: #{model_forward.1} parent=1 // pred_fallthru
      _
    // Predicated region
    $region62: #{model_forward.1} parent=1 // pred_check
      _
    $region63: #{model_forward.1} parent=1 // pred_check_branch
      %76 = sbr.rel (0) target = $region65
    $region64: #{model_forward.1} parent=1 // pred_region
      _
    $region65: #{model_forward.1} parent=1 // pred_fallthru
      _
    // Predicated region
    $region66: #{model_forward.1} parent=1 // pred_check
      _
    $region67: #{model_forward.1} parent=1 // pred_check_branch
      %78 = sbr.rel (0) target = $region69
    $region68: #{model_forward.1} parent=1 // pred_region
      _
    $region69: #{model_forward.1} parent=1 // pred_fallthru
      _
    // Predicated region
    $region70: #{model_forward.1} parent=1 // pred_check
      _
    $region71: #{model_forward.1} parent=1 // pred_check_branch
      %80 = sbr.rel (0) target = $region73
    $region72: #{model_forward.1} parent=1 // pred_region
      %81 = dma.done [#allocation3], 12288
    $region73: #{model_forward.1} parent=1 // pred_fallthru
      _
    // Predicated region
    $region74: #{model_forward.1} parent=1 // pred_check
      _
    $region75: #{model_forward.1} parent=1 // pred_check_branch
      %83 = sbr.rel (0) target = $region77
    $region76: #{model_forward.1} parent=1 // pred_region
      %84 = dma.done [#allocation6], 12288
    $region77: #{model_forward.1} parent=1 // pred_fallthru
      _
    %v86 = vld [vmem:[%s0] sm:$0xf]
    %v87 = vld [vmem:[%s0 + $0x4] sm:$0xf]
    %v88 = vld [vmem:[%s0 + $0x8] sm:$0xf]
    %v89 = vld [vmem:[%s0 + $0xc] sm:$0xf]
    %v90 = vld [vmem:[%s0 + $0x10] sm:$0xf]
    %v91 = vld [vmem:[%s0 + $0x14] sm:$0xf]
    %v92 = vld [vmem:[%s0 + $0x18] sm:$0xf]
    %v93 = vld [vmem:[%s0 + $0x1c] sm:$0xf]
    %v94 = vld [vmem:[%s0 + $0x20] sm:$0xf]
    %v95 = vld [vmem:[%s0 + $0x24] sm:$0xf]
    %v96 = vld [vmem:[%s0 + $0x28] sm:$0xf]
    %v97 = vld [vmem:[%s0 + $0x2c] sm:$0xf]
    %v98 = vld [vmem:[%s0 + $0x30] sm:$0xf]
    %v99 = vld [vmem:[%s0 + $0x34] sm:$0xf]
    %v100 = vld [vmem:[%s0 + $0x38] sm:$0xf]
    %v101 = vld [vmem:[%s0 + $0x3c] sm:$0xf]
    %v102 = vld [vmem:[%s0 + $0x40] sm:$0xf]
    %v103 = vld [vmem:[%s0 + $0x44] sm:$0xf]
    %v104 = vld [vmem:[%s0 + $0x48] sm:$0xf]
    %v105 = vld [vmem:[%s0 + $0x4c] sm:$0xf]
    %v106 = vld [vmem:[%s0 + $0x50] sm:$0xf]
    %v107 = vld [vmem:[%s0 + $0x54] sm:$0xf]
    %v108 = vld [vmem:[%s0 + $0x58] sm:$0xf]
    %v109 = vld [vmem:[%s0 + $0x5c] sm:$0xf]
    %v110 = vld [vmem:[%s0 + $0x60] sm:$0xf]
    %v111 = vld [vmem:[%s0 + $0x64] sm:$0xf]
    %v112 = vld [vmem:[%s0 + $0x68] sm:$0xf]
    %v113 = vld [vmem:[%s0 + $0x6c] sm:$0xf]
    %v114 = vld [vmem:[%s0 + $0x70] sm:$0xf]
    %v115 = vld [vmem:[%s0 + $0x74] sm:$0xf]
    %v116 = vld [vmem:[%s0 + $0x78] sm:$0xf]
    %v117 = vld [vmem:[%s0 + $0x7c] sm:$0xf]
    %v118 = vld [vmem:[%s0 + $0x80] sm:$0xf]
    %v119 = vld [vmem:[%s0 + $0x84] sm:$0xf]
    %v120 = vld [vmem:[%s0 + $0x88] sm:$0xf]
    %v121 = vld [vmem:[%s0 + $0x8c] sm:$0xf]
    %v122 = vld [vmem:[%s0 + $0x90] sm:$0xf]
    %v123 = vld [vmem:[%s0 + $0x94] sm:$0xf]
    %v124 = vld [vmem:[%s0 + $0x98] sm:$0xf]
    %v125 = vld [vmem:[%s0 + $0x9c] sm:$0xf]
    %v126 = vld [vmem:[%s0 + $0xa0] sm:$0xf]
    %v127 = vld [vmem:[%s0 + $0xa4] sm:$0xf]
    %v128 = vld [vmem:[%s0 + $0xa8] sm:$0xf]
    %v129 = vld [vmem:[%s0 + $0xac] sm:$0xf]
    %v130 = vld [vmem:[%s0 + $0xb0] sm:$0xf]
    %v131 = vld [vmem:[%s0 + $0xb4] sm:$0xf]
    %v132 = vld [vmem:[%s0 + $0xb8] sm:$0xf]
    %v133 = vld [vmem:[%s0 + $0xbc] sm:$0xf]
    %v134 = vld [vmem:[%s0 + $0xc0] sm:$0xf]
    %v135 = vld [vmem:[%s0 + $0xc4] sm:$0xf]
    %v136 = vld [vmem:[%s0 + $0xc8] sm:$0xf]
    %v137 = vld [vmem:[%s0 + $0xcc] sm:$0xf]
    %v138 = vld [vmem:[%s0 + $0xd0] sm:$0xf]
    %v139 = vld [vmem:[%s0 + $0xd4] sm:$0xf]
    %v140 = vld [vmem:[%s0 + $0xd8] sm:$0xf]
    %v141 = vld [vmem:[%s0 + $0xdc] sm:$0xf]
    %v142 = vld [vmem:[%s0 + $0xe0] sm:$0xf]
    %v143 = vld [vmem:[%s0 + $0xe4] sm:$0xf]
    %v144 = vld [vmem:[%s0 + $0xe8] sm:$0xf]
    %v145 = vld [vmem:[%s0 + $0xec] sm:$0xf]
    %v146 = vld [vmem:[%s0 + $0xf0] sm:$0xf]
    %v147 = vld [vmem:[%s0 + $0xf4] sm:$0xf]
    %v148 = vld [vmem:[%s0 + $0xf8] sm:$0xf]
    %v149 = vld [vmem:[%s0 + $0xfc] sm:$0xf]
    %v150 = vld [vmem:[%s1] sm:$0xf]
    %v151 = vld [vmem:[%s1 + $0x4] sm:$0xf]
    %v152 = vld [vmem:[%s1 + $0x8] sm:$0xf]
    %v153 = vld [vmem:[%s1 + $0xc] sm:$0xf]
    %v154 = vld [vmem:[%s2] sm:$0x1]
    %v156 = vlaneseq
    %v157 = vshrl.u32 %v156, 7
    %v158 = vsub.s32 0, %v157
    %v159 = vrot.slane %v154, %v158
    %v225 = vunpack.c.l.b16 %v86
    %v226 = vunpack.c.l.b16 %v87
    %v227 = vunpack.c.l.b16 %v88
    %v228 = vunpack.c.l.b16 %v89
    %v229 = vunpack.c.l.b16 %v90
    %v230 = vunpack.c.l.b16 %v91
    %v231 = vunpack.c.l.b16 %v92
    %v232 = vunpack.c.l.b16 %v93
    %v233 = vunpack.c.l.b16 %v94
    %v234 = vunpack.c.l.b16 %v95
    %v235 = vunpack.c.l.b16 %v96
    %v236 = vunpack.c.l.b16 %v97
    %v237 = vunpack.c.l.b16 %v98
    %v238 = vunpack.c.l.b16 %v99
    %v239 = vunpack.c.l.b16 %v100
    %v240 = vunpack.c.l.b16 %v101
    %v241 = vunpack.c.l.b16 %v102
    %v242 = vunpack.c.l.b16 %v103
    %v243 = vunpack.c.l.b16 %v104
    %v244 = vunpack.c.l.b16 %v105
    %v245 = vunpack.c.l.b16 %v106
    %v246 = vunpack.c.l.b16 %v107
    %v247 = vunpack.c.l.b16 %v108
    %v248 = vunpack.c.l.b16 %v109
    %v249 = vunpack.c.l.b16 %v110
    %v250 = vunpack.c.l.b16 %v111
    %v251 = vunpack.c.l.b16 %v112
    %v252 = vunpack.c.l.b16 %v113
    %v253 = vunpack.c.l.b16 %v114
    %v254 = vunpack.c.l.b16 %v115
    %v255 = vunpack.c.l.b16 %v116
    %v256 = vunpack.c.l.b16 %v117
    %v257 = vunpack.c.l.b16 %v118
    %v258 = vunpack.c.l.b16 %v119
    %v259 = vunpack.c.l.b16 %v120
    %v260 = vunpack.c.l.b16 %v121
    %v261 = vunpack.c.l.b16 %v122
    %v262 = vunpack.c.l.b16 %v123
    %v263 = vunpack.c.l.b16 %v124
    %v264 = vunpack.c.l.b16 %v125
    %v265 = vunpack.c.l.b16 %v126
    %v266 = vunpack.c.l.b16 %v127
    %v267 = vunpack.c.l.b16 %v128
    %v268 = vunpack.c.l.b16 %v129
    %v269 = vunpack.c.l.b16 %v130
    %v270 = vunpack.c.l.b16 %v131
    %v271 = vunpack.c.l.b16 %v132
    %v272 = vunpack.c.l.b16 %v133
    %v273 = vunpack.c.l.b16 %v134
    %v274 = vunpack.c.l.b16 %v135
    %v275 = vunpack.c.l.b16 %v136
    %v276 = vunpack.c.l.b16 %v137
    %v277 = vunpack.c.l.b16 %v138
    %v278 = vunpack.c.l.b16 %v139
    %v279 = vunpack.c.l.b16 %v140
    %v280 = vunpack.c.l.b16 %v141
    %v281 = vunpack.c.l.b16 %v142
    %v282 = vunpack.c.l.b16 %v143
    %v283 = vunpack.c.l.b16 %v144
    %v284 = vunpack.c.l.b16 %v145
    %v285 = vunpack.c.l.b16 %v146
    %v286 = vunpack.c.l.b16 %v147
    %v287 = vunpack.c.l.b16 %v148
    %v288 = vunpack.c.l.b16 %v149
    %v289 = vpack.c.b16 %v226, %v225
    %v290 = vpack.c.b16 %v228, %v227
    %v291 = vpack.c.b16 %v230, %v229
    %v292 = vpack.c.b16 %v232, %v231
    %v293 = vpack.c.b16 %v234, %v233
    %v294 = vpack.c.b16 %v236, %v235
    %v295 = vpack.c.b16 %v238, %v237
    %v296 = vpack.c.b16 %v240, %v239
    %v297 = vpack.c.b16 %v242, %v241
    %v298 = vpack.c.b16 %v244, %v243
    %v299 = vpack.c.b16 %v246, %v245
    %v300 = vpack.c.b16 %v248, %v247
    %v301 = vpack.c.b16 %v250, %v249
    %v302 = vpack.c.b16 %v252, %v251
    %v303 = vpack.c.b16 %v254, %v253
    %v304 = vpack.c.b16 %v256, %v255
    %v305 = vpack.c.b16 %v258, %v257
    %v306 = vpack.c.b16 %v260, %v259
    %v307 = vpack.c.b16 %v262, %v261
    %v308 = vpack.c.b16 %v264, %v263
    %v309 = vpack.c.b16 %v266, %v265
    %v310 = vpack.c.b16 %v268, %v267
    %v311 = vpack.c.b16 %v270, %v269
    %v312 = vpack.c.b16 %v272, %v271
    %v313 = vpack.c.b16 %v274, %v273
    %v314 = vpack.c.b16 %v276, %v275
    %v315 = vpack.c.b16 %v278, %v277
    %v316 = vpack.c.b16 %v280, %v279
    %v317 = vpack.c.b16 %v282, %v281
    %v318 = vpack.c.b16 %v284, %v283
    %v319 = vpack.c.b16 %v286, %v285
    %v320 = vpack.c.b16 %v288, %v287
    %v325 = vunpack.c.l.b16 %v150
    %v326 = vunpack.c.l.b16 %v151
    %v327 = vunpack.c.l.b16 %v152
    %v328 = vunpack.c.l.b16 %v153
    %v329 = vpack.c.b16 %v326, %v325
    %v330 = vpack.c.b16 %v328, %v327
    %vm333 = vcmask 261120
    %v335 = vsel %vm333, %v289, 0
    %v338 = vsel %vm333, %v290, 0
    %v341 = vsel %vm333, %v291, 0
    %v344 = vsel %vm333, %v292, 0
    %v347 = vsel %vm333, %v293, 0
    %v350 = vsel %vm333, %v294, 0
    %v353 = vsel %vm333, %v295, 0
    %v356 = vsel %vm333, %v296, 0
    %v359 = vsel %vm333, %v297, 0
    %v362 = vsel %vm333, %v298, 0
    %v365 = vsel %vm333, %v299, 0
    %v368 = vsel %vm333, %v300, 0
    %v371 = vsel %vm333, %v301, 0
    %v374 = vsel %vm333, %v302, 0
    %v377 = vsel %vm333, %v303, 0
    %v380 = vsel %vm333, %v304, 0
    %v383 = vsel %vm333, %v305, 0
    %v386 = vsel %vm333, %v306, 0
    %v389 = vsel %vm333, %v307, 0
    %v392 = vsel %vm333, %v308, 0
    %v395 = vsel %vm333, %v309, 0
    %v398 = vsel %vm333, %v310, 0
    %v401 = vsel %vm333, %v311, 0
    %v404 = vsel %vm333, %v312, 0
    %v407 = vsel %vm333, %v313, 0
    %v410 = vsel %vm333, %v314, 0
    %v413 = vsel %vm333, %v315, 0
    %v416 = vsel %vm333, %v316, 0
    %v419 = vsel %vm333, %v317, 0
    %v422 = vsel %vm333, %v318, 0
    %v425 = vsel %vm333, %v319, 0
    %v428 = vsel %vm333, %v320, 0
    %430 = vmatprep.subr.bf16.mxu0 0
    %431 = vmatpush1.bf16.msra.mxu0 %v329
    %432 = vmatprep.subr.bf16.mxu0 0
    %433 = vmatpush1.bf16.msra.mxu0 %v330
    %434 = vmatprep.subr.bf16.mxu0 0
    %435 = vmatpush1.bf16.msra.mxu0 0
    %436 = vmatprep.subr.bf16.mxu0 0
    %437 = vmatpush1.bf16.msra.mxu0 0
    %438 = vmatprep.subr.bf16.mxu0 0
    %439 = vmatpush1.bf16.msra.mxu0 0
    %440 = vmatprep.subr.bf16.mxu0 0
    %441 = vmatpush1.bf16.msra.mxu0 0
    %442 = vmatprep.subr.bf16.mxu0 0
    %443 = vmatpush1.bf16.msra.mxu0 0
    %444 = vmatprep.subr.bf16.mxu0 0
    %445 = vmatpush1.bf16.msra.mxu0 0
    %446 = vmatprep.subr.bf16.mxu0 0
    %447 = vmatpush1.bf16.msra.mxu0 0
    %448 = vmatprep.subr.bf16.mxu0 0
    %449 = vmatpush1.bf16.msra.mxu0 0
    %450 = vmatprep.subr.bf16.mxu0 0
    %451 = vmatpush1.bf16.msra.mxu0 0
    %452 = vmatprep.subr.bf16.mxu0 0
    %453 = vmatpush1.bf16.msra.mxu0 0
    %454 = vmatprep.subr.bf16.mxu0 0
    %455 = vmatpush1.bf16.msra.mxu0 0
    %456 = vmatprep.subr.bf16.mxu0 0
    %457 = vmatpush1.bf16.msra.mxu0 0
    %458 = vmatprep.subr.bf16.mxu0 0
    %459 = vmatpush1.bf16.msra.mxu0 0
    %460 = vmatprep.subr.bf16.mxu0 0
    %461 = vmatpush1.bf16.msra.mxu0 0
    %462 = vmatprep.mubr.bf16.mxu0 0
    %463 = vmatmul.mubr.bf16.gmra.mrb[0].mxu0 %v335
    %v464 = vpop.f32.mrb[0].mxu0
    %v465 = vadd.f32 %v159, %v464
    %v466 = vpop.f32.mrb[0].mxu0
    %v467 = vpop.f32.mrb[0].mxu0
    %v468 = vadd.f32 %v159, %v467
    %v469 = vpop.f32.mrb[0].mxu0
    %470 = vmatprep.mubr.bf16.mxu0 0
    %471 = vmatmul.mubr.bf16.gmra.mrb[0].mxu0 %v338
    %v472 = vpop.f32.mrb[0].mxu0
    %v473 = vadd.f32 %v159, %v472
    %v474 = vpop.f32.mrb[0].mxu0
    %v475 = vpop.f32.mrb[0].mxu0
    %v476 = vadd.f32 %v159, %v475
    %v477 = vpop.f32.mrb[0].mxu0
    %478 = vmatprep.mubr.bf16.mxu0 0
    %479 = vmatmul.mubr.bf16.gmra.mrb[0].mxu0 %v341
    %v480 = vpop.f32.mrb[0].mxu0
    %v481 = vadd.f32 %v159, %v480
    %v482 = vpop.f32.mrb[0].mxu0
    %v483 = vpop.f32.mrb[0].mxu0
    %v484 = vadd.f32 %v159, %v483
    %v485 = vpop.f32.mrb[0].mxu0
    %486 = vmatprep.mubr.bf16.mxu0 0
    %487 = vmatmul.mubr.bf16.gmra.mrb[0].mxu0 %v344
    %v488 = vpop.f32.mrb[0].mxu0
    %v489 = vadd.f32 %v159, %v488
    %v490 = vpop.f32.mrb[0].mxu0
    %v491 = vpop.f32.mrb[0].mxu0
    %v492 = vadd.f32 %v159, %v491
    %v493 = vpop.f32.mrb[0].mxu0
    %494 = vmatprep.mubr.bf16.mxu0 0
    %495 = vmatmul.mubr.bf16.gmra.mrb[0].mxu0 %v347
    %v496 = vpop.f32.mrb[0].mxu0
    %v497 = vadd.f32 %v159, %v496
    %v498 = vpop.f32.mrb[0].mxu0
    %v499 = vpop.f32.mrb[0].mxu0
    %v500 = vadd.f32 %v159, %v499
    %v501 = vpop.f32.mrb[0].mxu0
    %502 = vmatprep.mubr.bf16.mxu0 0
    %503 = vmatmul.mubr.bf16.gmra.mrb[0].mxu0 %v350
    %v504 = vpop.f32.mrb[0].mxu0
    %v505 = vadd.f32 %v159, %v504
    %v506 = vpop.f32.mrb[0].mxu0
    %v507 = vpop.f32.mrb[0].mxu0
    %v508 = vadd.f32 %v159, %v507
    %v509 = vpop.f32.mrb[0].mxu0
    %510 = vmatprep.mubr.bf16.mxu0 0
    %511 = vmatmul.mubr.bf16.gmra.mrb[0].mxu0 %v353
    %v512 = vpop.f32.mrb[0].mxu0
    %v513 = vadd.f32 %v159, %v512
    %v514 = vpop.f32.mrb[0].mxu0
    %v515 = vpop.f32.mrb[0].mxu0
    %v516 = vadd.f32 %v159, %v515
    %v517 = vpop.f32.mrb[0].mxu0
    %518 = vmatprep.mubr.bf16.mxu0 0
    %519 = vmatmul.mubr.bf16.gmra.mrb[0].mxu0 %v356
    %v520 = vpop.f32.mrb[0].mxu0
    %v521 = vadd.f32 %v159, %v520
    %v522 = vpop.f32.mrb[0].mxu0
    %v523 = vpop.f32.mrb[0].mxu0
    %v524 = vadd.f32 %v159, %v523
    %v525 = vpop.f32.mrb[0].mxu0
    %526 = vmatprep.mubr.bf16.mxu0 0
    %527 = vmatmul.mubr.bf16.gmra.mrb[0].mxu0 %v359
    %v528 = vpop.f32.mrb[0].mxu0
    %v529 = vadd.f32 %v159, %v528
    %v530 = vpop.f32.mrb[0].mxu0
    %v531 = vpop.f32.mrb[0].mxu0
    %v532 = vadd.f32 %v159, %v531
    %v533 = vpop.f32.mrb[0].mxu0
    %534 = vmatprep.mubr.bf16.mxu0 0
    %535 = vmatmul.mubr.bf16.gmra.mrb[0].mxu0 %v362
    %v536 = vpop.f32.mrb[0].mxu0
    %v537 = vadd.f32 %v159, %v536
    %v538 = vpop.f32.mrb[0].mxu0
    %v539 = vpop.f32.mrb[0].mxu0
    %v540 = vadd.f32 %v159, %v539
    %v541 = vpop.f32.mrb[0].mxu0
    %542 = vmatprep.mubr.bf16.mxu0 0
    %543 = vmatmul.mubr.bf16.gmra.mrb[0].mxu0 %v365
    %v544 = vpop.f32.mrb[0].mxu0
    %v545 = vadd.f32 %v159, %v544
    %v546 = vpop.f32.mrb[0].mxu0
    %v547 = vpop.f32.mrb[0].mxu0
    %v548 = vadd.f32 %v159, %v547
    %v549 = vpop.f32.mrb[0].mxu0
    %550 = vmatprep.mubr.bf16.mxu0 0
    %551 = vmatmul.mubr.bf16.gmra.mrb[0].mxu0 %v368
    %v552 = vpop.f32.mrb[0].mxu0
    %v553 = vadd.f32 %v159, %v552
    %v554 = vpop.f32.mrb[0].mxu0
    %v555 = vpop.f32.mrb[0].mxu0
    %v556 = vadd.f32 %v159, %v555
    %v557 = vpop.f32.mrb[0].mxu0
    %558 = vmatprep.mubr.bf16.mxu0 0
    %559 = vmatmul.mubr.bf16.gmra.mrb[0].mxu0 %v371
    %v560 = vpop.f32.mrb[0].mxu0
    %v561 = vadd.f32 %v159, %v560
    %v562 = vpop.f32.mrb[0].mxu0
    %v563 = vpop.f32.mrb[0].mxu0
    %v564 = vadd.f32 %v159, %v563
    %v565 = vpop.f32.mrb[0].mxu0
    %566 = vmatprep.mubr.bf16.mxu0 0
    %567 = vmatmul.mubr.bf16.gmra.mrb[0].mxu0 %v374
    %v568 = vpop.f32.mrb[0].mxu0
    %v569 = vadd.f32 %v159, %v568
    %v570 = vpop.f32.mrb[0].mxu0
    %v571 = vpop.f32.mrb[0].mxu0
    %v572 = vadd.f32 %v159, %v571
    %v573 = vpop.f32.mrb[0].mxu0
    %574 = vmatprep.mubr.bf16.mxu0 0
    %575 = vmatmul.mubr.bf16.gmra.mrb[0].mxu0 %v377
    %v576 = vpop.f32.mrb[0].mxu0
    %v577 = vadd.f32 %v159, %v576
    %v578 = vpop.f32.mrb[0].mxu0
    %v579 = vpop.f32.mrb[0].mxu0
    %v580 = vadd.f32 %v159, %v579
    %v581 = vpop.f32.mrb[0].mxu0
    %582 = vmatprep.mubr.bf16.mxu0 0
    %583 = vmatmul.mubr.bf16.gmra.mrb[0].mxu0 %v380
    %v584 = vpop.f32.mrb[0].mxu0
    %v585 = vadd.f32 %v159, %v584
    %v586 = vpop.f32.mrb[0].mxu0
    %v587 = vpop.f32.mrb[0].mxu0
    %v588 = vadd.f32 %v159, %v587
    %v589 = vpop.f32.mrb[0].mxu0
    %590 = vmatprep.mubr.bf16.mxu0 0
    %591 = vmatmul.mubr.bf16.gmra.mrb[0].mxu0 %v383
    %v592 = vpop.f32.mrb[0].mxu0
    %v593 = vadd.f32 %v159, %v592
    %v594 = vpop.f32.mrb[0].mxu0
    %v595 = vpop.f32.mrb[0].mxu0
    %v596 = vadd.f32 %v159, %v595
    %v597 = vpop.f32.mrb[0].mxu0
    %598 = vmatprep.mubr.bf16.mxu0 0
    %599 = vmatmul.mubr.bf16.gmra.mrb[0].mxu0 %v386
    %v600 = vpop.f32.mrb[0].mxu0
    %v601 = vadd.f32 %v159, %v600
    %v602 = vpop.f32.mrb[0].mxu0
    %v603 = vpop.f32.mrb[0].mxu0
    %v604 = vadd.f32 %v159, %v603
    %v605 = vpop.f32.mrb[0].mxu0
    %606 = vmatprep.mubr.bf16.mxu0 0
    %607 = vmatmul.mubr.bf16.gmra.mrb[0].mxu0 %v389
    %v608 = vpop.f32.mrb[0].mxu0
    %v609 = vadd.f32 %v159, %v608
    %v610 = vpop.f32.mrb[0].mxu0
    %v611 = vpop.f32.mrb[0].mxu0
    %v612 = vadd.f32 %v159, %v611
    %v613 = vpop.f32.mrb[0].mxu0
    %614 = vmatprep.mubr.bf16.mxu0 0
    %615 = vmatmul.mubr.bf16.gmra.mrb[0].mxu0 %v392
    %v616 = vpop.f32.mrb[0].mxu0
    %v617 = vadd.f32 %v159, %v616
    %v618 = vpop.f32.mrb[0].mxu0
    %v619 = vpop.f32.mrb[0].mxu0
    %v620 = vadd.f32 %v159, %v619
    %v621 = vpop.f32.mrb[0].mxu0
    %622 = vmatprep.mubr.bf16.mxu0 0
    %623 = vmatmul.mubr.bf16.gmra.mrb[0].mxu0 %v395
    %v624 = vpop.f32.mrb[0].mxu0
    %v625 = vadd.f32 %v159, %v624
    %v626 = vpop.f32.mrb[0].mxu0
    %v627 = vpop.f32.mrb[0].mxu0
    %v628 = vadd.f32 %v159, %v627
    %v629 = vpop.f32.mrb[0].mxu0
    %630 = vmatprep.mubr.bf16.mxu0 0
    %631 = vmatmul.mubr.bf16.gmra.mrb[0].mxu0 %v398
    %v632 = vpop.f32.mrb[0].mxu0
    %v633 = vadd.f32 %v159, %v632
    %v634 = vpop.f32.mrb[0].mxu0
    %v635 = vpop.f32.mrb[0].mxu0
    %v636 = vadd.f32 %v159, %v635
    %v637 = vpop.f32.mrb[0].mxu0
    %638 = vmatprep.mubr.bf16.mxu0 0
    %639 = vmatmul.mubr.bf16.gmra.mrb[0].mxu0 %v401
    %v640 = vpop.f32.mrb[0].mxu0
    %v641 = vadd.f32 %v159, %v640
    %v642 = vpop.f32.mrb[0].mxu0
    %v643 = vpop.f32.mrb[0].mxu0
    %v644 = vadd.f32 %v159, %v643
    %v645 = vpop.f32.mrb[0].mxu0
    %646 = vmatprep.mubr.bf16.mxu0 0
    %647 = vmatmul.mubr.bf16.gmra.mrb[0].mxu0 %v404
    %v648 = vpop.f32.mrb[0].mxu0
    %v649 = vadd.f32 %v159, %v648
    %v650 = vpop.f32.mrb[0].mxu0
    %v651 = vpop.f32.mrb[0].mxu0
    %v652 = vadd.f32 %v159, %v651
    %v653 = vpop.f32.mrb[0].mxu0
    %654 = vmatprep.mubr.bf16.mxu0 0
    %655 = vmatmul.mubr.bf16.gmra.mrb[0].mxu0 %v407
    %v656 = vpop.f32.mrb[0].mxu0
    %v657 = vadd.f32 %v159, %v656
    %v658 = vpop.f32.mrb[0].mxu0
    %v659 = vpop.f32.mrb[0].mxu0
    %v660 = vadd.f32 %v159, %v659
    %v661 = vpop.f32.mrb[0].mxu0
    %662 = vmatprep.mubr.bf16.mxu0 0
    %663 = vmatmul.mubr.bf16.gmra.mrb[0].mxu0 %v410
    %v664 = vpop.f32.mrb[0].mxu0
    %v665 = vadd.f32 %v159, %v664
    %v666 = vpop.f32.mrb[0].mxu0
    %v667 = vpop.f32.mrb[0].mxu0
    %v668 = vadd.f32 %v159, %v667
    %v669 = vpop.f32.mrb[0].mxu0
    %670 = vmatprep.mubr.bf16.mxu0 0
    %671 = vmatmul.mubr.bf16.gmra.mrb[0].mxu0 %v413
    %v672 = vpop.f32.mrb[0].mxu0
    %v673 = vadd.f32 %v159, %v672
    %v674 = vpop.f32.mrb[0].mxu0
    %v675 = vpop.f32.mrb[0].mxu0
    %v676 = vadd.f32 %v159, %v675
    %v677 = vpop.f32.mrb[0].mxu0
    %678 = vmatprep.mubr.bf16.mxu0 0
    %679 = vmatmul.mubr.bf16.gmra.mrb[0].mxu0 %v416
    %v680 = vpop.f32.mrb[0].mxu0
    %v681 = vadd.f32 %v159, %v680
    %v682 = vpop.f32.mrb[0].mxu0
    %v683 = vpop.f32.mrb[0].mxu0
    %v684 = vadd.f32 %v159, %v683
    %v685 = vpop.f32.mrb[0].mxu0
    %686 = vmatprep.mubr.bf16.mxu0 0
    %687 = vmatmul.mubr.bf16.gmra.mrb[0].mxu0 %v419
    %v688 = vpop.f32.mrb[0].mxu0
    %v689 = vadd.f32 %v159, %v688
    %v690 = vpop.f32.mrb[0].mxu0
    %v691 = vpop.f32.mrb[0].mxu0
    %v692 = vadd.f32 %v159, %v691
    %v693 = vpop.f32.mrb[0].mxu0
    %694 = vmatprep.mubr.bf16.mxu0 0
    %695 = vmatmul.mubr.bf16.gmra.mrb[0].mxu0 %v422
    %v696 = vpop.f32.mrb[0].mxu0
    %v697 = vadd.f32 %v159, %v696
    %v698 = vpop.f32.mrb[0].mxu0
    %v699 = vpop.f32.mrb[0].mxu0
    %v700 = vadd.f32 %v159, %v699
    %v701 = vpop.f32.mrb[0].mxu0
    %702 = vmatprep.mubr.bf16.mxu0 0
    %703 = vmatmul.mubr.bf16.gmra.mrb[0].mxu0 %v425
    %v704 = vpop.f32.mrb[0].mxu0
    %v705 = vadd.f32 %v159, %v704
    %v706 = vpop.f32.mrb[0].mxu0
    %v707 = vpop.f32.mrb[0].mxu0
    %v708 = vadd.f32 %v159, %v707
    %v709 = vpop.f32.mrb[0].mxu0
    %710 = vmatprep.mubr.bf16.mxu0 0
    %711 = vmatmul.mubr.bf16.gmra.mrb[0].mxu0 %v428
    %v712 = vpop.f32.mrb[0].mxu0
    %v713 = vadd.f32 %v159, %v712
    %v714 = vpop.f32.mrb[0].mxu0
    %v715 = vpop.f32.mrb[0].mxu0
    %v716 = vadd.f32 %v159, %v715
    %v717 = vpop.f32.mrb[0].mxu0
    %718 = vdwg.mxu0
    %v719 = vmax.f32 %v465, 0.0
    %v720 = vmax.f32 %v468, 0.0
    %v721 = vmax.f32 %v473, 0.0
    %v722 = vmax.f32 %v476, 0.0
    %v723 = vmax.f32 %v481, 0.0
    %v724 = vmax.f32 %v484, 0.0
    %v725 = vmax.f32 %v489, 0.0
    %v726 = vmax.f32 %v492, 0.0
    %v727 = vmax.f32 %v497, 0.0
    %v728 = vmax.f32 %v500, 0.0
    %v729 = vmax.f32 %v505, 0.0
    %v730 = vmax.f32 %v508, 0.0
    %v731 = vmax.f32 %v513, 0.0
    %v732 = vmax.f32 %v516, 0.0
    %v733 = vmax.f32 %v521, 0.0
    %v734 = vmax.f32 %v524, 0.0
    %v735 = vmax.f32 %v529, 0.0
    %v736 = vmax.f32 %v532, 0.0
    %v737 = vmax.f32 %v537, 0.0
    %v738 = vmax.f32 %v540, 0.0
    %v739 = vmax.f32 %v545, 0.0
    %v740 = vmax.f32 %v548, 0.0
    %v741 = vmax.f32 %v553, 0.0
    %v742 = vmax.f32 %v556, 0.0
    %v743 = vmax.f32 %v561, 0.0
    %v744 = vmax.f32 %v564, 0.0
    %v745 = vmax.f32 %v569, 0.0
    %v746 = vmax.f32 %v572, 0.0
    %v747 = vmax.f32 %v577, 0.0
    %v748 = vmax.f32 %v580, 0.0
    %v749 = vmax.f32 %v585, 0.0
    %v750 = vmax.f32 %v588, 0.0
    %v751 = vmax.f32 %v593, 0.0
    %v752 = vmax.f32 %v596, 0.0
    %v753 = vmax.f32 %v601, 0.0
    %v754 = vmax.f32 %v604, 0.0
    %v755 = vmax.f32 %v609, 0.0
    %v756 = vmax.f32 %v612, 0.0
    %v757 = vmax.f32 %v617, 0.0
    %v758 = vmax.f32 %v620, 0.0
    %v759 = vmax.f32 %v625, 0.0
    %v760 = vmax.f32 %v628, 0.0
    %v761 = vmax.f32 %v633, 0.0
    %v762 = vmax.f32 %v636, 0.0
    %v763 = vmax.f32 %v641, 0.0
    %v764 = vmax.f32 %v644, 0.0
    %v765 = vmax.f32 %v649, 0.0
    %v766 = vmax.f32 %v652, 0.0
    %v767 = vmax.f32 %v657, 0.0
    %v768 = vmax.f32 %v660, 0.0
    %v769 = vmax.f32 %v665, 0.0
    %v770 = vmax.f32 %v668, 0.0
    %v771 = vmax.f32 %v673, 0.0
    %v772 = vmax.f32 %v676, 0.0
    %v773 = vmax.f32 %v681, 0.0
    %v774 = vmax.f32 %v684, 0.0
    %v775 = vmax.f32 %v689, 0.0
    %v776 = vmax.f32 %v692, 0.0
    %v777 = vmax.f32 %v697, 0.0
    %v778 = vmax.f32 %v700, 0.0
    %v779 = vmax.f32 %v705, 0.0
    %v780 = vmax.f32 %v708, 0.0
    %v781 = vmax.f32 %v713, 0.0
    %v782 = vmax.f32 %v716, 0.0
    %v783 = vld [vmem:[%s3] sm:$0xf]
    %v784 = vpack.c.bf16 %v720, %v719
    %v785 = vpack.c.bf16 %v722, %v721
    %v786 = vpack.c.bf16 %v724, %v723
    %v787 = vpack.c.bf16 %v726, %v725
    %v788 = vpack.c.bf16 %v728, %v727
    %v789 = vpack.c.bf16 %v730, %v729
    %v790 = vpack.c.bf16 %v732, %v731
    %v791 = vpack.c.bf16 %v734, %v733
    %v792 = vpack.c.bf16 %v736, %v735
    %v793 = vpack.c.bf16 %v738, %v737
    %v794 = vpack.c.bf16 %v740, %v739
    %v795 = vpack.c.bf16 %v742, %v741
    %v796 = vpack.c.bf16 %v744, %v743
    %v797 = vpack.c.bf16 %v746, %v745
    %v798 = vpack.c.bf16 %v748, %v747
    %v799 = vpack.c.bf16 %v750, %v749
    %v800 = vpack.c.bf16 %v752, %v751
    %v801 = vpack.c.bf16 %v754, %v753
    %v802 = vpack.c.bf16 %v756, %v755
    %v803 = vpack.c.bf16 %v758, %v757
    %v804 = vpack.c.bf16 %v760, %v759
    %v805 = vpack.c.bf16 %v762, %v761
    %v806 = vpack.c.bf16 %v764, %v763
    %v807 = vpack.c.bf16 %v766, %v765
    %v808 = vpack.c.bf16 %v768, %v767
    %v809 = vpack.c.bf16 %v770, %v769
    %v810 = vpack.c.bf16 %v772, %v771
    %v811 = vpack.c.bf16 %v774, %v773
    %v812 = vpack.c.bf16 %v776, %v775
    %v813 = vpack.c.bf16 %v778, %v777
    %v814 = vpack.c.bf16 %v780, %v779
    %v815 = vpack.c.bf16 %v782, %v781
    %v818 = vunpack.c.l.s4 1966171168
    %v819 = vunpack.c.0.s8 %v818
    %v820 = vlaneseq
    %v821 = vshrl.u32 %v820, 7
    %v822 = vsub.s32 %v819, %v821
    %v823 = vrot.slane %v783, %v822
    %v824 = vcombine.high %v823, %v823
    %v826 = vunpack.c.l.s4 1966171168
    %v827 = vunpack.c.0.s8 %v826
    %v828 = vlaneseq
    %v829 = vshrl.u32 %v828, 7
    %v830 = vsub.s32 %v827, %v829
    %v831 = vrot.slane %v823, %v830
    %v833 = vunpack.c.l.s4 1966171168
    %v834 = vunpack.c.0.s8 %v833
    %v835 = vlaneseq
    %v836 = vshrl.u32 %v835, 7
    %v837 = vsub.s32 %v834, %v836
    %v838 = vrot.slane %v824, %v837
    %v839 = vcombine.high %v831, %v831
    %v840 = vcombine.high %v838, %v838
    %845 = vmatprep.subr.bf16.mxu0 0
    %846 = vmatpush1.bf16.msra.mxu0 %v784
    %847 = vmatprep.subr.bf16.mxu0 0
    %848 = vmatpush1.bf16.msra.mxu0 %v785
    %849 = vmatprep.subr.bf16.mxu0 0
    %850 = vmatpush1.bf16.msra.mxu0 %v786
    %851 = vmatprep.subr.bf16.mxu0 0
    %852 = vmatpush1.bf16.msra.mxu0 %v787
    %853 = vmatprep.subr.bf16.mxu0 0
    %854 = vmatpush1.bf16.msra.mxu0 %v788
    %855 = vmatprep.subr.bf16.mxu0 0
    %856 = vmatpush1.bf16.msra.mxu0 %v789
    %857 = vmatprep.subr.bf16.mxu0 0
    %858 = vmatpush1.bf16.msra.mxu0 %v790
    %859 = vmatprep.subr.bf16.mxu0 0
    %860 = vmatpush1.bf16.msra.mxu0 %v791
    %861 = vmatprep.subr.bf16.mxu0 0
    %862 = vmatpush1.bf16.msra.mxu0 %v792
    %863 = vmatprep.subr.bf16.mxu0 0
    %864 = vmatpush1.bf16.msra.mxu0 %v793
    %865 = vmatprep.subr.bf16.mxu0 0
    %866 = vmatpush1.bf16.msra.mxu0 %v794
    %867 = vmatprep.subr.bf16.mxu0 0
    %868 = vmatpush1.bf16.msra.mxu0 %v795
    %869 = vmatprep.subr.bf16.mxu0 0
    %870 = vmatpush1.bf16.msra.mxu0 %v796
    %871 = vmatprep.subr.bf16.mxu0 0
    %872 = vmatpush1.bf16.msra.mxu0 %v797
    %873 = vmatprep.subr.bf16.mxu0 0
    %874 = vmatpush1.bf16.msra.mxu0 %v798
    %875 = vmatprep.subr.bf16.mxu0 0
    %876 = vmatpush1.bf16.msra.mxu0 %v799
    %877 = vmatprep.mubr.bf16.mxu0 %v838
    %878 = vmatmul.mubr.bf16.gmra.mrb[0].mxu0 %v831
    %v879 = vpop.f32.mrb[0].mxu0
    %v880 = vadd.f32 0.0, %v879
    %v881 = vpop.f32.mrb[0].mxu0
    %v882 = vpop.f32.mrb[0].mxu0
    %v883 = vpop.f32.mrb[0].mxu0
    %884 = vdwg.mxu0
    %885 = vmatprep.subr.bf16.mxu0 0
    %886 = vmatpush1.bf16.msra.mxu0 %v800
    %887 = vmatprep.subr.bf16.mxu0 0
    %888 = vmatpush1.bf16.msra.mxu0 %v801
    %889 = vmatprep.subr.bf16.mxu0 0
    %890 = vmatpush1.bf16.msra.mxu0 %v802
    %891 = vmatprep.subr.bf16.mxu0 0
    %892 = vmatpush1.bf16.msra.mxu0 %v803
    %893 = vmatprep.subr.bf16.mxu0 0
    %894 = vmatpush1.bf16.msra.mxu0 %v804
    %895 = vmatprep.subr.bf16.mxu0 0
    %896 = vmatpush1.bf16.msra.mxu0 %v805
    %897 = vmatprep.subr.bf16.mxu0 0
    %898 = vmatpush1.bf16.msra.mxu0 %v806
    %899 = vmatprep.subr.bf16.mxu0 0
    %900 = vmatpush1.bf16.msra.mxu0 %v807
    %901 = vmatprep.subr.bf16.mxu0 0
    %902 = vmatpush1.bf16.msra.mxu0 %v808
    %903 = vmatprep.subr.bf16.mxu0 0
    %904 = vmatpush1.bf16.msra.mxu0 %v809
    %905 = vmatprep.subr.bf16.mxu0 0
    %906 = vmatpush1.bf16.msra.mxu0 %v810
    %907 = vmatprep.subr.bf16.mxu0 0
    %908 = vmatpush1.bf16.msra.mxu0 %v811
    %909 = vmatprep.subr.bf16.mxu0 0
    %910 = vmatpush1.bf16.msra.mxu0 %v812
    %911 = vmatprep.subr.bf16.mxu0 0
    %912 = vmatpush1.bf16.msra.mxu0 %v813
    %913 = vmatprep.subr.bf16.mxu0 0
    %914 = vmatpush1.bf16.msra.mxu0 %v814
    %915 = vmatprep.subr.bf16.mxu0 0
    %916 = vmatpush1.bf16.msra.mxu0 %v815
    %917 = vmatprep.mubr.bf16.mxu0 %v840
    %918 = vmatmul.mubr.bf16.gmra.mrb[0].mxu0 %v839
    %v919 = vpop.f32.mrb[0].mxu0
    %v920 = vadd.f32 %v880, %v919
    %v921 = vpop.f32.mrb[0].mxu0
    %v922 = vpop.f32.mrb[0].mxu0
    %v923 = vpop.f32.mrb[0].mxu0
    %924 = vdwg.mxu0
    %v925 = vpack.c.bf16 %v920, %v920
    %v926 = vld [vmem:[%s4] sm:$0xff]
    %v927 = vld [vmem:[%s4 + $0x8] sm:$0xf]
    %v928 = vld [vmem:[%s4 + $0xc] sm:$0xff]
    %v929 = vld [vmem:[%s4 + $0x14] sm:$0xf]
    %v930 = vld [vmem:[%s4 + $0x18] sm:$0xff]
    %v931 = vld [vmem:[%s4 + $0x20] sm:$0xf]
    %v932 = vld [vmem:[%s4 + $0x24] sm:$0xff]
    %v933 = vld [vmem:[%s4 + $0x2c] sm:$0xf]
    %v934 = vld [vmem:[%s5] sm:$0x7]
    %v936 = vlaneseq
    %v937 = vshrl.u32 %v936, 7
    %v938 = vsub.s32 0, %v937
    %v939 = vrot.slane %v934, %v938
    %v940 = vlaneseq
    %v941 = vshrl.u32 %v940, 7
    %v942 = vsub.s32 1, %v941
    %v943 = vrot.slane %v934, %v942
    %v944 = vlaneseq
    %v945 = vshrl.u32 %v944, 7
    %v946 = vsub.s32 2, %v945
    %v947 = vrot.slane %v934, %v946
    %v959 = vunpack.c.l.b16 %v926
    %v960 = vunpack.c.h.b16 %v926
    %v961 = vunpack.c.l.b16 %v927
    %v962 = vunpack.c.l.b16 %v928
    %v963 = vunpack.c.h.b16 %v928
    %v964 = vunpack.c.l.b16 %v929
    %v965 = vunpack.c.l.b16 %v930
    %v966 = vunpack.c.h.b16 %v930
    %v967 = vunpack.c.l.b16 %v931
    %v968 = vunpack.c.l.b16 %v932
    %v969 = vunpack.c.h.b16 %v932
    %v970 = vunpack.c.l.b16 %v933
    %v971 = vpack.c.b16 %v962, %v959
    %v972 = vpack.c.b16 %v963, %v960
    %v973 = vpack.c.b16 %v964, %v961
    %v974 = vpack.c.b16 %v968, %v965
    %v975 = vpack.c.b16 %v969, %v966
    %v976 = vpack.c.b16 %v970, %v967
    %v984 = vsel %vm333, %v925, 0
    %986 = vmatprep.subr.bf16.mxu0 %v972
    %987 = vmatpush1.bf16.msra.mxu0 %v971
    %988 = vmatprep.subr.bf16.mxu0 %v975
    %989 = vmatpush1.bf16.msra.mxu0 %v974
    %990 = vmatprep.subr.bf16.mxu0 0
    %991 = vmatpush1.bf16.msra.mxu0 0
    %992 = vmatprep.subr.bf16.mxu0 0
    %993 = vmatpush1.bf16.msra.mxu0 0
    %994 = vmatprep.subr.bf16.mxu0 0
    %995 = vmatpush1.bf16.msra.mxu0 0
    %996 = vmatprep.subr.bf16.mxu0 0
    %997 = vmatpush1.bf16.msra.mxu0 0
    %998 = vmatprep.subr.bf16.mxu0 0
    %999 = vmatpush1.bf16.msra.mxu0 0
    %1000 = vmatprep.subr.bf16.mxu0 0
    %1001 = vmatpush1.bf16.msra.mxu0 0
    %1002 = vmatprep.subr.bf16.mxu0 0
    %1003 = vmatpush1.bf16.msra.mxu0 0
    %1004 = vmatprep.subr.bf16.mxu0 0
    %1005 = vmatpush1.bf16.msra.mxu0 0
    %1006 = vmatprep.subr.bf16.mxu0 0
    %1007 = vmatpush1.bf16.msra.mxu0 0
    %1008 = vmatprep.subr.bf16.mxu0 0
    %1009 = vmatpush1.bf16.msra.mxu0 0
    %1010 = vmatprep.subr.bf16.mxu0 0
    %1011 = vmatpush1.bf16.msra.mxu0 0
    %1012 = vmatprep.subr.bf16.mxu0 0
    %1013 = vmatpush1.bf16.msra.mxu0 0
    %1014 = vmatprep.subr.bf16.mxu0 0
    %1015 = vmatpush1.bf16.msra.mxu0 0
    %1016 = vmatprep.subr.bf16.mxu0 0
    %1017 = vmatpush1.bf16.msra.mxu0 0
    %1018 = vmatprep.mubr.bf16.mxu0 0
    %1019 = vmatmul.mubr.bf16.gmra.mrb[0].mxu0 %v984
    %v1020 = vpop.f32.mrb[0].mxu0
    %v1021 = vadd.f32 %v939, %v1020
    %v1022 = vpop.f32.mrb[0].mxu0
    %v1023 = vadd.f32 %v943, %v1022
    %v1024 = vpop.f32.mrb[0].mxu0
    %v1025 = vpop.f32.mrb[0].mxu0
    %1026 = vdwg.mxu0
    %1027 = vmatprep.subr.bf16.mxu0 0
    %1028 = vmatpush1.bf16.msra.mxu0 %v973
    %1029 = vmatprep.subr.bf16.mxu0 0
    %1030 = vmatpush1.bf16.msra.mxu0 %v976
    %1031 = vmatprep.subr.bf16.mxu0 0
    %1032 = vmatpush1.bf16.msra.mxu0 0
    %1033 = vmatprep.subr.bf16.mxu0 0
    %1034 = vmatpush1.bf16.msra.mxu0 0
    %1035 = vmatprep.subr.bf16.mxu0 0
    %1036 = vmatpush1.bf16.msra.mxu0 0
    %1037 = vmatprep.subr.bf16.mxu0 0
    %1038 = vmatpush1.bf16.msra.mxu0 0
    %1039 = vmatprep.subr.bf16.mxu0 0
    %1040 = vmatpush1.bf16.msra.mxu0 0
    %1041 = vmatprep.subr.bf16.mxu0 0
    %1042 = vmatpush1.bf16.msra.mxu0 0
    %1043 = vmatprep.subr.bf16.mxu0 0
    %1044 = vmatpush1.bf16.msra.mxu0 0
    %1045 = vmatprep.subr.bf16.mxu0 0
    %1046 = vmatpush1.bf16.msra.mxu0 0
    %1047 = vmatprep.subr.bf16.mxu0 0
    %1048 = vmatpush1.bf16.msra.mxu0 0
    %1049 = vmatprep.subr.bf16.mxu0 0
    %1050 = vmatpush1.bf16.msra.mxu0 0
    %1051 = vmatprep.subr.bf16.mxu0 0
    %1052 = vmatpush1.bf16.msra.mxu0 0
    %1053 = vmatprep.subr.bf16.mxu0 0
    %1054 = vmatpush1.bf16.msra.mxu0 0
    %1055 = vmatprep.subr.bf16.mxu0 0
    %1056 = vmatpush1.bf16.msra.mxu0 0
    %1057 = vmatprep.subr.bf16.mxu0 0
    %1058 = vmatpush1.bf16.msra.mxu0 0
    %1059 = vmatprep.mubr.bf16.mxu0 0
    %1060 = vmatmul.mubr.bf16.gmra.mrb[0].mxu0 %v984
    %v1061 = vpop.f32.mrb[0].mxu0
    %v1062 = vadd.f32 %v947, %v1061
    %v1063 = vpop.f32.mrb[0].mxu0
    %v1064 = vpop.f32.mrb[0].mxu0
    %v1065 = vpop.f32.mrb[0].mxu0
    %1066 = vdwg.mxu0
    %v1067 = vpack.c.bf16 %v1021, %v1021
    %v1068 = vpack.c.bf16 %v1023, %v1023
    %v1069 = vpack.c.bf16 %v1062, %v1062
    %v1070 = vld [vmem:[#allocation2] sm:$0xff]
    %v1071 = vld [vmem:[#allocation2 + $0x8] sm:$0xff]
    %v1072 = vld [vmem:[#allocation2 + $0x10] sm:$0xff]
    %v1073 = vld [vmem:[#allocation2 + $0x18] sm:$0xff]
    %v1074 = vld [vmem:[#allocation2 + $0x20] sm:$0xff]
    %v1075 = vld [vmem:[#allocation2 + $0x28] sm:$0xff]
    %v1076 = vld [vmem:[#allocation2 + $0x30] sm:$0xff]
    %v1077 = vld [vmem:[#allocation2 + $0x38] sm:$0xff]
    %v1078 = vld [vmem:[#allocation2 + $0x40] sm:$0xff]
    %v1079 = vld [vmem:[#allocation2 + $0x48] sm:$0xff]
    %v1080 = vld [vmem:[#allocation2 + $0x50] sm:$0xff]
    %v1081 = vld [vmem:[#allocation2 + $0x58] sm:$0xff]
    %v1082 = vld [vmem:[#allocation2 + $0x60] sm:$0xff]
    %v1083 = vld [vmem:[#allocation2 + $0x68] sm:$0xff]
    %v1084 = vld [vmem:[#allocation2 + $0x70] sm:$0xff]
    %v1085 = vld [vmem:[#allocation2 + $0x78] sm:$0xff]
    %v1086 = vld [vmem:[#allocation2 + $0x80] sm:$0xff]
    %v1087 = vld [vmem:[#allocation2 + $0x88] sm:$0xff]
    %v1088 = vld [vmem:[#allocation2 + $0x90] sm:$0xff]
    %v1089 = vld [vmem:[#allocation2 + $0x98] sm:$0xff]
    %v1090 = vld [vmem:[#allocation2 + $0xa0] sm:$0xff]
    %v1091 = vld [vmem:[#allocation2 + $0xa8] sm:$0xff]
    %v1092 = vld [vmem:[#allocation2 + $0xb0] sm:$0xff]
    %v1093 = vld [vmem:[#allocation2 + $0xb8] sm:$0xff]
    %v1094 = vld [vmem:[#allocation2 + $0xc0] sm:$0xff]
    %v1095 = vld [vmem:[#allocation2 + $0xc8] sm:$0xff]
    %v1096 = vld [vmem:[#allocation2 + $0xd0] sm:$0xff]
    %v1097 = vld [vmem:[#allocation2 + $0xd8] sm:$0xff]
    %v1098 = vld [vmem:[#allocation2 + $0xe0] sm:$0xff]
    %v1099 = vld [vmem:[#allocation2 + $0xe8] sm:$0xff]
    %v1100 = vld [vmem:[#allocation2 + $0xf0] sm:$0xff]
    %v1101 = vld [vmem:[#allocation2 + $0xf8] sm:$0xff]
    %v1102 = vld [vmem:[#allocation2 + $0x100] sm:$0xff]
    %v1103 = vld [vmem:[#allocation2 + $0x108] sm:$0xff]
    %v1104 = vld [vmem:[#allocation2 + $0x110] sm:$0xff]
    %v1105 = vld [vmem:[#allocation2 + $0x118] sm:$0xff]
    %v1106 = vld [vmem:[#allocation2 + $0x120] sm:$0xff]
    %v1107 = vld [vmem:[#allocation2 + $0x128] sm:$0xff]
    %v1108 = vld [vmem:[#allocation2 + $0x130] sm:$0xff]
    %v1109 = vld [vmem:[#allocation2 + $0x138] sm:$0xff]
    %v1110 = vld [vmem:[#allocation2 + $0x140] sm:$0xff]
    %v1111 = vld [vmem:[#allocation2 + $0x148] sm:$0xff]
    %v1112 = vld [vmem:[#allocation2 + $0x150] sm:$0xff]
    %v1113 = vld [vmem:[#allocation2 + $0x158] sm:$0xff]
    %v1114 = vld [vmem:[#allocation2 + $0x160] sm:$0xff]
    %v1115 = vld [vmem:[#allocation2 + $0x168] sm:$0xff]
    %v1116 = vld [vmem:[#allocation2 + $0x170] sm:$0xff]
    %v1117 = vld [vmem:[#allocation2 + $0x178] sm:$0xff]
    %v1118 = vld [vmem:[#allocation2 + $0x180] sm:$0xff]
    %v1119 = vld [vmem:[#allocation2 + $0x188] sm:$0xff]
    %v1120 = vld [vmem:[#allocation2 + $0x190] sm:$0xff]
    %v1121 = vld [vmem:[#allocation2 + $0x198] sm:$0xff]
    %v1122 = vld [vmem:[#allocation2 + $0x1a0] sm:$0xff]
    %v1123 = vld [vmem:[#allocation2 + $0x1a8] sm:$0xff]
    %v1124 = vld [vmem:[#allocation2 + $0x1b0] sm:$0xff]
    %v1125 = vld [vmem:[#allocation2 + $0x1b8] sm:$0xff]
    %v1126 = vld [vmem:[#allocation2 + $0x1c0] sm:$0xff]
    %v1127 = vld [vmem:[#allocation2 + $0x1c8] sm:$0xff]
    %v1128 = vld [vmem:[#allocation2 + $0x1d0] sm:$0xff]
    %v1129 = vld [vmem:[#allocation2 + $0x1d8] sm:$0xff]
    %v1130 = vld [vmem:[#allocation2 + $0x1e0] sm:$0xff]
    %v1131 = vld [vmem:[#allocation2 + $0x1e8] sm:$0xff]
    %v1132 = vld [vmem:[#allocation2 + $0x1f0] sm:$0xff]
    %v1133 = vld [vmem:[#allocation2 + $0x1f8] sm:$0xff]
    %v1134 = vld [vmem:[#allocation2 + $0x200] sm:$0xff]
    %v1135 = vld [vmem:[#allocation2 + $0x208] sm:$0xff]
    %v1136 = vld [vmem:[#allocation2 + $0x210] sm:$0xff]
    %v1137 = vld [vmem:[#allocation2 + $0x218] sm:$0xff]
    %v1138 = vld [vmem:[#allocation2 + $0x220] sm:$0xff]
    %v1139 = vld [vmem:[#allocation2 + $0x228] sm:$0xff]
    %v1140 = vld [vmem:[#allocation2 + $0x230] sm:$0xff]
    %v1141 = vld [vmem:[#allocation2 + $0x238] sm:$0xff]
    %v1142 = vld [vmem:[#allocation2 + $0x240] sm:$0xff]
    %v1143 = vld [vmem:[#allocation2 + $0x248] sm:$0xff]
    %v1144 = vld [vmem:[#allocation2 + $0x250] sm:$0xff]
    %v1145 = vld [vmem:[#allocation2 + $0x258] sm:$0xff]
    %v1146 = vld [vmem:[#allocation2 + $0x260] sm:$0xff]
    %v1147 = vld [vmem:[#allocation2 + $0x268] sm:$0xff]
    %v1148 = vld [vmem:[#allocation2 + $0x270] sm:$0xff]
    %v1149 = vld [vmem:[#allocation2 + $0x278] sm:$0xff]
    %v1150 = vld [vmem:[#allocation2 + $0x280] sm:$0xff]
    %v1151 = vld [vmem:[#allocation2 + $0x288] sm:$0xff]
    %v1152 = vld [vmem:[#allocation2 + $0x290] sm:$0xff]
    %v1153 = vld [vmem:[#allocation2 + $0x298] sm:$0xff]
    %v1154 = vld [vmem:[#allocation2 + $0x2a0] sm:$0xff]
    %v1155 = vld [vmem:[#allocation2 + $0x2a8] sm:$0xff]
    %v1156 = vld [vmem:[#allocation2 + $0x2b0] sm:$0xff]
    %v1157 = vld [vmem:[#allocation2 + $0x2b8] sm:$0xff]
    %v1158 = vld [vmem:[#allocation2 + $0x2c0] sm:$0xff]
    %v1159 = vld [vmem:[#allocation2 + $0x2c8] sm:$0xff]
    %v1160 = vld [vmem:[#allocation2 + $0x2d0] sm:$0xff]
    %v1161 = vld [vmem:[#allocation2 + $0x2d8] sm:$0xff]
    %v1162 = vld [vmem:[#allocation2 + $0x2e0] sm:$0xff]
    %v1163 = vld [vmem:[#allocation2 + $0x2e8] sm:$0xff]
    %v1164 = vld [vmem:[#allocation2 + $0x2f0] sm:$0xff]
    %v1165 = vld [vmem:[#allocation2 + $0x2f8] sm:$0xff]
    %v1166 = vunpack.c.l.s8.bf16 %v1070
    %v1167 = vunpack.c.l.s8.bf16 %v1071
    %v1168 = vunpack.c.l.s8.bf16 %v1072
    %v1169 = vunpack.c.l.s8.bf16 %v1073
    %v1170 = vunpack.c.l.s8.bf16 %v1074
    %v1171 = vunpack.c.l.s8.bf16 %v1075
    %v1172 = vunpack.c.l.s8.bf16 %v1076
    %v1173 = vunpack.c.l.s8.bf16 %v1077
    %v1174 = vunpack.c.h.s8.bf16 %v1070
    %v1175 = vunpack.c.h.s8.bf16 %v1071
    %v1176 = vunpack.c.h.s8.bf16 %v1072
    %v1177 = vunpack.c.h.s8.bf16 %v1073
    %v1178 = vunpack.c.h.s8.bf16 %v1074
    %v1179 = vunpack.c.h.s8.bf16 %v1075
    %v1180 = vunpack.c.h.s8.bf16 %v1076
    %v1181 = vunpack.c.h.s8.bf16 %v1077
    %v1182 = vunpack.c.l.s8.bf16 %v1078
    %v1183 = vunpack.c.l.s8.bf16 %v1079
    %v1184 = vunpack.c.l.s8.bf16 %v1080
    %v1185 = vunpack.c.l.s8.bf16 %v1081
    %v1186 = vunpack.c.l.s8.bf16 %v1082
    %v1187 = vunpack.c.l.s8.bf16 %v1083
    %v1188 = vunpack.c.l.s8.bf16 %v1084
    %v1189 = vunpack.c.l.s8.bf16 %v1085
    %v1190 = vunpack.c.h.s8.bf16 %v1078
    %v1191 = vunpack.c.h.s8.bf16 %v1079
    %v1192 = vunpack.c.h.s8.bf16 %v1080
    %v1193 = vunpack.c.h.s8.bf16 %v1081
    %v1194 = vunpack.c.h.s8.bf16 %v1082
    %v1195 = vunpack.c.h.s8.bf16 %v1083
    %v1196 = vunpack.c.h.s8.bf16 %v1084
    %v1197 = vunpack.c.h.s8.bf16 %v1085
    %v1198 = vunpack.c.l.s8.bf16 %v1086
    %v1199 = vunpack.c.l.s8.bf16 %v1087
    %v1200 = vunpack.c.l.s8.bf16 %v1088
    %v1201 = vunpack.c.l.s8.bf16 %v1089
    %v1202 = vunpack.c.l.s8.bf16 %v1090
    %v1203 = vunpack.c.l.s8.bf16 %v1091
    %v1204 = vunpack.c.l.s8.bf16 %v1092
    %v1205 = vunpack.c.l.s8.bf16 %v1093
    %v1206 = vunpack.c.h.s8.bf16 %v1086
    %v1207 = vunpack.c.h.s8.bf16 %v1087
    %v1208 = vunpack.c.h.s8.bf16 %v1088
    %v1209 = vunpack.c.h.s8.bf16 %v1089
    %v1210 = vunpack.c.h.s8.bf16 %v1090
    %v1211 = vunpack.c.h.s8.bf16 %v1091
    %v1212 = vunpack.c.h.s8.bf16 %v1092
    %v1213 = vunpack.c.h.s8.bf16 %v1093
    %v1214 = vunpack.c.l.s8.bf16 %v1094
    %v1215 = vunpack.c.l.s8.bf16 %v1095
    %v1216 = vunpack.c.l.s8.bf16 %v1096
    %v1217 = vunpack.c.l.s8.bf16 %v1097
    %v1218 = vunpack.c.l.s8.bf16 %v1098
    %v1219 = vunpack.c.l.s8.bf16 %v1099
    %v1220 = vunpack.c.l.s8.bf16 %v1100
    %v1221 = vunpack.c.l.s8.bf16 %v1101
    %v1222 = vunpack.c.h.s8.bf16 %v1094
    %v1223 = vunpack.c.h.s8.bf16 %v1095
    %v1224 = vunpack.c.h.s8.bf16 %v1096
    %v1225 = vunpack.c.h.s8.bf16 %v1097
    %v1226 = vunpack.c.h.s8.bf16 %v1098
    %v1227 = vunpack.c.h.s8.bf16 %v1099
    %v1228 = vunpack.c.h.s8.bf16 %v1100
    %v1229 = vunpack.c.h.s8.bf16 %v1101
    %v1230 = vunpack.c.l.s8.bf16 %v1102
    %v1231 = vunpack.c.l.s8.bf16 %v1103
    %v1232 = vunpack.c.l.s8.bf16 %v1104
    %v1233 = vunpack.c.l.s8.bf16 %v1105
    %v1234 = vunpack.c.l.s8.bf16 %v1106
    %v1235 = vunpack.c.l.s8.bf16 %v1107
    %v1236 = vunpack.c.l.s8.bf16 %v1108
    %v1237 = vunpack.c.l.s8.bf16 %v1109
    %v1238 = vunpack.c.h.s8.bf16 %v1102
    %v1239 = vunpack.c.h.s8.bf16 %v1103
    %v1240 = vunpack.c.h.s8.bf16 %v1104
    %v1241 = vunpack.c.h.s8.bf16 %v1105
    %v1242 = vunpack.c.h.s8.bf16 %v1106
    %v1243 = vunpack.c.h.s8.bf16 %v1107
    %v1244 = vunpack.c.h.s8.bf16 %v1108
    %v1245 = vunpack.c.h.s8.bf16 %v1109
    %v1246 = vunpack.c.l.s8.bf16 %v1110
    %v1247 = vunpack.c.l.s8.bf16 %v1111
    %v1248 = vunpack.c.l.s8.bf16 %v1112
    %v1249 = vunpack.c.l.s8.bf16 %v1113
    %v1250 = vunpack.c.l.s8.bf16 %v1114
    %v1251 = vunpack.c.l.s8.bf16 %v1115
    %v1252 = vunpack.c.l.s8.bf16 %v1116
    %v1253 = vunpack.c.l.s8.bf16 %v1117
    %v1254 = vunpack.c.h.s8.bf16 %v1110
    %v1255 = vunpack.c.h.s8.bf16 %v1111
    %v1256 = vunpack.c.h.s8.bf16 %v1112
    %v1257 = vunpack.c.h.s8.bf16 %v1113
    %v1258 = vunpack.c.h.s8.bf16 %v1114
    %v1259 = vunpack.c.h.s8.bf16 %v1115
    %v1260 = vunpack.c.h.s8.bf16 %v1116
    %v1261 = vunpack.c.h.s8.bf16 %v1117
    %v1262 = vunpack.c.l.s8.bf16 %v1118
    %v1263 = vunpack.c.l.s8.bf16 %v1119
    %v1264 = vunpack.c.l.s8.bf16 %v1120
    %v1265 = vunpack.c.l.s8.bf16 %v1121
    %v1266 = vunpack.c.l.s8.bf16 %v1122
    %v1267 = vunpack.c.l.s8.bf16 %v1123
    %v1268 = vunpack.c.l.s8.bf16 %v1124
    %v1269 = vunpack.c.l.s8.bf16 %v1125
    %v1270 = vunpack.c.h.s8.bf16 %v1118
    %v1271 = vunpack.c.h.s8.bf16 %v1119
    %v1272 = vunpack.c.h.s8.bf16 %v1120
    %v1273 = vunpack.c.h.s8.bf16 %v1121
    %v1274 = vunpack.c.h.s8.bf16 %v1122
    %v1275 = vunpack.c.h.s8.bf16 %v1123
    %v1276 = vunpack.c.h.s8.bf16 %v1124
    %v1277 = vunpack.c.h.s8.bf16 %v1125
    %v1278 = vunpack.c.l.s8.bf16 %v1126
    %v1279 = vunpack.c.l.s8.bf16 %v1127
    %v1280 = vunpack.c.l.s8.bf16 %v1128
    %v1281 = vunpack.c.l.s8.bf16 %v1129
    %v1282 = vunpack.c.l.s8.bf16 %v1130
    %v1283 = vunpack.c.l.s8.bf16 %v1131
    %v1284 = vunpack.c.l.s8.bf16 %v1132
    %v1285 = vunpack.c.l.s8.bf16 %v1133
    %v1286 = vunpack.c.h.s8.bf16 %v1126
    %v1287 = vunpack.c.h.s8.bf16 %v1127
    %v1288 = vunpack.c.h.s8.bf16 %v1128
    %v1289 = vunpack.c.h.s8.bf16 %v1129
    %v1290 = vunpack.c.h.s8.bf16 %v1130
    %v1291 = vunpack.c.h.s8.bf16 %v1131
    %v1292 = vunpack.c.h.s8.bf16 %v1132
    %v1293 = vunpack.c.h.s8.bf16 %v1133
    %v1294 = vunpack.c.l.s8.bf16 %v1134
    %v1295 = vunpack.c.l.s8.bf16 %v1135
    %v1296 = vunpack.c.l.s8.bf16 %v1136
    %v1297 = vunpack.c.l.s8.bf16 %v1137
    %v1298 = vunpack.c.l.s8.bf16 %v1138
    %v1299 = vunpack.c.l.s8.bf16 %v1139
    %v1300 = vunpack.c.l.s8.bf16 %v1140
    %v1301 = vunpack.c.l.s8.bf16 %v1141
    %v1302 = vunpack.c.h.s8.bf16 %v1134
    %v1303 = vunpack.c.h.s8.bf16 %v1135
    %v1304 = vunpack.c.h.s8.bf16 %v1136
    %v1305 = vunpack.c.h.s8.bf16 %v1137
    %v1306 = vunpack.c.h.s8.bf16 %v1138
    %v1307 = vunpack.c.h.s8.bf16 %v1139
    %v1308 = vunpack.c.h.s8.bf16 %v1140
    %v1309 = vunpack.c.h.s8.bf16 %v1141
    %v1310 = vunpack.c.l.s8.bf16 %v1142
    %v1311 = vunpack.c.l.s8.bf16 %v1143
    %v1312 = vunpack.c.l.s8.bf16 %v1144
    %v1313 = vunpack.c.l.s8.bf16 %v1145
    %v1314 = vunpack.c.l.s8.bf16 %v1146
    %v1315 = vunpack.c.l.s8.bf16 %v1147
    %v1316 = vunpack.c.l.s8.bf16 %v1148
    %v1317 = vunpack.c.l.s8.bf16 %v1149
    %v1318 = vunpack.c.h.s8.bf16 %v1142
    %v1319 = vunpack.c.h.s8.bf16 %v1143
    %v1320 = vunpack.c.h.s8.bf16 %v1144
    %v1321 = vunpack.c.h.s8.bf16 %v1145
    %v1322 = vunpack.c.h.s8.bf16 %v1146
    %v1323 = vunpack.c.h.s8.bf16 %v1147
    %v1324 = vunpack.c.h.s8.bf16 %v1148
    %v1325 = vunpack.c.h.s8.bf16 %v1149
    %v1326 = vunpack.c.l.s8.bf16 %v1150
    %v1327 = vunpack.c.l.s8.bf16 %v1151
    %v1328 = vunpack.c.l.s8.bf16 %v1152
    %v1329 = vunpack.c.l.s8.bf16 %v1153
    %v1330 = vunpack.c.l.s8.bf16 %v1154
    %v1331 = vunpack.c.l.s8.bf16 %v1155
    %v1332 = vunpack.c.l.s8.bf16 %v1156
    %v1333 = vunpack.c.l.s8.bf16 %v1157
    %v1334 = vunpack.c.h.s8.bf16 %v1150
    %v1335 = vunpack.c.h.s8.bf16 %v1151
    %v1336 = vunpack.c.h.s8.bf16 %v1152
    %v1337 = vunpack.c.h.s8.bf16 %v1153
    %v1338 = vunpack.c.h.s8.bf16 %v1154
    %v1339 = vunpack.c.h.s8.bf16 %v1155
    %v1340 = vunpack.c.h.s8.bf16 %v1156
    %v1341 = vunpack.c.h.s8.bf16 %v1157
    %v1342 = vunpack.c.l.s8.bf16 %v1158
    %v1343 = vunpack.c.l.s8.bf16 %v1159
    %v1344 = vunpack.c.l.s8.bf16 %v1160
    %v1345 = vunpack.c.l.s8.bf16 %v1161
    %v1346 = vunpack.c.l.s8.bf16 %v1162
    %v1347 = vunpack.c.l.s8.bf16 %v1163
    %v1348 = vunpack.c.l.s8.bf16 %v1164
    %v1349 = vunpack.c.l.s8.bf16 %v1165
    %v1350 = vunpack.c.h.s8.bf16 %v1158
    %v1351 = vunpack.c.h.s8.bf16 %v1159
    %v1352 = vunpack.c.h.s8.bf16 %v1160
    %v1353 = vunpack.c.h.s8.bf16 %v1161
    %v1354 = vunpack.c.h.s8.bf16 %v1162
    %v1355 = vunpack.c.h.s8.bf16 %v1163
    %v1356 = vunpack.c.h.s8.bf16 %v1164
    %v1357 = vunpack.c.h.s8.bf16 %v1165
    %1358 = vmatprep.subr.bf16.mxu0 %v1167
    %1359 = vmatpush1.bf16.msra.mxu0 %v1166
    %1360 = vmatprep.subr.bf16.mxu0 %v1175
    %1361 = vmatpush1.bf16.msra.mxu0 %v1174
    %1362 = vmatprep.subr.bf16.mxu0 %v1183
    %1363 = vmatpush1.bf16.msra.mxu0 %v1182
    %1364 = vmatprep.subr.bf16.mxu0 %v1191
    %1365 = vmatpush1.bf16.msra.mxu0 %v1190
    %1366 = vmatprep.subr.bf16.mxu0 %v1199
    %1367 = vmatpush1.bf16.msra.mxu0 %v1198
    %1368 = vmatprep.subr.bf16.mxu0 %v1207
    %1369 = vmatpush1.bf16.msra.mxu0 %v1206
    %1370 = vmatprep.subr.bf16.mxu0 %v1215
    %1371 = vmatpush1.bf16.msra.mxu0 %v1214
    %1372 = vmatprep.subr.bf16.mxu0 %v1223
    %1373 = vmatpush1.bf16.msra.mxu0 %v1222
    %1374 = vmatprep.subr.bf16.mxu0 %v1231
    %1375 = vmatpush1.bf16.msra.mxu0 %v1230
    %1376 = vmatprep.subr.bf16.mxu0 %v1239
    %1377 = vmatpush1.bf16.msra.mxu0 %v1238
    %1378 = vmatprep.subr.bf16.mxu0 %v1247
    %1379 = vmatpush1.bf16.msra.mxu0 %v1246
    %1380 = vmatprep.subr.bf16.mxu0 %v1255
    %1381 = vmatpush1.bf16.msra.mxu0 %v1254
    %1382 = vmatprep.subr.bf16.mxu0 %v1263
    %1383 = vmatpush1.bf16.msra.mxu0 %v1262
    %1384 = vmatprep.subr.bf16.mxu0 %v1271
    %1385 = vmatpush1.bf16.msra.mxu0 %v1270
    %1386 = vmatprep.subr.bf16.mxu0 %v1279
    %1387 = vmatpush1.bf16.msra.mxu0 %v1278
    %1388 = vmatprep.subr.bf16.mxu0 %v1287
    %1389 = vmatpush1.bf16.msra.mxu0 %v1286
    %1390 = vmatprep.mubr.bf16.mxu0 %v1068
    %1391 = vmatmul.mubr.bf16.gmra.mrb[0].mxu0 %v1067
    %v1392 = vpop.f32.mrb[0].mxu0
    %v1393 = vadd.f32 0.0, %v1392
    %v1394 = vpop.f32.mrb[0].mxu0
    %v1395 = vadd.f32 0.0, %v1394
    %v1396 = vpop.f32.mrb[0].mxu0
    %v1397 = vpop.f32.mrb[0].mxu0
    %1398 = vdwg.mxu0
    %1399 = vmatprep.subr.bf16.mxu0 %v1295
    %1400 = vmatpush1.bf16.msra.mxu0 %v1294
    %1401 = vmatprep.subr.bf16.mxu0 %v1303
    %1402 = vmatpush1.bf16.msra.mxu0 %v1302
    %1403 = vmatprep.subr.bf16.mxu0 %v1311
    %1404 = vmatpush1.bf16.msra.mxu0 %v1310
    %1405 = vmatprep.subr.bf16.mxu0 %v1319
    %1406 = vmatpush1.bf16.msra.mxu0 %v1318
    %1407 = vmatprep.subr.bf16.mxu0 %v1327
    %1408 = vmatpush1.bf16.msra.mxu0 %v1326
    %1409 = vmatprep.subr.bf16.mxu0 %v1335
    %1410 = vmatpush1.bf16.msra.mxu0 %v1334
    %1411 = vmatprep.subr.bf16.mxu0 %v1343
    %1412 = vmatpush1.bf16.msra.mxu0 %v1342
    %1413 = vmatprep.subr.bf16.mxu0 %v1351
    %1414 = vmatpush1.bf16.msra.mxu0 %v1350
    %1415 = vmatprep.subr.bf16.mxu0 0
    %1416 = vmatpush1.bf16.msra.mxu0 0
    %1417 = vmatprep.subr.bf16.mxu0 0
    %1418 = vmatpush1.bf16.msra.mxu0 0
    %1419 = vmatprep.subr.bf16.mxu0 0
    %1420 = vmatpush1.bf16.msra.mxu0 0
    %1421 = vmatprep.subr.bf16.mxu0 0
    %1422 = vmatpush1.bf16.msra.mxu0 0
    %1423 = vmatprep.subr.bf16.mxu0 0
    %1424 = vmatpush1.bf16.msra.mxu0 0
    %1425 = vmatprep.subr.bf16.mxu0 0
    %1426 = vmatpush1.bf16.msra.mxu0 0
    %1427 = vmatprep.subr.bf16.mxu0 0
    %1428 = vmatpush1.bf16.msra.mxu0 0
    %1429 = vmatprep.subr.bf16.mxu0 0
    %1430 = vmatpush1.bf16.msra.mxu0 0
    %1431 = vmatprep.mubr.bf16.mxu0 0
    %1432 = vmatmul.mubr.bf16.gmra.mrb[0].mxu0 %v1069
    %v1433 = vpop.f32.mrb[0].mxu0
    %v1434 = vadd.f32 %v1393, %v1433
    %v1435 = vpop.f32.mrb[0].mxu0
    %v1436 = vadd.f32 %v1395, %v1435
    %v1437 = vpop.f32.mrb[0].mxu0
    %v1438 = vpop.f32.mrb[0].mxu0
    %1439 = vdwg.mxu0
    %1440 = vmatprep.subr.bf16.mxu0 %v1169
    %1441 = vmatpush1.bf16.msra.mxu0 %v1168
    %1442 = vmatprep.subr.bf16.mxu0 %v1177
    %1443 = vmatpush1.bf16.msra.mxu0 %v1176
    %1444 = vmatprep.subr.bf16.mxu0 %v1185
    %1445 = vmatpush1.bf16.msra.mxu0 %v1184
    %1446 = vmatprep.subr.bf16.mxu0 %v1193
    %1447 = vmatpush1.bf16.msra.mxu0 %v1192
    %1448 = vmatprep.subr.bf16.mxu0 %v1201
    %1449 = vmatpush1.bf16.msra.mxu0 %v1200
    %1450 = vmatprep.subr.bf16.mxu0 %v1209
    %1451 = vmatpush1.bf16.msra.mxu0 %v1208
    %1452 = vmatprep.subr.bf16.mxu0 %v1217
    %1453 = vmatpush1.bf16.msra.mxu0 %v1216
    %1454 = vmatprep.subr.bf16.mxu0 %v1225
    %1455 = vmatpush1.bf16.msra.mxu0 %v1224
    %1456 = vmatprep.subr.bf16.mxu0 %v1233
    %1457 = vmatpush1.bf16.msra.mxu0 %v1232
    %1458 = vmatprep.subr.bf16.mxu0 %v1241
    %1459 = vmatpush1.bf16.msra.mxu0 %v1240
    %1460 = vmatprep.subr.bf16.mxu0 %v1249
    %1461 = vmatpush1.bf16.msra.mxu0 %v1248
    %1462 = vmatprep.subr.bf16.mxu0 %v1257
    %1463 = vmatpush1.bf16.msra.mxu0 %v1256
    %1464 = vmatprep.subr.bf16.mxu0 %v1265
    %1465 = vmatpush1.bf16.msra.mxu0 %v1264
    %1466 = vmatprep.subr.bf16.mxu0 %v1273
    %1467 = vmatpush1.bf16.msra.mxu0 %v1272
    %1468 = vmatprep.subr.bf16.mxu0 %v1281
    %1469 = vmatpush1.bf16.msra.mxu0 %v1280
    %1470 = vmatprep.subr.bf16.mxu0 %v1289
    %1471 = vmatpush1.bf16.msra.mxu0 %v1288
    %1472 = vmatprep.mubr.bf16.mxu0 %v1068
    %1473 = vmatmul.mubr.bf16.gmra.mrb[0].mxu0 %v1067
    %v1474 = vpop.f32.mrb[0].mxu0
    %v1475 = vadd.f32 0.0, %v1474
    %v1476 = vpop.f32.mrb[0].mxu0
    %v1477 = vadd.f32 0.0, %v1476
    %v1478 = vpop.f32.mrb[0].mxu0
    %v1479 = vpop.f32.mrb[0].mxu0
    %1480 = vdwg.mxu0
    %1481 = vmatprep.subr.bf16.mxu0 %v1297
    %1482 = vmatpush1.bf16.msra.mxu0 %v1296
    %1483 = vmatprep.subr.bf16.mxu0 %v1305
    %1484 = vmatpush1.bf16.msra.mxu0 %v1304
    %1485 = vmatprep.subr.bf16.mxu0 %v1313
    %1486 = vmatpush1.bf16.msra.mxu0 %v1312
    %1487 = vmatprep.subr.bf16.mxu0 %v1321
    %1488 = vmatpush1.bf16.msra.mxu0 %v1320
    %1489 = vmatprep.subr.bf16.mxu0 %v1329
    %1490 = vmatpush1.bf16.msra.mxu0 %v1328
    %1491 = vmatprep.subr.bf16.mxu0 %v1337
    %1492 = vmatpush1.bf16.msra.mxu0 %v1336
    %1493 = vmatprep.subr.bf16.mxu0 %v1345
    %1494 = vmatpush1.bf16.msra.mxu0 %v1344
    %1495 = vmatprep.subr.bf16.mxu0 %v1353
    %1496 = vmatpush1.bf16.msra.mxu0 %v1352
    %1497 = vmatprep.subr.bf16.mxu0 0
    %1498 = vmatpush1.bf16.msra.mxu0 0
    %1499 = vmatprep.subr.bf16.mxu0 0
    %1500 = vmatpush1.bf16.msra.mxu0 0
    %1501 = vmatprep.subr.bf16.mxu0 0
    %1502 = vmatpush1.bf16.msra.mxu0 0
    %1503 = vmatprep.subr.bf16.mxu0 0
    %1504 = vmatpush1.bf16.msra.mxu0 0
    %1505 = vmatprep.subr.bf16.mxu0 0
    %1506 = vmatpush1.bf16.msra.mxu0 0
    %1507 = vmatprep.subr.bf16.mxu0 0
    %1508 = vmatpush1.bf16.msra.mxu0 0
    %1509 = vmatprep.subr.bf16.mxu0 0
    %1510 = vmatpush1.bf16.msra.mxu0 0
    %1511 = vmatprep.subr.bf16.mxu0 0
    %1512 = vmatpush1.bf16.msra.mxu0 0
    %1513 = vmatprep.mubr.bf16.mxu0 0
    %1514 = vmatmul.mubr.bf16.gmra.mrb[0].mxu0 %v1069
    %v1515 = vpop.f32.mrb[0].mxu0
    %v1516 = vadd.f32 %v1475, %v1515
    %v1517 = vpop.f32.mrb[0].mxu0
    %v1518 = vadd.f32 %v1477, %v1517
    %v1519 = vpop.f32.mrb[0].mxu0
    %v1520 = vpop.f32.mrb[0].mxu0
    %1521 = vdwg.mxu0
    %1522 = vmatprep.subr.bf16.mxu0 %v1171
    %1523 = vmatpush1.bf16.msra.mxu0 %v1170
    %1524 = vmatprep.subr.bf16.mxu0 %v1179
    %1525 = vmatpush1.bf16.msra.mxu0 %v1178
    %1526 = vmatprep.subr.bf16.mxu0 %v1187
    %1527 = vmatpush1.bf16.msra.mxu0 %v1186
    %1528 = vmatprep.subr.bf16.mxu0 %v1195
    %1529 = vmatpush1.bf16.msra.mxu0 %v1194
    %1530 = vmatprep.subr.bf16.mxu0 %v1203
    %1531 = vmatpush1.bf16.msra.mxu0 %v1202
    %1532 = vmatprep.subr.bf16.mxu0 %v1211
    %1533 = vmatpush1.bf16.msra.mxu0 %v1210
    %1534 = vmatprep.subr.bf16.mxu0 %v1219
    %1535 = vmatpush1.bf16.msra.mxu0 %v1218
    %1536 = vmatprep.subr.bf16.mxu0 %v1227
    %1537 = vmatpush1.bf16.msra.mxu0 %v1226
    %1538 = vmatprep.subr.bf16.mxu0 %v1235
    %1539 = vmatpush1.bf16.msra.mxu0 %v1234
    %1540 = vmatprep.subr.bf16.mxu0 %v1243
    %1541 = vmatpush1.bf16.msra.mxu0 %v1242
    %1542 = vmatprep.subr.bf16.mxu0 %v1251
    %1543 = vmatpush1.bf16.msra.mxu0 %v1250
    %1544 = vmatprep.subr.bf16.mxu0 %v1259
    %1545 = vmatpush1.bf16.msra.mxu0 %v1258
    %1546 = vmatprep.subr.bf16.mxu0 %v1267
    %1547 = vmatpush1.bf16.msra.mxu0 %v1266
    %1548 = vmatprep.subr.bf16.mxu0 %v1275
    %1549 = vmatpush1.bf16.msra.mxu0 %v1274
    %1550 = vmatprep.subr.bf16.mxu0 %v1283
    %1551 = vmatpush1.bf16.msra.mxu0 %v1282
    %1552 = vmatprep.subr.bf16.mxu0 %v1291
    %1553 = vmatpush1.bf16.msra.mxu0 %v1290
    %1554 = vmatprep.mubr.bf16.mxu0 %v1068
    %1555 = vmatmul.mubr.bf16.gmra.mrb[0].mxu0 %v1067
    %v1556 = vpop.f32.mrb[0].mxu0
    %v1557 = vadd.f32 0.0, %v1556
    %v1558 = vpop.f32.mrb[0].mxu0
    %v1559 = vadd.f32 0.0, %v1558
    %v1560 = vpop.f32.mrb[0].mxu0
    %v1561 = vpop.f32.mrb[0].mxu0
    %1562 = vdwg.mxu0
    %1563 = vmatprep.subr.bf16.mxu0 %v1299
    %1564 = vmatpush1.bf16.msra.mxu0 %v1298
    %1565 = vmatprep.subr.bf16.mxu0 %v1307
    %1566 = vmatpush1.bf16.msra.mxu0 %v1306
    %1567 = vmatprep.subr.bf16.mxu0 %v1315
    %1568 = vmatpush1.bf16.msra.mxu0 %v1314
    %1569 = vmatprep.subr.bf16.mxu0 %v1323
    %1570 = vmatpush1.bf16.msra.mxu0 %v1322
    %1571 = vmatprep.subr.bf16.mxu0 %v1331
    %1572 = vmatpush1.bf16.msra.mxu0 %v1330
    %1573 = vmatprep.subr.bf16.mxu0 %v1339
    %1574 = vmatpush1.bf16.msra.mxu0 %v1338
    %1575 = vmatprep.subr.bf16.mxu0 %v1347
    %1576 = vmatpush1.bf16.msra.mxu0 %v1346
    %1577 = vmatprep.subr.bf16.mxu0 %v1355
    %1578 = vmatpush1.bf16.msra.mxu0 %v1354
    %1579 = vmatprep.subr.bf16.mxu0 0
    %1580 = vmatpush1.bf16.msra.mxu0 0
    %1581 = vmatprep.subr.bf16.mxu0 0
    %1582 = vmatpush1.bf16.msra.mxu0 0
    %1583 = vmatprep.subr.bf16.mxu0 0
    %1584 = vmatpush1.bf16.msra.mxu0 0
    %1585 = vmatprep.subr.bf16.mxu0 0
    %1586 = vmatpush1.bf16.msra.mxu0 0
    %1587 = vmatprep.subr.bf16.mxu0 0
    %1588 = vmatpush1.bf16.msra.mxu0 0
    %1589 = vmatprep.subr.bf16.mxu0 0
    %1590 = vmatpush1.bf16.msra.mxu0 0
    %1591 = vmatprep.subr.bf16.mxu0 0
    %1592 = vmatpush1.bf16.msra.mxu0 0
    %1593 = vmatprep.subr.bf16.mxu0 0
    %1594 = vmatpush1.bf16.msra.mxu0 0
    %1595 = vmatprep.mubr.bf16.mxu0 0
    %1596 = vmatmul.mubr.bf16.gmra.mrb[0].mxu0 %v1069
    %v1597 = vpop.f32.mrb[0].mxu0
    %v1598 = vadd.f32 %v1557, %v1597
    %v1599 = vpop.f32.mrb[0].mxu0
    %v1600 = vadd.f32 %v1559, %v1599
    %v1601 = vpop.f32.mrb[0].mxu0
    %v1602 = vpop.f32.mrb[0].mxu0
    %1603 = vdwg.mxu0
    %1604 = vmatprep.subr.bf16.mxu0 %v1173
    %1605 = vmatpush1.bf16.msra.mxu0 %v1172
    %1606 = vmatprep.subr.bf16.mxu0 %v1181
    %1607 = vmatpush1.bf16.msra.mxu0 %v1180
    %1608 = vmatprep.subr.bf16.mxu0 %v1189
    %1609 = vmatpush1.bf16.msra.mxu0 %v1188
    %1610 = vmatprep.subr.bf16.mxu0 %v1197
    %1611 = vmatpush1.bf16.msra.mxu0 %v1196
    %1612 = vmatprep.subr.bf16.mxu0 %v1205
    %1613 = vmatpush1.bf16.msra.mxu0 %v1204
    %1614 = vmatprep.subr.bf16.mxu0 %v1213
    %1615 = vmatpush1.bf16.msra.mxu0 %v1212
    %1616 = vmatprep.subr.bf16.mxu0 %v1221
    %1617 = vmatpush1.bf16.msra.mxu0 %v1220
    %1618 = vmatprep.subr.bf16.mxu0 %v1229
    %1619 = vmatpush1.bf16.msra.mxu0 %v1228
    %1620 = vmatprep.subr.bf16.mxu0 %v1237
    %1621 = vmatpush1.bf16.msra.mxu0 %v1236
    %1622 = vmatprep.subr.bf16.mxu0 %v1245
    %1623 = vmatpush1.bf16.msra.mxu0 %v1244
    %1624 = vmatprep.subr.bf16.mxu0 %v1253
    %1625 = vmatpush1.bf16.msra.mxu0 %v1252
    %1626 = vmatprep.subr.bf16.mxu0 %v1261
    %1627 = vmatpush1.bf16.msra.mxu0 %v1260
    %1628 = vmatprep.subr.bf16.mxu0 %v1269
    %1629 = vmatpush1.bf16.msra.mxu0 %v1268
    %1630 = vmatprep.subr.bf16.mxu0 %v1277
    %1631 = vmatpush1.bf16.msra.mxu0 %v1276
    %1632 = vmatprep.subr.bf16.mxu0 %v1285
    %1633 = vmatpush1.bf16.msra.mxu0 %v1284
    %1634 = vmatprep.subr.bf16.mxu0 %v1293
    %1635 = vmatpush1.bf16.msra.mxu0 %v1292
    %1636 = vmatprep.mubr.bf16.mxu0 %v1068
    %1637 = vmatmul.mubr.bf16.gmra.mrb[0].mxu0 %v1067
    %v1638 = vpop.f32.mrb[0].mxu0
    %v1639 = vadd.f32 0.0, %v1638
    %v1640 = vpop.f32.mrb[0].mxu0
    %v1641 = vadd.f32 0.0, %v1640
    %v1642 = vpop.f32.mrb[0].mxu0
    %v1643 = vpop.f32.mrb[0].mxu0
    %1644 = vdwg.mxu0
    %1645 = vmatprep.subr.bf16.mxu0 %v1301
    %1646 = vmatpush1.bf16.msra.mxu0 %v1300
    %1647 = vmatprep.subr.bf16.mxu0 %v1309
    %1648 = vmatpush1.bf16.msra.mxu0 %v1308
    %1649 = vmatprep.subr.bf16.mxu0 %v1317
    %1650 = vmatpush1.bf16.msra.mxu0 %v1316
    %1651 = vmatprep.subr.bf16.mxu0 %v1325
    %1652 = vmatpush1.bf16.msra.mxu0 %v1324
    %1653 = vmatprep.subr.bf16.mxu0 %v1333
    %1654 = vmatpush1.bf16.msra.mxu0 %v1332
    %1655 = vmatprep.subr.bf16.mxu0 %v1341
    %1656 = vmatpush1.bf16.msra.mxu0 %v1340
    %1657 = vmatprep.subr.bf16.mxu0 %v1349
    %1658 = vmatpush1.bf16.msra.mxu0 %v1348
    %1659 = vmatprep.subr.bf16.mxu0 %v1357
    %1660 = vmatpush1.bf16.msra.mxu0 %v1356
    %1661 = vmatprep.subr.bf16.mxu0 0
    %1662 = vmatpush1.bf16.msra.mxu0 0
    %1663 = vmatprep.subr.bf16.mxu0 0
    %1664 = vmatpush1.bf16.msra.mxu0 0
    %1665 = vmatprep.subr.bf16.mxu0 0
    %1666 = vmatpush1.bf16.msra.mxu0 0
    %1667 = vmatprep.subr.bf16.mxu0 0
    %1668 = vmatpush1.bf16.msra.mxu0 0
    %1669 = vmatprep.subr.bf16.mxu0 0
    %1670 = vmatpush1.bf16.msra.mxu0 0
    %1671 = vmatprep.subr.bf16.mxu0 0
    %1672 = vmatpush1.bf16.msra.mxu0 0
    %1673 = vmatprep.subr.bf16.mxu0 0
    %1674 = vmatpush1.bf16.msra.mxu0 0
    %1675 = vmatprep.subr.bf16.mxu0 0
    %1676 = vmatpush1.bf16.msra.mxu0 0
    %1677 = vmatprep.mubr.bf16.mxu0 0
    %1678 = vmatmul.mubr.bf16.gmra.mrb[0].mxu0 %v1069
    %v1679 = vpop.f32.mrb[0].mxu0
    %v1680 = vadd.f32 %v1639, %v1679
    %v1681 = vpop.f32.mrb[0].mxu0
    %v1682 = vadd.f32 %v1641, %v1681
    %v1683 = vpop.f32.mrb[0].mxu0
    %v1684 = vpop.f32.mrb[0].mxu0
    %1685 = vdwg.mxu0
    %v1686 = vld [vmem:[%s7] sm:$0xff]
    %v1688 = vlaneseq
    %v1689 = vshrl.u32 %v1688, 7
    %v1690 = vsub.s32 0, %v1689
    %v1691 = vrot.slane %v1686, %v1690
    %v1692 = vlaneseq
    %v1693 = vshrl.u32 %v1692, 7
    %v1694 = vsub.s32 1, %v1693
    %v1695 = vrot.slane %v1686, %v1694
    %v1696 = vlaneseq
    %v1697 = vshrl.u32 %v1696, 7
    %v1698 = vsub.s32 2, %v1697
    %v1699 = vrot.slane %v1686, %v1698
    %v1700 = vlaneseq
    %v1701 = vshrl.u32 %v1700, 7
    %v1702 = vsub.s32 3, %v1701
    %v1703 = vrot.slane %v1686, %v1702
    %v1704 = vlaneseq
    %v1705 = vshrl.u32 %v1704, 7
    %v1706 = vsub.s32 4, %v1705
    %v1707 = vrot.slane %v1686, %v1706
    %v1708 = vlaneseq
    %v1709 = vshrl.u32 %v1708, 7
    %v1710 = vsub.s32 5, %v1709
    %v1711 = vrot.slane %v1686, %v1710
    %v1712 = vlaneseq
    %v1713 = vshrl.u32 %v1712, 7
    %v1714 = vsub.s32 6, %v1713
    %v1715 = vrot.slane %v1686, %v1714
    %v1716 = vlaneseq
    %v1717 = vshrl.u32 %v1716, 7
    %v1718 = vsub.s32 7, %v1717
    %v1719 = vrot.slane %v1686, %v1718
    %v1728 = vmul.f32 %v1434, %v1691
    %v1729 = vmul.f32 %v1436, %v1695
    %v1730 = vmul.f32 %v1516, %v1699
    %v1731 = vmul.f32 %v1518, %v1703
    %v1732 = vmul.f32 %v1598, %v1707
    %v1733 = vmul.f32 %v1600, %v1711
    %v1734 = vmul.f32 %v1680, %v1715
    %v1735 = vmul.f32 %v1682, %v1719
    %v1736 = vld [vmem:[%s8] sm:$0xff]
    %v1738 = vlaneseq
    %v1739 = vshrl.u32 %v1738, 7
    %v1740 = vsub.s32 0, %v1739
    %v1741 = vrot.slane %v1736, %v1740
    %v1742 = vlaneseq
    %v1743 = vshrl.u32 %v1742, 7
    %v1744 = vsub.s32 1, %v1743
    %v1745 = vrot.slane %v1736, %v1744
    %v1746 = vlaneseq
    %v1747 = vshrl.u32 %v1746, 7
    %v1748 = vsub.s32 2, %v1747
    %v1749 = vrot.slane %v1736, %v1748
    %v1750 = vlaneseq
    %v1751 = vshrl.u32 %v1750, 7
    %v1752 = vsub.s32 3, %v1751
    %v1753 = vrot.slane %v1736, %v1752
    %v1754 = vlaneseq
    %v1755 = vshrl.u32 %v1754, 7
    %v1756 = vsub.s32 4, %v1755
    %v1757 = vrot.slane %v1736, %v1756
    %v1758 = vlaneseq
    %v1759 = vshrl.u32 %v1758, 7
    %v1760 = vsub.s32 5, %v1759
    %v1761 = vrot.slane %v1736, %v1760
    %v1762 = vlaneseq
    %v1763 = vshrl.u32 %v1762, 7
    %v1764 = vsub.s32 6, %v1763
    %v1765 = vrot.slane %v1736, %v1764
    %v1766 = vlaneseq
    %v1767 = vshrl.u32 %v1766, 7
    %v1768 = vsub.s32 7, %v1767
    %v1769 = vrot.slane %v1736, %v1768
    %v1778 = vadd.f32 %v1728, %v1741
    %v1779 = vadd.f32 %v1729, %v1745
    %v1780 = vadd.f32 %v1730, %v1749
    %v1781 = vadd.f32 %v1731, %v1753
    %v1782 = vadd.f32 %v1732, %v1757
    %v1783 = vadd.f32 %v1733, %v1761
    %v1784 = vadd.f32 %v1734, %v1765
    %v1785 = vadd.f32 %v1735, %v1769
    %vm1786 = vcmask 1041408
    %v1787 = vsel %vm1786, %v1778, 0.0
    %v1788 = vrot.slane %v1787, 4
    %v1789 = vadd.f32 %v1787, %v1788
    %v1790 = vrot.slane %v1789, 2
    %v1791 = vadd.f32 %v1789, %v1790
    %v1792 = vrot.slane %v1791, 1
    %v1793 = vadd.f32 %v1791, %v1792
    %v1794 = vsel %vm1786, %v1779, 0.0
    %v1795 = vrot.slane %v1794, 4
    %v1796 = vadd.f32 %v1794, %v1795
    %v1797 = vrot.slane %v1796, 2
    %v1798 = vadd.f32 %v1796, %v1797
    %v1799 = vrot.slane %v1798, 1
    %v1800 = vadd.f32 %v1798, %v1799
    %v1801 = vsel %vm1786, %v1780, 0.0
    %v1802 = vrot.slane %v1801, 4
    %v1803 = vadd.f32 %v1801, %v1802
    %v1804 = vrot.slane %v1803, 2
    %v1805 = vadd.f32 %v1803, %v1804
    %v1806 = vrot.slane %v1805, 1
    %v1807 = vadd.f32 %v1805, %v1806
    %v1808 = vsel %vm1786, %v1781, 0.0
    %v1809 = vrot.slane %v1808, 4
    %v1810 = vadd.f32 %v1808, %v1809
    %v1811 = vrot.slane %v1810, 2
    %v1812 = vadd.f32 %v1810, %v1811
    %v1813 = vrot.slane %v1812, 1
    %v1814 = vadd.f32 %v1812, %v1813
    %v1815 = vsel %vm1786, %v1782, 0.0
    %v1816 = vrot.slane %v1815, 4
    %v1817 = vadd.f32 %v1815, %v1816
    %v1818 = vrot.slane %v1817, 2
    %v1819 = vadd.f32 %v1817, %v1818
    %v1820 = vrot.slane %v1819, 1
    %v1821 = vadd.f32 %v1819, %v1820
    %v1822 = vsel %vm1786, %v1783, 0.0
    %v1823 = vrot.slane %v1822, 4
    %v1824 = vadd.f32 %v1822, %v1823
    %v1825 = vrot.slane %v1824, 2
    %v1826 = vadd.f32 %v1824, %v1825
    %v1827 = vrot.slane %v1826, 1
    %v1828 = vadd.f32 %v1826, %v1827
    %v1829 = vsel %vm1786, %v1784, 0.0
    %v1830 = vrot.slane %v1829, 4
    %v1831 = vadd.f32 %v1829, %v1830
    %v1832 = vrot.slane %v1831, 2
    %v1833 = vadd.f32 %v1831, %v1832
    %v1834 = vrot.slane %v1833, 1
    %v1835 = vadd.f32 %v1833, %v1834
    %v1836 = vsel %vm1786, %v1785, 0.0
    %v1837 = vrot.slane %v1836, 4
    %v1838 = vadd.f32 %v1836, %v1837
    %v1839 = vrot.slane %v1838, 2
    %v1840 = vadd.f32 %v1838, %v1839
    %v1841 = vrot.slane %v1840, 1
    %v1842 = vadd.f32 %v1840, %v1841
    %v1843 = vrcp.pop 2.0
    %v1844 = vmul.f32 %v1793, %v1843
    %v1845 = vmul.f32 %v1800, %v1843
    %v1846 = vmul.f32 %v1807, %v1843
    %v1847 = vmul.f32 %v1814, %v1843
    %v1848 = vmul.f32 %v1821, %v1843
    %v1849 = vmul.f32 %v1828, %v1843
    %v1850 = vmul.f32 %v1835, %v1843
    %v1851 = vmul.f32 %v1842, %v1843
    %v1852 = vsub.f32 %v1778, %v1844
    %v1853 = vsub.f32 %v1779, %v1845
    %v1854 = vsub.f32 %v1780, %v1846
    %v1855 = vsub.f32 %v1781, %v1847
    %v1856 = vsub.f32 %v1782, %v1848
    %v1857 = vsub.f32 %v1783, %v1849
    %v1858 = vsub.f32 %v1784, %v1850
    %v1859 = vsub.f32 %v1785, %v1851
    %v1860 = vmul.f32 %v1852, %v1852
    %v1861 = vmul.f32 %v1853, %v1853
    %v1862 = vmul.f32 %v1854, %v1854
    %v1863 = vmul.f32 %v1855, %v1855
    %v1864 = vmul.f32 %v1856, %v1856
    %v1865 = vmul.f32 %v1857, %v1857
    %v1866 = vmul.f32 %v1858, %v1858
    %v1867 = vmul.f32 %v1859, %v1859
    %v1868 = vsel %vm1786, %v1860, 0.0
    %v1869 = vrot.slane %v1868, 4
    %v1870 = vadd.f32 %v1868, %v1869
    %v1871 = vrot.slane %v1870, 2
    %v1872 = vadd.f32 %v1870, %v1871
    %v1873 = vrot.slane %v1872, 1
    %v1874 = vadd.f32 %v1872, %v1873
    %v1875 = vsel %vm1786, %v1861, 0.0
    %v1876 = vrot.slane %v1875, 4
    %v1877 = vadd.f32 %v1875, %v1876
    %v1878 = vrot.slane %v1877, 2
    %v1879 = vadd.f32 %v1877, %v1878
    %v1880 = vrot.slane %v1879, 1
    %v1881 = vadd.f32 %v1879, %v1880
    %v1882 = vsel %vm1786, %v1862, 0.0
    %v1883 = vrot.slane %v1882, 4
    %v1884 = vadd.f32 %v1882, %v1883
    %v1885 = vrot.slane %v1884, 2
    %v1886 = vadd.f32 %v1884, %v1885
    %v1887 = vrot.slane %v1886, 1
    %v1888 = vadd.f32 %v1886, %v1887
    %v1889 = vsel %vm1786, %v1863, 0.0
    %v1890 = vrot.slane %v1889, 4
    %v1891 = vadd.f32 %v1889, %v1890
    %v1892 = vrot.slane %v1891, 2
    %v1893 = vadd.f32 %v1891, %v1892
    %v1894 = vrot.slane %v1893, 1
    %v1895 = vadd.f32 %v1893, %v1894
    %v1896 = vsel %vm1786, %v1864, 0.0
    %v1897 = vrot.slane %v1896, 4
    %v1898 = vadd.f32 %v1896, %v1897
    %v1899 = vrot.slane %v1898, 2
    %v1900 = vadd.f32 %v1898, %v1899
    %v1901 = vrot.slane %v1900, 1
    %v1902 = vadd.f32 %v1900, %v1901
    %v1903 = vsel %vm1786, %v1865, 0.0
    %v1904 = vrot.slane %v1903, 4
    %v1905 = vadd.f32 %v1903, %v1904
    %v1906 = vrot.slane %v1905, 2
    %v1907 = vadd.f32 %v1905, %v1906
    %v1908 = vrot.slane %v1907, 1
    %v1909 = vadd.f32 %v1907, %v1908
    %v1910 = vsel %vm1786, %v1866, 0.0
    %v1911 = vrot.slane %v1910, 4
    %v1912 = vadd.f32 %v1910, %v1911
    %v1913 = vrot.slane %v1912, 2
    %v1914 = vadd.f32 %v1912, %v1913
    %v1915 = vrot.slane %v1914, 1
    %v1916 = vadd.f32 %v1914, %v1915
    %v1917 = vsel %vm1786, %v1867, 0.0
    %v1918 = vrot.slane %v1917, 4
    %v1919 = vadd.f32 %v1917, %v1918
    %v1920 = vrot.slane %v1919, 2
    %v1921 = vadd.f32 %v1919, %v1920
    %v1922 = vrot.slane %v1921, 1
    %v1923 = vadd.f32 %v1921, %v1922
    %v1924 = vmul.f32 %v1874, %v1843
    %v1925 = vmul.f32 %v1881, %v1843
    %v1926 = vmul.f32 %v1888, %v1843
    %v1927 = vmul.f32 %v1895, %v1843
    %v1928 = vmul.f32 %v1902, %v1843
    %v1929 = vmul.f32 %v1909, %v1843
    %v1930 = vmul.f32 %v1916, %v1843
    %v1931 = vmul.f32 %v1923, %v1843
    %v1932 = vadd.f32 %v1924, 0.001
    %v1933 = vadd.f32 %v1925, 0.001
    %v1934 = vadd.f32 %v1926, 0.001
    %v1935 = vadd.f32 %v1927, 0.001
    %v1936 = vadd.f32 %v1928, 0.001
    %v1937 = vadd.f32 %v1929, 0.001
    %v1938 = vadd.f32 %v1930, 0.001
    %v1939 = vadd.f32 %v1931, 0.001
    %v1940 = vrsqrt.pop %v1932
    %v1941 = vrsqrt.pop %v1933
    %v1942 = vrsqrt.pop %v1934
    %v1943 = vrsqrt.pop %v1935
    %v1944 = vrsqrt.pop %v1936
    %v1945 = vrsqrt.pop %v1937
    %v1946 = vrsqrt.pop %v1938
    %v1947 = vrsqrt.pop %v1939
    %v1948 = vmul.f32 %v1852, %v1940
    %v1949 = vmul.f32 %v1853, %v1941
    %v1950 = vmul.f32 %v1854, %v1942
    %v1951 = vmul.f32 %v1855, %v1943
    %v1952 = vmul.f32 %v1856, %v1944
    %v1953 = vmul.f32 %v1857, %v1945
    %v1954 = vmul.f32 %v1858, %v1946
    %v1955 = vmul.f32 %v1859, %v1947
    %v1956 = vld [vmem:[%s9] sm:$0xff]
    %v1958 = vlaneseq
    %v1959 = vshrl.u32 %v1958, 7
    %v1960 = vsub.s32 0, %v1959
    %v1961 = vrot.slane %v1956, %v1960
    %v1962 = vlaneseq
    %v1963 = vshrl.u32 %v1962, 7
    %v1964 = vsub.s32 1, %v1963
    %v1965 = vrot.slane %v1956, %v1964
    %v1966 = vlaneseq
    %v1967 = vshrl.u32 %v1966, 7
    %v1968 = vsub.s32 2, %v1967
    %v1969 = vrot.slane %v1956, %v1968
    %v1970 = vlaneseq
    %v1971 = vshrl.u32 %v1970, 7
    %v1972 = vsub.s32 3, %v1971
    %v1973 = vrot.slane %v1956, %v1972
    %v1974 = vlaneseq
    %v1975 = vshrl.u32 %v1974, 7
    %v1976 = vsub.s32 4, %v1975
    %v1977 = vrot.slane %v1956, %v1976
    %v1978 = vlaneseq
    %v1979 = vshrl.u32 %v1978, 7
    %v1980 = vsub.s32 5, %v1979
    %v1981 = vrot.slane %v1956, %v1980
    %v1982 = vlaneseq
    %v1983 = vshrl.u32 %v1982, 7
    %v1984 = vsub.s32 6, %v1983
    %v1985 = vrot.slane %v1956, %v1984
    %v1986 = vlaneseq
    %v1987 = vshrl.u32 %v1986, 7
    %v1988 = vsub.s32 7, %v1987
    %v1989 = vrot.slane %v1956, %v1988
    %v1998 = vmul.f32 %v1948, %v1961
    %v1999 = vmul.f32 %v1949, %v1965
    %v2000 = vmul.f32 %v1950, %v1969
    %v2001 = vmul.f32 %v1951, %v1973
    %v2002 = vmul.f32 %v1952, %v1977
    %v2003 = vmul.f32 %v1953, %v1981
    %v2004 = vmul.f32 %v1954, %v1985
    %v2005 = vmul.f32 %v1955, %v1989
    %v2006 = vld [vmem:[%s10] sm:$0xff]
    %v2008 = vlaneseq
    %v2009 = vshrl.u32 %v2008, 7
    %v2010 = vsub.s32 0, %v2009
    %v2011 = vrot.slane %v2006, %v2010
    %v2012 = vlaneseq
    %v2013 = vshrl.u32 %v2012, 7
    %v2014 = vsub.s32 1, %v2013
    %v2015 = vrot.slane %v2006, %v2014
    %v2016 = vlaneseq
    %v2017 = vshrl.u32 %v2016, 7
    %v2018 = vsub.s32 2, %v2017
    %v2019 = vrot.slane %v2006, %v2018
    %v2020 = vlaneseq
    %v2021 = vshrl.u32 %v2020, 7
    %v2022 = vsub.s32 3, %v2021
    %v2023 = vrot.slane %v2006, %v2022
    %v2024 = vlaneseq
    %v2025 = vshrl.u32 %v2024, 7
    %v2026 = vsub.s32 4, %v2025
    %v2027 = vrot.slane %v2006, %v2026
    %v2028 = vlaneseq
    %v2029 = vshrl.u32 %v2028, 7
    %v2030 = vsub.s32 5, %v2029
    %v2031 = vrot.slane %v2006, %v2030
    %v2032 = vlaneseq
    %v2033 = vshrl.u32 %v2032, 7
    %v2034 = vsub.s32 6, %v2033
    %v2035 = vrot.slane %v2006, %v2034
    %v2036 = vlaneseq
    %v2037 = vshrl.u32 %v2036, 7
    %v2038 = vsub.s32 7, %v2037
    %v2039 = vrot.slane %v2006, %v2038
    %v2048 = vadd.f32 %v1998, %v2011
    %v2049 = vadd.f32 %v1999, %v2015
    %v2050 = vadd.f32 %v2000, %v2019
    %v2051 = vadd.f32 %v2001, %v2023
    %v2052 = vadd.f32 %v2002, %v2027
    %v2053 = vadd.f32 %v2003, %v2031
    %v2054 = vadd.f32 %v2004, %v2035
    %v2055 = vadd.f32 %v2005, %v2039
    %v2056 = vmax.f32 %v2048, 0.0
    %v2057 = vmax.f32 %v2049, 0.0
    %v2058 = vmax.f32 %v2050, 0.0
    %v2059 = vmax.f32 %v2051, 0.0
    %v2060 = vmax.f32 %v2052, 0.0
    %v2061 = vmax.f32 %v2053, 0.0
    %v2062 = vmax.f32 %v2054, 0.0
    %v2063 = vmax.f32 %v2055, 0.0
    %v2064 = vpack.c.bf16 %v2056, %v2056
    %v2065 = vpack.c.bf16 %v2057, %v2057
    %v2066 = vpack.c.bf16 %v2058, %v2058
    %v2067 = vpack.c.bf16 %v2059, %v2059
    %v2068 = vpack.c.bf16 %v2060, %v2060
    %v2069 = vpack.c.bf16 %v2061, %v2061
    %v2070 = vpack.c.bf16 %v2062, %v2062
    %v2071 = vpack.c.bf16 %v2063, %v2063
    %v2072 = vld [vmem:[%s11] sm:$0xff]
    %v2073 = vld [vmem:[%s11 + $0x8] sm:$0xff]
    %v2074 = vld [vmem:[%s11 + $0x10] sm:$0xff]
    %v2075 = vld [vmem:[%s11 + $0x18] sm:$0xff]
    %v2076 = vld [vmem:[%s11 + $0x20] sm:$0xff]
    %v2077 = vld [vmem:[%s11 + $0x28] sm:$0xff]
    %v2078 = vld [vmem:[%s11 + $0x30] sm:$0xff]
    %v2079 = vld [vmem:[%s11 + $0x38] sm:$0xff]
    %v2080 = vld [vmem:[%s11 + $0x40] sm:$0xff]
    %v2081 = vld [vmem:[%s11 + $0x48] sm:$0xff]
    %v2082 = vld [vmem:[%s11 + $0x50] sm:$0xff]
    %v2083 = vld [vmem:[%s11 + $0x58] sm:$0xff]
    %v2084 = vld [vmem:[%s11 + $0x60] sm:$0xff]
    %v2085 = vld [vmem:[%s11 + $0x68] sm:$0xff]
    %v2086 = vld [vmem:[%s11 + $0x70] sm:$0xff]
    %v2087 = vld [vmem:[%s11 + $0x78] sm:$0xff]
    %v2088 = vld [vmem:[%s11 + $0x80] sm:$0xff]
    %v2089 = vld [vmem:[%s11 + $0x88] sm:$0xff]
    %v2090 = vld [vmem:[%s11 + $0x90] sm:$0xff]
    %v2091 = vld [vmem:[%s11 + $0x98] sm:$0xff]
    %v2092 = vld [vmem:[%s11 + $0xa0] sm:$0xff]
    %v2093 = vld [vmem:[%s11 + $0xa8] sm:$0xff]
    %v2094 = vld [vmem:[%s11 + $0xb0] sm:$0xff]
    %v2095 = vld [vmem:[%s11 + $0xb8] sm:$0xff]
    %v2096 = vld [vmem:[%s11 + $0xc0] sm:$0xff]
    %v2097 = vld [vmem:[%s11 + $0xc8] sm:$0xff]
    %v2098 = vld [vmem:[%s11 + $0xd0] sm:$0xff]
    %v2099 = vld [vmem:[%s11 + $0xd8] sm:$0xff]
    %v2100 = vld [vmem:[%s11 + $0xe0] sm:$0xff]
    %v2101 = vld [vmem:[%s11 + $0xe8] sm:$0xff]
    %v2102 = vld [vmem:[%s11 + $0xf0] sm:$0xff]
    %v2103 = vld [vmem:[%s11 + $0xf8] sm:$0xff]
    %v2104 = vld [vmem:[%s11 + $0x100] sm:$0xff]
    %v2105 = vld [vmem:[%s11 + $0x108] sm:$0xff]
    %v2106 = vld [vmem:[%s11 + $0x110] sm:$0xff]
    %v2107 = vld [vmem:[%s11 + $0x118] sm:$0xff]
    %v2108 = vld [vmem:[%s11 + $0x120] sm:$0xff]
    %v2109 = vld [vmem:[%s11 + $0x128] sm:$0xff]
    %v2110 = vld [vmem:[%s11 + $0x130] sm:$0xff]
    %v2111 = vld [vmem:[%s11 + $0x138] sm:$0xff]
    %v2112 = vld [vmem:[%s11 + $0x140] sm:$0xff]
    %v2113 = vld [vmem:[%s11 + $0x148] sm:$0xff]
    %v2114 = vld [vmem:[%s11 + $0x150] sm:$0xff]
    %v2115 = vld [vmem:[%s11 + $0x158] sm:$0xff]
    %v2116 = vld [vmem:[%s11 + $0x160] sm:$0xff]
    %v2117 = vld [vmem:[%s11 + $0x168] sm:$0xff]
    %v2118 = vld [vmem:[%s11 + $0x170] sm:$0xff]
    %v2119 = vld [vmem:[%s11 + $0x178] sm:$0xff]
    %v2120 = vld [vmem:[%s11 + $0x180] sm:$0xff]
    %v2121 = vld [vmem:[%s11 + $0x188] sm:$0xff]
    %v2122 = vld [vmem:[%s11 + $0x190] sm:$0xff]
    %v2123 = vld [vmem:[%s11 + $0x198] sm:$0xff]
    %v2124 = vld [vmem:[%s11 + $0x1a0] sm:$0xff]
    %v2125 = vld [vmem:[%s11 + $0x1a8] sm:$0xff]
    %v2126 = vld [vmem:[%s11 + $0x1b0] sm:$0xff]
    %v2127 = vld [vmem:[%s11 + $0x1b8] sm:$0xff]
    %v2128 = vld [vmem:[%s11 + $0x1c0] sm:$0xff]
    %v2129 = vld [vmem:[%s11 + $0x1c8] sm:$0xff]
    %v2130 = vld [vmem:[%s11 + $0x1d0] sm:$0xff]
    %v2131 = vld [vmem:[%s11 + $0x1d8] sm:$0xff]
    %v2132 = vld [vmem:[%s11 + $0x1e0] sm:$0xff]
    %v2133 = vld [vmem:[%s11 + $0x1e8] sm:$0xff]
    %v2134 = vld [vmem:[%s11 + $0x1f0] sm:$0xff]
    %v2135 = vld [vmem:[%s11 + $0x1f8] sm:$0xff]
    %v2136 = vld [vmem:[%s11 + $0x200] sm:$0xff]
    %v2137 = vld [vmem:[%s11 + $0x208] sm:$0xff]
    %v2138 = vld [vmem:[%s11 + $0x210] sm:$0xff]
    %v2139 = vld [vmem:[%s11 + $0x218] sm:$0xff]
    %v2140 = vld [vmem:[%s11 + $0x220] sm:$0xff]
    %v2141 = vld [vmem:[%s11 + $0x228] sm:$0xff]
    %v2142 = vld [vmem:[%s11 + $0x230] sm:$0xff]
    %v2143 = vld [vmem:[%s11 + $0x238] sm:$0xff]
    %v2144 = vld [vmem:[%s11 + $0x240] sm:$0xff]
    %v2145 = vld [vmem:[%s11 + $0x248] sm:$0xff]
    %v2146 = vld [vmem:[%s11 + $0x250] sm:$0xff]
    %v2147 = vld [vmem:[%s11 + $0x258] sm:$0xff]
    %v2148 = vld [vmem:[%s11 + $0x260] sm:$0xff]
    %v2149 = vld [vmem:[%s11 + $0x268] sm:$0xff]
    %v2150 = vld [vmem:[%s11 + $0x270] sm:$0xff]
    %v2151 = vld [vmem:[%s11 + $0x278] sm:$0xff]
    %v2152 = vld [vmem:[%s11 + $0x280] sm:$0xff]
    %v2153 = vld [vmem:[%s11 + $0x288] sm:$0xff]
    %v2154 = vld [vmem:[%s11 + $0x290] sm:$0xff]
    %v2155 = vld [vmem:[%s11 + $0x298] sm:$0xff]
    %v2156 = vld [vmem:[%s11 + $0x2a0] sm:$0xff]
    %v2157 = vld [vmem:[%s11 + $0x2a8] sm:$0xff]
    %v2158 = vld [vmem:[%s11 + $0x2b0] sm:$0xff]
    %v2159 = vld [vmem:[%s11 + $0x2b8] sm:$0xff]
    %v2160 = vld [vmem:[%s11 + $0x2c0] sm:$0xff]
    %v2161 = vld [vmem:[%s11 + $0x2c8] sm:$0xff]
    %v2162 = vld [vmem:[%s11 + $0x2d0] sm:$0xff]
    %v2163 = vld [vmem:[%s11 + $0x2d8] sm:$0xff]
    %v2164 = vld [vmem:[%s11 + $0x2e0] sm:$0xff]
    %v2165 = vld [vmem:[%s11 + $0x2e8] sm:$0xff]
    %v2166 = vld [vmem:[%s11 + $0x2f0] sm:$0xff]
    %v2167 = vld [vmem:[%s11 + $0x2f8] sm:$0xff]
    %v2168 = vld [vmem:[%s11 + $0x300] sm:$0xff]
    %v2169 = vld [vmem:[%s11 + $0x308] sm:$0xff]
    %v2170 = vld [vmem:[%s11 + $0x310] sm:$0xff]
    %v2171 = vld [vmem:[%s11 + $0x318] sm:$0xff]
    %v2172 = vld [vmem:[%s11 + $0x320] sm:$0xff]
    %v2173 = vld [vmem:[%s11 + $0x328] sm:$0xff]
    %v2174 = vld [vmem:[%s11 + $0x330] sm:$0xff]
    %v2175 = vld [vmem:[%s11 + $0x338] sm:$0xff]
    %v2176 = vld [vmem:[%s11 + $0x340] sm:$0xff]
    %v2177 = vld [vmem:[%s11 + $0x348] sm:$0xff]
    %v2178 = vld [vmem:[%s11 + $0x350] sm:$0xff]
    %v2179 = vld [vmem:[%s11 + $0x358] sm:$0xff]
    %v2180 = vld [vmem:[%s11 + $0x360] sm:$0xff]
    %v2181 = vld [vmem:[%s11 + $0x368] sm:$0xff]
    %v2182 = vld [vmem:[%s11 + $0x370] sm:$0xff]
    %v2183 = vld [vmem:[%s11 + $0x378] sm:$0xff]
    %v2184 = vld [vmem:[%s11 + $0x380] sm:$0xff]
    %v2185 = vld [vmem:[%s11 + $0x388] sm:$0xff]
    %v2186 = vld [vmem:[%s11 + $0x390] sm:$0xff]
    %v2187 = vld [vmem:[%s11 + $0x398] sm:$0xff]
    %v2188 = vld [vmem:[%s11 + $0x3a0] sm:$0xff]
    %v2189 = vld [vmem:[%s11 + $0x3a8] sm:$0xff]
    %v2190 = vld [vmem:[%s11 + $0x3b0] sm:$0xff]
    %v2191 = vld [vmem:[%s11 + $0x3b8] sm:$0xff]
    %v2192 = vld [vmem:[%s11 + $0x3c0] sm:$0xff]
    %v2193 = vld [vmem:[%s11 + $0x3c8] sm:$0xff]
    %v2194 = vld [vmem:[%s11 + $0x3d0] sm:$0xff]
    %v2195 = vld [vmem:[%s11 + $0x3d8] sm:$0xff]
    %v2196 = vld [vmem:[%s11 + $0x3e0] sm:$0xff]
    %v2197 = vld [vmem:[%s11 + $0x3e8] sm:$0xff]
    %v2198 = vld [vmem:[%s11 + $0x3f0] sm:$0xff]
    %v2199 = vld [vmem:[%s11 + $0x3f8] sm:$0xff]
    %v2200 = vld [vmem:[%s11 + $0x400] sm:$0xff]
    %v2201 = vld [vmem:[%s11 + $0x408] sm:$0xff]
    %v2202 = vld [vmem:[%s11 + $0x410] sm:$0xff]
    %v2203 = vld [vmem:[%s11 + $0x418] sm:$0xff]
    %v2204 = vld [vmem:[%s11 + $0x420] sm:$0xff]
    %v2205 = vld [vmem:[%s11 + $0x428] sm:$0xff]
    %v2206 = vld [vmem:[%s11 + $0x430] sm:$0xff]
    %v2207 = vld [vmem:[%s11 + $0x438] sm:$0xff]
    %v2208 = vld [vmem:[%s11 + $0x440] sm:$0xff]
    %v2209 = vld [vmem:[%s11 + $0x448] sm:$0xff]
    %v2210 = vld [vmem:[%s11 + $0x450] sm:$0xff]
    %v2211 = vld [vmem:[%s11 + $0x458] sm:$0xff]
    %v2212 = vld [vmem:[%s11 + $0x460] sm:$0xff]
    %v2213 = vld [vmem:[%s11 + $0x468] sm:$0xff]
    %v2214 = vld [vmem:[%s11 + $0x470] sm:$0xff]
    %v2215 = vld [vmem:[%s11 + $0x478] sm:$0xff]
    %v2216 = vld [vmem:[%s11 + $0x480] sm:$0xff]
    %v2217 = vld [vmem:[%s11 + $0x488] sm:$0xff]
    %v2218 = vld [vmem:[%s11 + $0x490] sm:$0xff]
    %v2219 = vld [vmem:[%s11 + $0x498] sm:$0xff]
    %v2220 = vld [vmem:[%s11 + $0x4a0] sm:$0xff]
    %v2221 = vld [vmem:[%s11 + $0x4a8] sm:$0xff]
    %v2222 = vld [vmem:[%s11 + $0x4b0] sm:$0xff]
    %v2223 = vld [vmem:[%s11 + $0x4b8] sm:$0xff]
    %v2224 = vld [vmem:[%s11 + $0x4c0] sm:$0xff]
    %v2225 = vld [vmem:[%s11 + $0x4c8] sm:$0xff]
    %v2226 = vld [vmem:[%s11 + $0x4d0] sm:$0xff]
    %v2227 = vld [vmem:[%s11 + $0x4d8] sm:$0xff]
    %v2228 = vld [vmem:[%s11 + $0x4e0] sm:$0xff]
    %v2229 = vld [vmem:[%s11 + $0x4e8] sm:$0xff]
    %v2230 = vld [vmem:[%s11 + $0x4f0] sm:$0xff]
    %v2231 = vld [vmem:[%s11 + $0x4f8] sm:$0xff]
    %v2232 = vld [vmem:[%s11 + $0x500] sm:$0xff]
    %v2233 = vld [vmem:[%s11 + $0x508] sm:$0xff]
    %v2234 = vld [vmem:[%s11 + $0x510] sm:$0xff]
    %v2235 = vld [vmem:[%s11 + $0x518] sm:$0xff]
    %v2236 = vld [vmem:[%s11 + $0x520] sm:$0xff]
    %v2237 = vld [vmem:[%s11 + $0x528] sm:$0xff]
    %v2238 = vld [vmem:[%s11 + $0x530] sm:$0xff]
    %v2239 = vld [vmem:[%s11 + $0x538] sm:$0xff]
    %v2240 = vld [vmem:[%s11 + $0x540] sm:$0xff]
    %v2241 = vld [vmem:[%s11 + $0x548] sm:$0xff]
    %v2242 = vld [vmem:[%s11 + $0x550] sm:$0xff]
    %v2243 = vld [vmem:[%s11 + $0x558] sm:$0xff]
    %v2244 = vld [vmem:[%s11 + $0x560] sm:$0xff]
    %v2245 = vld [vmem:[%s11 + $0x568] sm:$0xff]
    %v2246 = vld [vmem:[%s11 + $0x570] sm:$0xff]
    %v2247 = vld [vmem:[%s11 + $0x578] sm:$0xff]
    %v2248 = vld [vmem:[%s11 + $0x580] sm:$0xff]
    %v2249 = vld [vmem:[%s11 + $0x588] sm:$0xff]
    %v2250 = vld [vmem:[%s11 + $0x590] sm:$0xff]
    %v2251 = vld [vmem:[%s11 + $0x598] sm:$0xff]
    %v2252 = vld [vmem:[%s11 + $0x5a0] sm:$0xff]
    %v2253 = vld [vmem:[%s11 + $0x5a8] sm:$0xff]
    %v2254 = vld [vmem:[%s11 + $0x5b0] sm:$0xff]
    %v2255 = vld [vmem:[%s11 + $0x5b8] sm:$0xff]
    %v2256 = vld [vmem:[%s11 + $0x5c0] sm:$0xff]
    %v2257 = vld [vmem:[%s11 + $0x5c8] sm:$0xff]
    %v2258 = vld [vmem:[%s11 + $0x5d0] sm:$0xff]
    %v2259 = vld [vmem:[%s11 + $0x5d8] sm:$0xff]
    %v2260 = vld [vmem:[%s11 + $0x5e0] sm:$0xff]
    %v2261 = vld [vmem:[%s11 + $0x5e8] sm:$0xff]
    %v2262 = vld [vmem:[%s11 + $0x5f0] sm:$0xff]
    %v2263 = vld [vmem:[%s11 + $0x5f8] sm:$0xff]
    %v2264 = vld [vmem:[%s11 + $0x600] sm:$0xff]
    %v2265 = vld [vmem:[%s11 + $0x608] sm:$0xff]
    %v2266 = vld [vmem:[%s11 + $0x610] sm:$0xff]
    %v2267 = vld [vmem:[%s11 + $0x618] sm:$0xff]
    %v2268 = vld [vmem:[%s11 + $0x620] sm:$0xff]
    %v2269 = vld [vmem:[%s11 + $0x628] sm:$0xff]
    %v2270 = vld [vmem:[%s11 + $0x630] sm:$0xff]
    %v2271 = vld [vmem:[%s11 + $0x638] sm:$0xff]
    %v2272 = vld [vmem:[%s11 + $0x640] sm:$0xff]
    %v2273 = vld [vmem:[%s11 + $0x648] sm:$0xff]
    %v2274 = vld [vmem:[%s11 + $0x650] sm:$0xff]
    %v2275 = vld [vmem:[%s11 + $0x658] sm:$0xff]
    %v2276 = vld [vmem:[%s11 + $0x660] sm:$0xff]
    %v2277 = vld [vmem:[%s11 + $0x668] sm:$0xff]
    %v2278 = vld [vmem:[%s11 + $0x670] sm:$0xff]
    %v2279 = vld [vmem:[%s11 + $0x678] sm:$0xff]
    %v2280 = vld [vmem:[%s11 + $0x680] sm:$0xff]
    %v2281 = vld [vmem:[%s11 + $0x688] sm:$0xff]
    %v2282 = vld [vmem:[%s11 + $0x690] sm:$0xff]
    %v2283 = vld [vmem:[%s11 + $0x698] sm:$0xff]
    %v2284 = vld [vmem:[%s11 + $0x6a0] sm:$0xff]
    %v2285 = vld [vmem:[%s11 + $0x6a8] sm:$0xff]
    %v2286 = vld [vmem:[%s11 + $0x6b0] sm:$0xff]
    %v2287 = vld [vmem:[%s11 + $0x6b8] sm:$0xff]
    %v2288 = vld [vmem:[%s11 + $0x6c0] sm:$0xff]
    %v2289 = vld [vmem:[%s11 + $0x6c8] sm:$0xff]
    %v2290 = vld [vmem:[%s11 + $0x6d0] sm:$0xff]
    %v2291 = vld [vmem:[%s11 + $0x6d8] sm:$0xff]
    %v2292 = vld [vmem:[%s11 + $0x6e0] sm:$0xff]
    %v2293 = vld [vmem:[%s11 + $0x6e8] sm:$0xff]
    %v2294 = vld [vmem:[%s11 + $0x6f0] sm:$0xff]
    %v2295 = vld [vmem:[%s11 + $0x6f8] sm:$0xff]
    %v2296 = vld [vmem:[%s11 + $0x700] sm:$0xff]
    %v2297 = vld [vmem:[%s11 + $0x708] sm:$0xff]
    %v2298 = vld [vmem:[%s11 + $0x710] sm:$0xff]
    %v2299 = vld [vmem:[%s11 + $0x718] sm:$0xff]
    %v2300 = vld [vmem:[%s11 + $0x720] sm:$0xff]
    %v2301 = vld [vmem:[%s11 + $0x728] sm:$0xff]
    %v2302 = vld [vmem:[%s11 + $0x730] sm:$0xff]
    %v2303 = vld [vmem:[%s11 + $0x738] sm:$0xff]
    %v2304 = vld [vmem:[%s11 + $0x740] sm:$0xff]
    %v2305 = vld [vmem:[%s11 + $0x748] sm:$0xff]
    %v2306 = vld [vmem:[%s11 + $0x750] sm:$0xff]
    %v2307 = vld [vmem:[%s11 + $0x758] sm:$0xff]
    %v2308 = vld [vmem:[%s11 + $0x760] sm:$0xff]
    %v2309 = vld [vmem:[%s11 + $0x768] sm:$0xff]
    %v2310 = vld [vmem:[%s11 + $0x770] sm:$0xff]
    %v2311 = vld [vmem:[%s11 + $0x778] sm:$0xff]
    %v2312 = vld [vmem:[%s11 + $0x780] sm:$0xff]
    %v2313 = vld [vmem:[%s11 + $0x788] sm:$0xff]
    %v2314 = vld [vmem:[%s11 + $0x790] sm:$0xff]
    %v2315 = vld [vmem:[%s11 + $0x798] sm:$0xff]
    %v2316 = vld [vmem:[%s11 + $0x7a0] sm:$0xff]
    %v2317 = vld [vmem:[%s11 + $0x7a8] sm:$0xff]
    %v2318 = vld [vmem:[%s11 + $0x7b0] sm:$0xff]
    %v2319 = vld [vmem:[%s11 + $0x7b8] sm:$0xff]
    %v2320 = vld [vmem:[%s11 + $0x7c0] sm:$0xff]
    %v2321 = vld [vmem:[%s11 + $0x7c8] sm:$0xff]
    %v2322 = vld [vmem:[%s11 + $0x7d0] sm:$0xff]
    %v2323 = vld [vmem:[%s11 + $0x7d8] sm:$0xff]
    %v2324 = vld [vmem:[%s11 + $0x7e0] sm:$0xff]
    %v2325 = vld [vmem:[%s11 + $0x7e8] sm:$0xff]
    %v2326 = vld [vmem:[%s11 + $0x7f0] sm:$0xff]
    %v2327 = vld [vmem:[%s11 + $0x7f8] sm:$0xff]
    %v2328 = vunpack.c.l.s8.bf16 %v2072
    %v2329 = vunpack.c.l.s8.bf16 %v2073
    %v2330 = vunpack.c.l.s8.bf16 %v2074
    %v2331 = vunpack.c.l.s8.bf16 %v2075
    %v2332 = vunpack.c.l.s8.bf16 %v2076
    %v2333 = vunpack.c.l.s8.bf16 %v2077
    %v2334 = vunpack.c.l.s8.bf16 %v2078
    %v2335 = vunpack.c.l.s8.bf16 %v2079
    %v2336 = vunpack.c.h.s8.bf16 %v2072
    %v2337 = vunpack.c.h.s8.bf16 %v2073
    %v2338 = vunpack.c.h.s8.bf16 %v2074
    %v2339 = vunpack.c.h.s8.bf16 %v2075
    %v2340 = vunpack.c.h.s8.bf16 %v2076
    %v2341 = vunpack.c.h.s8.bf16 %v2077
    %v2342 = vunpack.c.h.s8.bf16 %v2078
    %v2343 = vunpack.c.h.s8.bf16 %v2079
    %v2344 = vunpack.c.l.s8.bf16 %v2080
    %v2345 = vunpack.c.l.s8.bf16 %v2081
    %v2346 = vunpack.c.l.s8.bf16 %v2082
    %v2347 = vunpack.c.l.s8.bf16 %v2083
    %v2348 = vunpack.c.l.s8.bf16 %v2084
    %v2349 = vunpack.c.l.s8.bf16 %v2085
    %v2350 = vunpack.c.l.s8.bf16 %v2086
    %v2351 = vunpack.c.l.s8.bf16 %v2087
    %v2352 = vunpack.c.h.s8.bf16 %v2080
    %v2353 = vunpack.c.h.s8.bf16 %v2081
    %v2354 = vunpack.c.h.s8.bf16 %v2082
    %v2355 = vunpack.c.h.s8.bf16 %v2083
    %v2356 = vunpack.c.h.s8.bf16 %v2084
    %v2357 = vunpack.c.h.s8.bf16 %v2085
    %v2358 = vunpack.c.h.s8.bf16 %v2086
    %v2359 = vunpack.c.h.s8.bf16 %v2087
    %v2360 = vunpack.c.l.s8.bf16 %v2088
    %v2361 = vunpack.c.l.s8.bf16 %v2089
    %v2362 = vunpack.c.l.s8.bf16 %v2090
    %v2363 = vunpack.c.l.s8.bf16 %v2091
    %v2364 = vunpack.c.l.s8.bf16 %v2092
    %v2365 = vunpack.c.l.s8.bf16 %v2093
    %v2366 = vunpack.c.l.s8.bf16 %v2094
    %v2367 = vunpack.c.l.s8.bf16 %v2095
    %v2368 = vunpack.c.h.s8.bf16 %v2088
    %v2369 = vunpack.c.h.s8.bf16 %v2089
    %v2370 = vunpack.c.h.s8.bf16 %v2090
    %v2371 = vunpack.c.h.s8.bf16 %v2091
    %v2372 = vunpack.c.h.s8.bf16 %v2092
    %v2373 = vunpack.c.h.s8.bf16 %v2093
    %v2374 = vunpack.c.h.s8.bf16 %v2094
    %v2375 = vunpack.c.h.s8.bf16 %v2095
    %v2376 = vunpack.c.l.s8.bf16 %v2096
    %v2377 = vunpack.c.l.s8.bf16 %v2097
    %v2378 = vunpack.c.l.s8.bf16 %v2098
    %v2379 = vunpack.c.l.s8.bf16 %v2099
    %v2380 = vunpack.c.l.s8.bf16 %v2100
    %v2381 = vunpack.c.l.s8.bf16 %v2101
    %v2382 = vunpack.c.l.s8.bf16 %v2102
    %v2383 = vunpack.c.l.s8.bf16 %v2103
    %v2384 = vunpack.c.h.s8.bf16 %v2096
    %v2385 = vunpack.c.h.s8.bf16 %v2097
    %v2386 = vunpack.c.h.s8.bf16 %v2098
    %v2387 = vunpack.c.h.s8.bf16 %v2099
    %v2388 = vunpack.c.h.s8.bf16 %v2100
    %v2389 = vunpack.c.h.s8.bf16 %v2101
    %v2390 = vunpack.c.h.s8.bf16 %v2102
    %v2391 = vunpack.c.h.s8.bf16 %v2103
    %v2392 = vunpack.c.l.s8.bf16 %v2104
    %v2393 = vunpack.c.l.s8.bf16 %v2105
    %v2394 = vunpack.c.l.s8.bf16 %v2106
    %v2395 = vunpack.c.l.s8.bf16 %v2107
    %v2396 = vunpack.c.l.s8.bf16 %v2108
    %v2397 = vunpack.c.l.s8.bf16 %v2109
    %v2398 = vunpack.c.l.s8.bf16 %v2110
    %v2399 = vunpack.c.l.s8.bf16 %v2111
    %v2400 = vunpack.c.h.s8.bf16 %v2104
    %v2401 = vunpack.c.h.s8.bf16 %v2105
    %v2402 = vunpack.c.h.s8.bf16 %v2106
    %v2403 = vunpack.c.h.s8.bf16 %v2107
    %v2404 = vunpack.c.h.s8.bf16 %v2108
    %v2405 = vunpack.c.h.s8.bf16 %v2109
    %v2406 = vunpack.c.h.s8.bf16 %v2110
    %v2407 = vunpack.c.h.s8.bf16 %v2111
    %v2408 = vunpack.c.l.s8.bf16 %v2112
    %v2409 = vunpack.c.l.s8.bf16 %v2113
    %v2410 = vunpack.c.l.s8.bf16 %v2114
    %v2411 = vunpack.c.l.s8.bf16 %v2115
    %v2412 = vunpack.c.l.s8.bf16 %v2116
    %v2413 = vunpack.c.l.s8.bf16 %v2117
    %v2414 = vunpack.c.l.s8.bf16 %v2118
    %v2415 = vunpack.c.l.s8.bf16 %v2119
    %v2416 = vunpack.c.h.s8.bf16 %v2112
    %v2417 = vunpack.c.h.s8.bf16 %v2113
    %v2418 = vunpack.c.h.s8.bf16 %v2114
    %v2419 = vunpack.c.h.s8.bf16 %v2115
    %v2420 = vunpack.c.h.s8.bf16 %v2116
    %v2421 = vunpack.c.h.s8.bf16 %v2117
    %v2422 = vunpack.c.h.s8.bf16 %v2118
    %v2423 = vunpack.c.h.s8.bf16 %v2119
    %v2424 = vunpack.c.l.s8.bf16 %v2120
    %v2425 = vunpack.c.l.s8.bf16 %v2121
    %v2426 = vunpack.c.l.s8.bf16 %v2122
    %v2427 = vunpack.c.l.s8.bf16 %v2123
    %v2428 = vunpack.c.l.s8.bf16 %v2124
    %v2429 = vunpack.c.l.s8.bf16 %v2125
    %v2430 = vunpack.c.l.s8.bf16 %v2126
    %v2431 = vunpack.c.l.s8.bf16 %v2127
    %v2432 = vunpack.c.h.s8.bf16 %v2120
    %v2433 = vunpack.c.h.s8.bf16 %v2121
    %v2434 = vunpack.c.h.s8.bf16 %v2122
    %v2435 = vunpack.c.h.s8.bf16 %v2123
    %v2436 = vunpack.c.h.s8.bf16 %v2124
    %v2437 = vunpack.c.h.s8.bf16 %v2125
    %v2438 = vunpack.c.h.s8.bf16 %v2126
    %v2439 = vunpack.c.h.s8.bf16 %v2127
    %v2440 = vunpack.c.l.s8.bf16 %v2128
    %v2441 = vunpack.c.l.s8.bf16 %v2129
    %v2442 = vunpack.c.l.s8.bf16 %v2130
    %v2443 = vunpack.c.l.s8.bf16 %v2131
    %v2444 = vunpack.c.l.s8.bf16 %v2132
    %v2445 = vunpack.c.l.s8.bf16 %v2133
    %v2446 = vunpack.c.l.s8.bf16 %v2134
    %v2447 = vunpack.c.l.s8.bf16 %v2135
    %v2448 = vunpack.c.h.s8.bf16 %v2128
    %v2449 = vunpack.c.h.s8.bf16 %v2129
    %v2450 = vunpack.c.h.s8.bf16 %v2130
    %v2451 = vunpack.c.h.s8.bf16 %v2131
    %v2452 = vunpack.c.h.s8.bf16 %v2132
    %v2453 = vunpack.c.h.s8.bf16 %v2133
    %v2454 = vunpack.c.h.s8.bf16 %v2134
    %v2455 = vunpack.c.h.s8.bf16 %v2135
    %v2456 = vunpack.c.l.s8.bf16 %v2136
    %v2457 = vunpack.c.l.s8.bf16 %v2137
    %v2458 = vunpack.c.l.s8.bf16 %v2138
    %v2459 = vunpack.c.l.s8.bf16 %v2139
    %v2460 = vunpack.c.l.s8.bf16 %v2140
    %v2461 = vunpack.c.l.s8.bf16 %v2141
    %v2462 = vunpack.c.l.s8.bf16 %v2142
    %v2463 = vunpack.c.l.s8.bf16 %v2143
    %v2464 = vunpack.c.h.s8.bf16 %v2136
    %v2465 = vunpack.c.h.s8.bf16 %v2137
    %v2466 = vunpack.c.h.s8.bf16 %v2138
    %v2467 = vunpack.c.h.s8.bf16 %v2139
    %v2468 = vunpack.c.h.s8.bf16 %v2140
    %v2469 = vunpack.c.h.s8.bf16 %v2141
    %v2470 = vunpack.c.h.s8.bf16 %v2142
    %v2471 = vunpack.c.h.s8.bf16 %v2143
    %v2472 = vunpack.c.l.s8.bf16 %v2144
    %v2473 = vunpack.c.l.s8.bf16 %v2145
    %v2474 = vunpack.c.l.s8.bf16 %v2146
    %v2475 = vunpack.c.l.s8.bf16 %v2147
    %v2476 = vunpack.c.l.s8.bf16 %v2148
    %v2477 = vunpack.c.l.s8.bf16 %v2149
    %v2478 = vunpack.c.l.s8.bf16 %v2150
    %v2479 = vunpack.c.l.s8.bf16 %v2151
    %v2480 = vunpack.c.h.s8.bf16 %v2144
    %v2481 = vunpack.c.h.s8.bf16 %v2145
    %v2482 = vunpack.c.h.s8.bf16 %v2146
    %v2483 = vunpack.c.h.s8.bf16 %v2147
    %v2484 = vunpack.c.h.s8.bf16 %v2148
    %v2485 = vunpack.c.h.s8.bf16 %v2149
    %v2486 = vunpack.c.h.s8.bf16 %v2150
    %v2487 = vunpack.c.h.s8.bf16 %v2151
    %v2488 = vunpack.c.l.s8.bf16 %v2152
    %v2489 = vunpack.c.l.s8.bf16 %v2153
    %v2490 = vunpack.c.l.s8.bf16 %v2154
    %v2491 = vunpack.c.l.s8.bf16 %v2155
    %v2492 = vunpack.c.l.s8.bf16 %v2156
    %v2493 = vunpack.c.l.s8.bf16 %v2157
    %v2494 = vunpack.c.l.s8.bf16 %v2158
    %v2495 = vunpack.c.l.s8.bf16 %v2159
    %v2496 = vunpack.c.h.s8.bf16 %v2152
    %v2497 = vunpack.c.h.s8.bf16 %v2153
    %v2498 = vunpack.c.h.s8.bf16 %v2154
    %v2499 = vunpack.c.h.s8.bf16 %v2155
    %v2500 = vunpack.c.h.s8.bf16 %v2156
    %v2501 = vunpack.c.h.s8.bf16 %v2157
    %v2502 = vunpack.c.h.s8.bf16 %v2158
    %v2503 = vunpack.c.h.s8.bf16 %v2159
    %v2504 = vunpack.c.l.s8.bf16 %v2160
    %v2505 = vunpack.c.l.s8.bf16 %v2161
    %v2506 = vunpack.c.l.s8.bf16 %v2162
    %v2507 = vunpack.c.l.s8.bf16 %v2163
    %v2508 = vunpack.c.l.s8.bf16 %v2164
    %v2509 = vunpack.c.l.s8.bf16 %v2165
    %v2510 = vunpack.c.l.s8.bf16 %v2166
    %v2511 = vunpack.c.l.s8.bf16 %v2167
    %v2512 = vunpack.c.h.s8.bf16 %v2160
    %v2513 = vunpack.c.h.s8.bf16 %v2161
    %v2514 = vunpack.c.h.s8.bf16 %v2162
    %v2515 = vunpack.c.h.s8.bf16 %v2163
    %v2516 = vunpack.c.h.s8.bf16 %v2164
    %v2517 = vunpack.c.h.s8.bf16 %v2165
    %v2518 = vunpack.c.h.s8.bf16 %v2166
    %v2519 = vunpack.c.h.s8.bf16 %v2167
    %v2520 = vunpack.c.l.s8.bf16 %v2168
    %v2521 = vunpack.c.l.s8.bf16 %v2169
    %v2522 = vunpack.c.l.s8.bf16 %v2170
    %v2523 = vunpack.c.l.s8.bf16 %v2171
    %v2524 = vunpack.c.l.s8.bf16 %v2172
    %v2525 = vunpack.c.l.s8.bf16 %v2173
    %v2526 = vunpack.c.l.s8.bf16 %v2174
    %v2527 = vunpack.c.l.s8.bf16 %v2175
    %v2528 = vunpack.c.h.s8.bf16 %v2168
    %v2529 = vunpack.c.h.s8.bf16 %v2169
    %v2530 = vunpack.c.h.s8.bf16 %v2170
    %v2531 = vunpack.c.h.s8.bf16 %v2171
    %v2532 = vunpack.c.h.s8.bf16 %v2172
    %v2533 = vunpack.c.h.s8.bf16 %v2173
    %v2534 = vunpack.c.h.s8.bf16 %v2174
    %v2535 = vunpack.c.h.s8.bf16 %v2175
    %v2536 = vunpack.c.l.s8.bf16 %v2176
    %v2537 = vunpack.c.l.s8.bf16 %v2177
    %v2538 = vunpack.c.l.s8.bf16 %v2178
    %v2539 = vunpack.c.l.s8.bf16 %v2179
    %v2540 = vunpack.c.l.s8.bf16 %v2180
    %v2541 = vunpack.c.l.s8.bf16 %v2181
    %v2542 = vunpack.c.l.s8.bf16 %v2182
    %v2543 = vunpack.c.l.s8.bf16 %v2183
    %v2544 = vunpack.c.h.s8.bf16 %v2176
    %v2545 = vunpack.c.h.s8.bf16 %v2177
    %v2546 = vunpack.c.h.s8.bf16 %v2178
    %v2547 = vunpack.c.h.s8.bf16 %v2179
    %v2548 = vunpack.c.h.s8.bf16 %v2180
    %v2549 = vunpack.c.h.s8.bf16 %v2181
    %v2550 = vunpack.c.h.s8.bf16 %v2182
    %v2551 = vunpack.c.h.s8.bf16 %v2183
    %v2552 = vunpack.c.l.s8.bf16 %v2184
    %v2553 = vunpack.c.l.s8.bf16 %v2185
    %v2554 = vunpack.c.l.s8.bf16 %v2186
    %v2555 = vunpack.c.l.s8.bf16 %v2187
    %v2556 = vunpack.c.l.s8.bf16 %v2188
    %v2557 = vunpack.c.l.s8.bf16 %v2189
    %v2558 = vunpack.c.l.s8.bf16 %v2190
    %v2559 = vunpack.c.l.s8.bf16 %v2191
    %v2560 = vunpack.c.h.s8.bf16 %v2184
    %v2561 = vunpack.c.h.s8.bf16 %v2185
    %v2562 = vunpack.c.h.s8.bf16 %v2186
    %v2563 = vunpack.c.h.s8.bf16 %v2187
    %v2564 = vunpack.c.h.s8.bf16 %v2188
    %v2565 = vunpack.c.h.s8.bf16 %v2189
    %v2566 = vunpack.c.h.s8.bf16 %v2190
    %v2567 = vunpack.c.h.s8.bf16 %v2191
    %v2568 = vunpack.c.l.s8.bf16 %v2192
    %v2569 = vunpack.c.l.s8.bf16 %v2193
    %v2570 = vunpack.c.l.s8.bf16 %v2194
    %v2571 = vunpack.c.l.s8.bf16 %v2195
    %v2572 = vunpack.c.l.s8.bf16 %v2196
    %v2573 = vunpack.c.l.s8.bf16 %v2197
    %v2574 = vunpack.c.l.s8.bf16 %v2198
    %v2575 = vunpack.c.l.s8.bf16 %v2199
    %v2576 = vunpack.c.h.s8.bf16 %v2192
    %v2577 = vunpack.c.h.s8.bf16 %v2193
    %v2578 = vunpack.c.h.s8.bf16 %v2194
    %v2579 = vunpack.c.h.s8.bf16 %v2195
    %v2580 = vunpack.c.h.s8.bf16 %v2196
    %v2581 = vunpack.c.h.s8.bf16 %v2197
    %v2582 = vunpack.c.h.s8.bf16 %v2198
    %v2583 = vunpack.c.h.s8.bf16 %v2199
    %v2584 = vunpack.c.l.s8.bf16 %v2200
    %v2585 = vunpack.c.l.s8.bf16 %v2201
    %v2586 = vunpack.c.l.s8.bf16 %v2202
    %v2587 = vunpack.c.l.s8.bf16 %v2203
    %v2588 = vunpack.c.l.s8.bf16 %v2204
    %v2589 = vunpack.c.l.s8.bf16 %v2205
    %v2590 = vunpack.c.l.s8.bf16 %v2206
    %v2591 = vunpack.c.l.s8.bf16 %v2207
    %v2592 = vunpack.c.h.s8.bf16 %v2200
    %v2593 = vunpack.c.h.s8.bf16 %v2201
    %v2594 = vunpack.c.h.s8.bf16 %v2202
    %v2595 = vunpack.c.h.s8.bf16 %v2203
    %v2596 = vunpack.c.h.s8.bf16 %v2204
    %v2597 = vunpack.c.h.s8.bf16 %v2205
    %v2598 = vunpack.c.h.s8.bf16 %v2206
    %v2599 = vunpack.c.h.s8.bf16 %v2207
    %v2600 = vunpack.c.l.s8.bf16 %v2208
    %v2601 = vunpack.c.l.s8.bf16 %v2209
    %v2602 = vunpack.c.l.s8.bf16 %v2210
    %v2603 = vunpack.c.l.s8.bf16 %v2211
    %v2604 = vunpack.c.l.s8.bf16 %v2212
    %v2605 = vunpack.c.l.s8.bf16 %v2213
    %v2606 = vunpack.c.l.s8.bf16 %v2214
    %v2607 = vunpack.c.l.s8.bf16 %v2215
    %v2608 = vunpack.c.h.s8.bf16 %v2208
    %v2609 = vunpack.c.h.s8.bf16 %v2209
    %v2610 = vunpack.c.h.s8.bf16 %v2210
    %v2611 = vunpack.c.h.s8.bf16 %v2211
    %v2612 = vunpack.c.h.s8.bf16 %v2212
    %v2613 = vunpack.c.h.s8.bf16 %v2213
    %v2614 = vunpack.c.h.s8.bf16 %v2214
    %v2615 = vunpack.c.h.s8.bf16 %v2215
    %v2616 = vunpack.c.l.s8.bf16 %v2216
    %v2617 = vunpack.c.l.s8.bf16 %v2217
    %v2618 = vunpack.c.l.s8.bf16 %v2218
    %v2619 = vunpack.c.l.s8.bf16 %v2219
    %v2620 = vunpack.c.l.s8.bf16 %v2220
    %v2621 = vunpack.c.l.s8.bf16 %v2221
    %v2622 = vunpack.c.l.s8.bf16 %v2222
    %v2623 = vunpack.c.l.s8.bf16 %v2223
    %v2624 = vunpack.c.h.s8.bf16 %v2216
    %v2625 = vunpack.c.h.s8.bf16 %v2217
    %v2626 = vunpack.c.h.s8.bf16 %v2218
    %v2627 = vunpack.c.h.s8.bf16 %v2219
    %v2628 = vunpack.c.h.s8.bf16 %v2220
    %v2629 = vunpack.c.h.s8.bf16 %v2221
    %v2630 = vunpack.c.h.s8.bf16 %v2222
    %v2631 = vunpack.c.h.s8.bf16 %v2223
    %v2632 = vunpack.c.l.s8.bf16 %v2224
    %v2633 = vunpack.c.l.s8.bf16 %v2225
    %v2634 = vunpack.c.l.s8.bf16 %v2226
    %v2635 = vunpack.c.l.s8.bf16 %v2227
    %v2636 = vunpack.c.l.s8.bf16 %v2228
    %v2637 = vunpack.c.l.s8.bf16 %v2229
    %v2638 = vunpack.c.l.s8.bf16 %v2230
    %v2639 = vunpack.c.l.s8.bf16 %v2231
    %v2640 = vunpack.c.h.s8.bf16 %v2224
    %v2641 = vunpack.c.h.s8.bf16 %v2225
    %v2642 = vunpack.c.h.s8.bf16 %v2226
    %v2643 = vunpack.c.h.s8.bf16 %v2227
    %v2644 = vunpack.c.h.s8.bf16 %v2228
    %v2645 = vunpack.c.h.s8.bf16 %v2229
    %v2646 = vunpack.c.h.s8.bf16 %v2230
    %v2647 = vunpack.c.h.s8.bf16 %v2231
    %v2648 = vunpack.c.l.s8.bf16 %v2232
    %v2649 = vunpack.c.l.s8.bf16 %v2233
    %v2650 = vunpack.c.l.s8.bf16 %v2234
    %v2651 = vunpack.c.l.s8.bf16 %v2235
    %v2652 = vunpack.c.l.s8.bf16 %v2236
    %v2653 = vunpack.c.l.s8.bf16 %v2237
    %v2654 = vunpack.c.l.s8.bf16 %v2238
    %v2655 = vunpack.c.l.s8.bf16 %v2239
    %v2656 = vunpack.c.h.s8.bf16 %v2232
    %v2657 = vunpack.c.h.s8.bf16 %v2233
    %v2658 = vunpack.c.h.s8.bf16 %v2234
    %v2659 = vunpack.c.h.s8.bf16 %v2235
    %v2660 = vunpack.c.h.s8.bf16 %v2236
    %v2661 = vunpack.c.h.s8.bf16 %v2237
    %v2662 = vunpack.c.h.s8.bf16 %v2238
    %v2663 = vunpack.c.h.s8.bf16 %v2239
    %v2664 = vunpack.c.l.s8.bf16 %v2240
    %v2665 = vunpack.c.l.s8.bf16 %v2241
    %v2666 = vunpack.c.l.s8.bf16 %v2242
    %v2667 = vunpack.c.l.s8.bf16 %v2243
    %v2668 = vunpack.c.l.s8.bf16 %v2244
    %v2669 = vunpack.c.l.s8.bf16 %v2245
    %v2670 = vunpack.c.l.s8.bf16 %v2246
    %v2671 = vunpack.c.l.s8.bf16 %v2247
    %v2672 = vunpack.c.h.s8.bf16 %v2240
    %v2673 = vunpack.c.h.s8.bf16 %v2241
    %v2674 = vunpack.c.h.s8.bf16 %v2242
    %v2675 = vunpack.c.h.s8.bf16 %v2243
    %v2676 = vunpack.c.h.s8.bf16 %v2244
    %v2677 = vunpack.c.h.s8.bf16 %v2245
    %v2678 = vunpack.c.h.s8.bf16 %v2246
    %v2679 = vunpack.c.h.s8.bf16 %v2247
    %v2680 = vunpack.c.l.s8.bf16 %v2248
    %v2681 = vunpack.c.l.s8.bf16 %v2249
    %v2682 = vunpack.c.l.s8.bf16 %v2250
    %v2683 = vunpack.c.l.s8.bf16 %v2251
    %v2684 = vunpack.c.l.s8.bf16 %v2252
    %v2685 = vunpack.c.l.s8.bf16 %v2253
    %v2686 = vunpack.c.l.s8.bf16 %v2254
    %v2687 = vunpack.c.l.s8.bf16 %v2255
    %v2688 = vunpack.c.h.s8.bf16 %v2248
    %v2689 = vunpack.c.h.s8.bf16 %v2249
    %v2690 = vunpack.c.h.s8.bf16 %v2250
    %v2691 = vunpack.c.h.s8.bf16 %v2251
    %v2692 = vunpack.c.h.s8.bf16 %v2252
    %v2693 = vunpack.c.h.s8.bf16 %v2253
    %v2694 = vunpack.c.h.s8.bf16 %v2254
    %v2695 = vunpack.c.h.s8.bf16 %v2255
    %v2696 = vunpack.c.l.s8.bf16 %v2256
    %v2697 = vunpack.c.l.s8.bf16 %v2257
    %v2698 = vunpack.c.l.s8.bf16 %v2258
    %v2699 = vunpack.c.l.s8.bf16 %v2259
    %v2700 = vunpack.c.l.s8.bf16 %v2260
    %v2701 = vunpack.c.l.s8.bf16 %v2261
    %v2702 = vunpack.c.l.s8.bf16 %v2262
    %v2703 = vunpack.c.l.s8.bf16 %v2263
    %v2704 = vunpack.c.h.s8.bf16 %v2256
    %v2705 = vunpack.c.h.s8.bf16 %v2257
    %v2706 = vunpack.c.h.s8.bf16 %v2258
    %v2707 = vunpack.c.h.s8.bf16 %v2259
    %v2708 = vunpack.c.h.s8.bf16 %v2260
    %v2709 = vunpack.c.h.s8.bf16 %v2261
    %v2710 = vunpack.c.h.s8.bf16 %v2262
    %v2711 = vunpack.c.h.s8.bf16 %v2263
    %v2712 = vunpack.c.l.s8.bf16 %v2264
    %v2713 = vunpack.c.l.s8.bf16 %v2265
    %v2714 = vunpack.c.l.s8.bf16 %v2266
    %v2715 = vunpack.c.l.s8.bf16 %v2267
    %v2716 = vunpack.c.l.s8.bf16 %v2268
    %v2717 = vunpack.c.l.s8.bf16 %v2269
    %v2718 = vunpack.c.l.s8.bf16 %v2270
    %v2719 = vunpack.c.l.s8.bf16 %v2271
    %v2720 = vunpack.c.h.s8.bf16 %v2264
    %v2721 = vunpack.c.h.s8.bf16 %v2265
    %v2722 = vunpack.c.h.s8.bf16 %v2266
    %v2723 = vunpack.c.h.s8.bf16 %v2267
    %v2724 = vunpack.c.h.s8.bf16 %v2268
    %v2725 = vunpack.c.h.s8.bf16 %v2269
    %v2726 = vunpack.c.h.s8.bf16 %v2270
    %v2727 = vunpack.c.h.s8.bf16 %v2271
    %v2728 = vunpack.c.l.s8.bf16 %v2272
    %v2729 = vunpack.c.l.s8.bf16 %v2273
    %v2730 = vunpack.c.l.s8.bf16 %v2274
    %v2731 = vunpack.c.l.s8.bf16 %v2275
    %v2732 = vunpack.c.l.s8.bf16 %v2276
    %v2733 = vunpack.c.l.s8.bf16 %v2277
    %v2734 = vunpack.c.l.s8.bf16 %v2278
    %v2735 = vunpack.c.l.s8.bf16 %v2279
    %v2736 = vunpack.c.h.s8.bf16 %v2272
    %v2737 = vunpack.c.h.s8.bf16 %v2273
    %v2738 = vunpack.c.h.s8.bf16 %v2274
    %v2739 = vunpack.c.h.s8.bf16 %v2275
    %v2740 = vunpack.c.h.s8.bf16 %v2276
    %v2741 = vunpack.c.h.s8.bf16 %v2277
    %v2742 = vunpack.c.h.s8.bf16 %v2278
    %v2743 = vunpack.c.h.s8.bf16 %v2279
    %v2744 = vunpack.c.l.s8.bf16 %v2280
    %v2745 = vunpack.c.l.s8.bf16 %v2281
    %v2746 = vunpack.c.l.s8.bf16 %v2282
    %v2747 = vunpack.c.l.s8.bf16 %v2283
    %v2748 = vunpack.c.l.s8.bf16 %v2284
    %v2749 = vunpack.c.l.s8.bf16 %v2285
    %v2750 = vunpack.c.l.s8.bf16 %v2286
    %v2751 = vunpack.c.l.s8.bf16 %v2287
    %v2752 = vunpack.c.h.s8.bf16 %v2280
    %v2753 = vunpack.c.h.s8.bf16 %v2281
    %v2754 = vunpack.c.h.s8.bf16 %v2282
    %v2755 = vunpack.c.h.s8.bf16 %v2283
    %v2756 = vunpack.c.h.s8.bf16 %v2284
    %v2757 = vunpack.c.h.s8.bf16 %v2285
    %v2758 = vunpack.c.h.s8.bf16 %v2286
    %v2759 = vunpack.c.h.s8.bf16 %v2287
    %v2760 = vunpack.c.l.s8.bf16 %v2288
    %v2761 = vunpack.c.l.s8.bf16 %v2289
    %v2762 = vunpack.c.l.s8.bf16 %v2290
    %v2763 = vunpack.c.l.s8.bf16 %v2291
    %v2764 = vunpack.c.l.s8.bf16 %v2292
    %v2765 = vunpack.c.l.s8.bf16 %v2293
    %v2766 = vunpack.c.l.s8.bf16 %v2294
    %v2767 = vunpack.c.l.s8.bf16 %v2295
    %v2768 = vunpack.c.h.s8.bf16 %v2288
    %v2769 = vunpack.c.h.s8.bf16 %v2289
    %v2770 = vunpack.c.h.s8.bf16 %v2290
    %v2771 = vunpack.c.h.s8.bf16 %v2291
    %v2772 = vunpack.c.h.s8.bf16 %v2292
    %v2773 = vunpack.c.h.s8.bf16 %v2293
    %v2774 = vunpack.c.h.s8.bf16 %v2294
    %v2775 = vunpack.c.h.s8.bf16 %v2295
    %v2776 = vunpack.c.l.s8.bf16 %v2296
    %v2777 = vunpack.c.l.s8.bf16 %v2297
    %v2778 = vunpack.c.l.s8.bf16 %v2298
    %v2779 = vunpack.c.l.s8.bf16 %v2299
    %v2780 = vunpack.c.l.s8.bf16 %v2300
    %v2781 = vunpack.c.l.s8.bf16 %v2301
    %v2782 = vunpack.c.l.s8.bf16 %v2302
    %v2783 = vunpack.c.l.s8.bf16 %v2303
    %v2784 = vunpack.c.h.s8.bf16 %v2296
    %v2785 = vunpack.c.h.s8.bf16 %v2297
    %v2786 = vunpack.c.h.s8.bf16 %v2298
    %v2787 = vunpack.c.h.s8.bf16 %v2299
    %v2788 = vunpack.c.h.s8.bf16 %v2300
    %v2789 = vunpack.c.h.s8.bf16 %v2301
    %v2790 = vunpack.c.h.s8.bf16 %v2302
    %v2791 = vunpack.c.h.s8.bf16 %v2303
    %v2792 = vunpack.c.l.s8.bf16 %v2304
    %v2793 = vunpack.c.l.s8.bf16 %v2305
    %v2794 = vunpack.c.l.s8.bf16 %v2306
    %v2795 = vunpack.c.l.s8.bf16 %v2307
    %v2796 = vunpack.c.l.s8.bf16 %v2308
    %v2797 = vunpack.c.l.s8.bf16 %v2309
    %v2798 = vunpack.c.l.s8.bf16 %v2310
    %v2799 = vunpack.c.l.s8.bf16 %v2311
    %v2800 = vunpack.c.h.s8.bf16 %v2304
    %v2801 = vunpack.c.h.s8.bf16 %v2305
    %v2802 = vunpack.c.h.s8.bf16 %v2306
    %v2803 = vunpack.c.h.s8.bf16 %v2307
    %v2804 = vunpack.c.h.s8.bf16 %v2308
    %v2805 = vunpack.c.h.s8.bf16 %v2309
    %v2806 = vunpack.c.h.s8.bf16 %v2310
    %v2807 = vunpack.c.h.s8.bf16 %v2311
    %v2808 = vunpack.c.l.s8.bf16 %v2312
    %v2809 = vunpack.c.l.s8.bf16 %v2313
    %v2810 = vunpack.c.l.s8.bf16 %v2314
    %v2811 = vunpack.c.l.s8.bf16 %v2315
    %v2812 = vunpack.c.l.s8.bf16 %v2316
    %v2813 = vunpack.c.l.s8.bf16 %v2317
    %v2814 = vunpack.c.l.s8.bf16 %v2318
    %v2815 = vunpack.c.l.s8.bf16 %v2319
    %v2816 = vunpack.c.h.s8.bf16 %v2312
    %v2817 = vunpack.c.h.s8.bf16 %v2313
    %v2818 = vunpack.c.h.s8.bf16 %v2314
    %v2819 = vunpack.c.h.s8.bf16 %v2315
    %v2820 = vunpack.c.h.s8.bf16 %v2316
    %v2821 = vunpack.c.h.s8.bf16 %v2317
    %v2822 = vunpack.c.h.s8.bf16 %v2318
    %v2823 = vunpack.c.h.s8.bf16 %v2319
    %v2824 = vunpack.c.l.s8.bf16 %v2320
    %v2825 = vunpack.c.l.s8.bf16 %v2321
    %v2826 = vunpack.c.l.s8.bf16 %v2322
    %v2827 = vunpack.c.l.s8.bf16 %v2323
    %v2828 = vunpack.c.l.s8.bf16 %v2324
    %v2829 = vunpack.c.l.s8.bf16 %v2325
    %v2830 = vunpack.c.l.s8.bf16 %v2326
    %v2831 = vunpack.c.l.s8.bf16 %v2327
    %v2832 = vunpack.c.h.s8.bf16 %v2320
    %v2833 = vunpack.c.h.s8.bf16 %v2321
    %v2834 = vunpack.c.h.s8.bf16 %v2322
    %v2835 = vunpack.c.h.s8.bf16 %v2323
    %v2836 = vunpack.c.h.s8.bf16 %v2324
    %v2837 = vunpack.c.h.s8.bf16 %v2325
    %v2838 = vunpack.c.h.s8.bf16 %v2326
    %v2839 = vunpack.c.h.s8.bf16 %v2327
    %2840 = vmatprep.subr.bf16.mxu0 %v2329
    %2841 = vmatpush1.bf16.msra.mxu0 %v2328
    %2842 = vmatprep.subr.bf16.mxu0 %v2337
    %2843 = vmatpush1.bf16.msra.mxu0 %v2336
    %2844 = vmatprep.subr.bf16.mxu0 %v2345
    %2845 = vmatpush1.bf16.msra.mxu0 %v2344
    %2846 = vmatprep.subr.bf16.mxu0 %v2353
    %2847 = vmatpush1.bf16.msra.mxu0 %v2352
    %2848 = vmatprep.subr.bf16.mxu0 %v2361
    %2849 = vmatpush1.bf16.msra.mxu0 %v2360
    %2850 = vmatprep.subr.bf16.mxu0 %v2369
    %2851 = vmatpush1.bf16.msra.mxu0 %v2368
    %2852 = vmatprep.subr.bf16.mxu0 %v2377
    %2853 = vmatpush1.bf16.msra.mxu0 %v2376
    %2854 = vmatprep.subr.bf16.mxu0 %v2385
    %2855 = vmatpush1.bf16.msra.mxu0 %v2384
    %2856 = vmatprep.subr.bf16.mxu0 %v2393
    %2857 = vmatpush1.bf16.msra.mxu0 %v2392
    %2858 = vmatprep.subr.bf16.mxu0 %v2401
    %2859 = vmatpush1.bf16.msra.mxu0 %v2400
    %2860 = vmatprep.subr.bf16.mxu0 %v2409
    %2861 = vmatpush1.bf16.msra.mxu0 %v2408
    %2862 = vmatprep.subr.bf16.mxu0 %v2417
    %2863 = vmatpush1.bf16.msra.mxu0 %v2416
    %2864 = vmatprep.subr.bf16.mxu0 %v2425
    %2865 = vmatpush1.bf16.msra.mxu0 %v2424
    %2866 = vmatprep.subr.bf16.mxu0 %v2433
    %2867 = vmatpush1.bf16.msra.mxu0 %v2432
    %2868 = vmatprep.subr.bf16.mxu0 %v2441
    %2869 = vmatpush1.bf16.msra.mxu0 %v2440
    %2870 = vmatprep.subr.bf16.mxu0 %v2449
    %2871 = vmatpush1.bf16.msra.mxu0 %v2448
    %2872 = vmatprep.mubr.bf16.mxu0 %v2065
    %2873 = vmatmul.mubr.bf16.gmra.mrb[0].mxu0 %v2064
    %v2874 = vpop.f32.mrb[0].mxu0
    %v2875 = vadd.f32 0.0, %v2874
    %v2876 = vpop.f32.mrb[0].mxu0
    %v2877 = vadd.f32 0.0, %v2876
    %v2878 = vpop.f32.mrb[0].mxu0
    %v2879 = vpop.f32.mrb[0].mxu0
    %2880 = vdwg.mxu0
    %2881 = vmatprep.subr.bf16.mxu0 %v2457
    %2882 = vmatpush1.bf16.msra.mxu0 %v2456
    %2883 = vmatprep.subr.bf16.mxu0 %v2465
    %2884 = vmatpush1.bf16.msra.mxu0 %v2464
    %2885 = vmatprep.subr.bf16.mxu0 %v2473
    %2886 = vmatpush1.bf16.msra.mxu0 %v2472
    %2887 = vmatprep.subr.bf16.mxu0 %v2481
    %2888 = vmatpush1.bf16.msra.mxu0 %v2480
    %2889 = vmatprep.subr.bf16.mxu0 %v2489
    %2890 = vmatpush1.bf16.msra.mxu0 %v2488
    %2891 = vmatprep.subr.bf16.mxu0 %v2497
    %2892 = vmatpush1.bf16.msra.mxu0 %v2496
    %2893 = vmatprep.subr.bf16.mxu0 %v2505
    %2894 = vmatpush1.bf16.msra.mxu0 %v2504
    %2895 = vmatprep.subr.bf16.mxu0 %v2513
    %2896 = vmatpush1.bf16.msra.mxu0 %v2512
    %2897 = vmatprep.subr.bf16.mxu0 %v2521
    %2898 = vmatpush1.bf16.msra.mxu0 %v2520
    %2899 = vmatprep.subr.bf16.mxu0 %v2529
    %2900 = vmatpush1.bf16.msra.mxu0 %v2528
    %2901 = vmatprep.subr.bf16.mxu0 %v2537
    %2902 = vmatpush1.bf16.msra.mxu0 %v2536
    %2903 = vmatprep.subr.bf16.mxu0 %v2545
    %2904 = vmatpush1.bf16.msra.mxu0 %v2544
    %2905 = vmatprep.subr.bf16.mxu0 %v2553
    %2906 = vmatpush1.bf16.msra.mxu0 %v2552
    %2907 = vmatprep.subr.bf16.mxu0 %v2561
    %2908 = vmatpush1.bf16.msra.mxu0 %v2560
    %2909 = vmatprep.subr.bf16.mxu0 %v2569
    %2910 = vmatpush1.bf16.msra.mxu0 %v2568
    %2911 = vmatprep.subr.bf16.mxu0 %v2577
    %2912 = vmatpush1.bf16.msra.mxu0 %v2576
    %2913 = vmatprep.mubr.bf16.mxu0 %v2067
    %2914 = vmatmul.mubr.bf16.gmra.mrb[0].mxu0 %v2066
    %v2915 = vpop.f32.mrb[0].mxu0
    %v2916 = vadd.f32 %v2875, %v2915
    %v2917 = vpop.f32.mrb[0].mxu0
    %v2918 = vadd.f32 %v2877, %v2917
    %v2919 = vpop.f32.mrb[0].mxu0
    %v2920 = vpop.f32.mrb[0].mxu0
    %2921 = vdwg.mxu0
    %2922 = vmatprep.subr.bf16.mxu0 %v2585
    %2923 = vmatpush1.bf16.msra.mxu0 %v2584
    %2924 = vmatprep.subr.bf16.mxu0 %v2593
    %2925 = vmatpush1.bf16.msra.mxu0 %v2592
    %2926 = vmatprep.subr.bf16.mxu0 %v2601
    %2927 = vmatpush1.bf16.msra.mxu0 %v2600
    %2928 = vmatprep.subr.bf16.mxu0 %v2609
    %2929 = vmatpush1.bf16.msra.mxu0 %v2608
    %2930 = vmatprep.subr.bf16.mxu0 %v2617
    %2931 = vmatpush1.bf16.msra.mxu0 %v2616
    %2932 = vmatprep.subr.bf16.mxu0 %v2625
    %2933 = vmatpush1.bf16.msra.mxu0 %v2624
    %2934 = vmatprep.subr.bf16.mxu0 %v2633
    %2935 = vmatpush1.bf16.msra.mxu0 %v2632
    %2936 = vmatprep.subr.bf16.mxu0 %v2641
    %2937 = vmatpush1.bf16.msra.mxu0 %v2640
    %2938 = vmatprep.subr.bf16.mxu0 %v2649
    %2939 = vmatpush1.bf16.msra.mxu0 %v2648
    %2940 = vmatprep.subr.bf16.mxu0 %v2657
    %2941 = vmatpush1.bf16.msra.mxu0 %v2656
    %2942 = vmatprep.subr.bf16.mxu0 %v2665
    %2943 = vmatpush1.bf16.msra.mxu0 %v2664
    %2944 = vmatprep.subr.bf16.mxu0 %v2673
    %2945 = vmatpush1.bf16.msra.mxu0 %v2672
    %2946 = vmatprep.subr.bf16.mxu0 %v2681
    %2947 = vmatpush1.bf16.msra.mxu0 %v2680
    %2948 = vmatprep.subr.bf16.mxu0 %v2689
    %2949 = vmatpush1.bf16.msra.mxu0 %v2688
    %2950 = vmatprep.subr.bf16.mxu0 %v2697
    %2951 = vmatpush1.bf16.msra.mxu0 %v2696
    %2952 = vmatprep.subr.bf16.mxu0 %v2705
    %2953 = vmatpush1.bf16.msra.mxu0 %v2704
    %2954 = vmatprep.mubr.bf16.mxu0 %v2069
    %2955 = vmatmul.mubr.bf16.gmra.mrb[0].mxu0 %v2068
    %v2956 = vpop.f32.mrb[0].mxu0
    %v2957 = vadd.f32 %v2916, %v2956
    %v2958 = vpop.f32.mrb[0].mxu0
    %v2959 = vadd.f32 %v2918, %v2958
    %v2960 = vpop.f32.mrb[0].mxu0
    %v2961 = vpop.f32.mrb[0].mxu0
    %2962 = vdwg.mxu0
    %2963 = vmatprep.subr.bf16.mxu0 %v2713
    %2964 = vmatpush1.bf16.msra.mxu0 %v2712
    %2965 = vmatprep.subr.bf16.mxu0 %v2721
    %2966 = vmatpush1.bf16.msra.mxu0 %v2720
    %2967 = vmatprep.subr.bf16.mxu0 %v2729
    %2968 = vmatpush1.bf16.msra.mxu0 %v2728
    %2969 = vmatprep.subr.bf16.mxu0 %v2737
    %2970 = vmatpush1.bf16.msra.mxu0 %v2736
    %2971 = vmatprep.subr.bf16.mxu0 %v2745
    %2972 = vmatpush1.bf16.msra.mxu0 %v2744
    %2973 = vmatprep.subr.bf16.mxu0 %v2753
    %2974 = vmatpush1.bf16.msra.mxu0 %v2752
    %2975 = vmatprep.subr.bf16.mxu0 %v2761
    %2976 = vmatpush1.bf16.msra.mxu0 %v2760
    %2977 = vmatprep.subr.bf16.mxu0 %v2769
    %2978 = vmatpush1.bf16.msra.mxu0 %v2768
    %2979 = vmatprep.subr.bf16.mxu0 %v2777
    %2980 = vmatpush1.bf16.msra.mxu0 %v2776
    %2981 = vmatprep.subr.bf16.mxu0 %v2785
    %2982 = vmatpush1.bf16.msra.mxu0 %v2784
    %2983 = vmatprep.subr.bf16.mxu0 %v2793
    %2984 = vmatpush1.bf16.msra.mxu0 %v2792
    %2985 = vmatprep.subr.bf16.mxu0 %v2801
    %2986 = vmatpush1.bf16.msra.mxu0 %v2800
    %2987 = vmatprep.subr.bf16.mxu0 %v2809
    %2988 = vmatpush1.bf16.msra.mxu0 %v2808
    %2989 = vmatprep.subr.bf16.mxu0 %v2817
    %2990 = vmatpush1.bf16.msra.mxu0 %v2816
    %2991 = vmatprep.subr.bf16.mxu0 %v2825
    %2992 = vmatpush1.bf16.msra.mxu0 %v2824
    %2993 = vmatprep.subr.bf16.mxu0 %v2833
    %2994 = vmatpush1.bf16.msra.mxu0 %v2832
    %2995 = vmatprep.mubr.bf16.mxu0 %v2071
    %2996 = vmatmul.mubr.bf16.gmra.mrb[0].mxu0 %v2070
    %v2997 = vpop.f32.mrb[0].mxu0
    %v2998 = vadd.f32 %v2957, %v2997
    %v2999 = vpop.f32.mrb[0].mxu0
    %v3000 = vadd.f32 %v2959, %v2999
    %v3001 = vpop.f32.mrb[0].mxu0
    %v3002 = vpop.f32.mrb[0].mxu0
    %3003 = vdwg.mxu0
    %3004 = vmatprep.subr.bf16.mxu0 %v2331
    %3005 = vmatpush1.bf16.msra.mxu0 %v2330
    %3006 = vmatprep.subr.bf16.mxu0 %v2339
    %3007 = vmatpush1.bf16.msra.mxu0 %v2338
    %3008 = vmatprep.subr.bf16.mxu0 %v2347
    %3009 = vmatpush1.bf16.msra.mxu0 %v2346
    %3010 = vmatprep.subr.bf16.mxu0 %v2355
    %3011 = vmatpush1.bf16.msra.mxu0 %v2354
    %3012 = vmatprep.subr.bf16.mxu0 %v2363
    %3013 = vmatpush1.bf16.msra.mxu0 %v2362
    %3014 = vmatprep.subr.bf16.mxu0 %v2371
    %3015 = vmatpush1.bf16.msra.mxu0 %v2370
    %3016 = vmatprep.subr.bf16.mxu0 %v2379
    %3017 = vmatpush1.bf16.msra.mxu0 %v2378
    %3018 = vmatprep.subr.bf16.mxu0 %v2387
    %3019 = vmatpush1.bf16.msra.mxu0 %v2386
    %3020 = vmatprep.subr.bf16.mxu0 %v2395
    %3021 = vmatpush1.bf16.msra.mxu0 %v2394
    %3022 = vmatprep.subr.bf16.mxu0 %v2403
    %3023 = vmatpush1.bf16.msra.mxu0 %v2402
    %3024 = vmatprep.subr.bf16.mxu0 %v2411
    %3025 = vmatpush1.bf16.msra.mxu0 %v2410
    %3026 = vmatprep.subr.bf16.mxu0 %v2419
    %3027 = vmatpush1.bf16.msra.mxu0 %v2418
    %3028 = vmatprep.subr.bf16.mxu0 %v2427
    %3029 = vmatpush1.bf16.msra.mxu0 %v2426
    %3030 = vmatprep.subr.bf16.mxu0 %v2435
    %3031 = vmatpush1.bf16.msra.mxu0 %v2434
    %3032 = vmatprep.subr.bf16.mxu0 %v2443
    %3033 = vmatpush1.bf16.msra.mxu0 %v2442
    %3034 = vmatprep.subr.bf16.mxu0 %v2451
    %3035 = vmatpush1.bf16.msra.mxu0 %v2450
    %3036 = vmatprep.mubr.bf16.mxu0 %v2065
    %3037 = vmatmul.mubr.bf16.gmra.mrb[0].mxu0 %v2064
    %v3038 = vpop.f32.mrb[0].mxu0
    %v3039 = vadd.f32 0.0, %v3038
    %v3040 = vpop.f32.mrb[0].mxu0
    %v3041 = vadd.f32 0.0, %v3040
    %v3042 = vpop.f32.mrb[0].mxu0
    %v3043 = vpop.f32.mrb[0].mxu0
    %3044 = vdwg.mxu0
    %3045 = vmatprep.subr.bf16.mxu0 %v2459
    %3046 = vmatpush1.bf16.msra.mxu0 %v2458
    %3047 = vmatprep.subr.bf16.mxu0 %v2467
    %3048 = vmatpush1.bf16.msra.mxu0 %v2466
    %3049 = vmatprep.subr.bf16.mxu0 %v2475
    %3050 = vmatpush1.bf16.msra.mxu0 %v2474
    %3051 = vmatprep.subr.bf16.mxu0 %v2483
    %3052 = vmatpush1.bf16.msra.mxu0 %v2482
    %3053 = vmatprep.subr.bf16.mxu0 %v2491
    %3054 = vmatpush1.bf16.msra.mxu0 %v2490
    %3055 = vmatprep.subr.bf16.mxu0 %v2499
    %3056 = vmatpush1.bf16.msra.mxu0 %v2498
    %3057 = vmatprep.subr.bf16.mxu0 %v2507
    %3058 = vmatpush1.bf16.msra.mxu0 %v2506
    %3059 = vmatprep.subr.bf16.mxu0 %v2515
    %3060 = vmatpush1.bf16.msra.mxu0 %v2514
    %3061 = vmatprep.subr.bf16.mxu0 %v2523
    %3062 = vmatpush1.bf16.msra.mxu0 %v2522
    %3063 = vmatprep.subr.bf16.mxu0 %v2531
    %3064 = vmatpush1.bf16.msra.mxu0 %v2530
    %3065 = vmatprep.subr.bf16.mxu0 %v2539
    %3066 = vmatpush1.bf16.msra.mxu0 %v2538
    %3067 = vmatprep.subr.bf16.mxu0 %v2547
    %3068 = vmatpush1.bf16.msra.mxu0 %v2546
    %3069 = vmatprep.subr.bf16.mxu0 %v2555
    %3070 = vmatpush1.bf16.msra.mxu0 %v2554
    %3071 = vmatprep.subr.bf16.mxu0 %v2563
    %3072 = vmatpush1.bf16.msra.mxu0 %v2562
    %3073 = vmatprep.subr.bf16.mxu0 %v2571
    %3074 = vmatpush1.bf16.msra.mxu0 %v2570
    %3075 = vmatprep.subr.bf16.mxu0 %v2579
    %3076 = vmatpush1.bf16.msra.mxu0 %v2578
    %3077 = vmatprep.mubr.bf16.mxu0 %v2067
    %3078 = vmatmul.mubr.bf16.gmra.mrb[0].mxu0 %v2066
    %v3079 = vpop.f32.mrb[0].mxu0
    %v3080 = vadd.f32 %v3039, %v3079
    %v3081 = vpop.f32.mrb[0].mxu0
    %v3082 = vadd.f32 %v3041, %v3081
    %v3083 = vpop.f32.mrb[0].mxu0
    %v3084 = vpop.f32.mrb[0].mxu0
    %3085 = vdwg.mxu0
    %3086 = vmatprep.subr.bf16.mxu0 %v2587
    %3087 = vmatpush1.bf16.msra.mxu0 %v2586
    %3088 = vmatprep.subr.bf16.mxu0 %v2595
    %3089 = vmatpush1.bf16.msra.mxu0 %v2594
    %3090 = vmatprep.subr.bf16.mxu0 %v2603
    %3091 = vmatpush1.bf16.msra.mxu0 %v2602
    %3092 = vmatprep.subr.bf16.mxu0 %v2611
    %3093 = vmatpush1.bf16.msra.mxu0 %v2610
    %3094 = vmatprep.subr.bf16.mxu0 %v2619
    %3095 = vmatpush1.bf16.msra.mxu0 %v2618
    %3096 = vmatprep.subr.bf16.mxu0 %v2627
    %3097 = vmatpush1.bf16.msra.mxu0 %v2626
    %3098 = vmatprep.subr.bf16.mxu0 %v2635
    %3099 = vmatpush1.bf16.msra.mxu0 %v2634
    %3100 = vmatprep.subr.bf16.mxu0 %v2643
    %3101 = vmatpush1.bf16.msra.mxu0 %v2642
    %3102 = vmatprep.subr.bf16.mxu0 %v2651
    %3103 = vmatpush1.bf16.msra.mxu0 %v2650
    %3104 = vmatprep.subr.bf16.mxu0 %v2659
    %3105 = vmatpush1.bf16.msra.mxu0 %v2658
    %3106 = vmatprep.subr.bf16.mxu0 %v2667
    %3107 = vmatpush1.bf16.msra.mxu0 %v2666
    %3108 = vmatprep.subr.bf16.mxu0 %v2675
    %3109 = vmatpush1.bf16.msra.mxu0 %v2674
    %3110 = vmatprep.subr.bf16.mxu0 %v2683
    %3111 = vmatpush1.bf16.msra.mxu0 %v2682
    %3112 = vmatprep.subr.bf16.mxu0 %v2691
    %3113 = vmatpush1.bf16.msra.mxu0 %v2690
    %3114 = vmatprep.subr.bf16.mxu0 %v2699
    %3115 = vmatpush1.bf16.msra.mxu0 %v2698
    %3116 = vmatprep.subr.bf16.mxu0 %v2707
    %3117 = vmatpush1.bf16.msra.mxu0 %v2706
    %3118 = vmatprep.mubr.bf16.mxu0 %v2069
    %3119 = vmatmul.mubr.bf16.gmra.mrb[0].mxu0 %v2068
    %v3120 = vpop.f32.mrb[0].mxu0
    %v3121 = vadd.f32 %v3080, %v3120
    %v3122 = vpop.f32.mrb[0].mxu0
    %v3123 = vadd.f32 %v3082, %v3122
    %v3124 = vpop.f32.mrb[0].mxu0
    %v3125 = vpop.f32.mrb[0].mxu0
    %3126 = vdwg.mxu0
    %3127 = vmatprep.subr.bf16.mxu0 %v2715
    %3128 = vmatpush1.bf16.msra.mxu0 %v2714
    %3129 = vmatprep.subr.bf16.mxu0 %v2723
    %3130 = vmatpush1.bf16.msra.mxu0 %v2722
    %3131 = vmatprep.subr.bf16.mxu0 %v2731
    %3132 = vmatpush1.bf16.msra.mxu0 %v2730
    %3133 = vmatprep.subr.bf16.mxu0 %v2739
    %3134 = vmatpush1.bf16.msra.mxu0 %v2738
    %3135 = vmatprep.subr.bf16.mxu0 %v2747
    %3136 = vmatpush1.bf16.msra.mxu0 %v2746
    %3137 = vmatprep.subr.bf16.mxu0 %v2755
    %3138 = vmatpush1.bf16.msra.mxu0 %v2754
    %3139 = vmatprep.subr.bf16.mxu0 %v2763
    %3140 = vmatpush1.bf16.msra.mxu0 %v2762
    %3141 = vmatprep.subr.bf16.mxu0 %v2771
    %3142 = vmatpush1.bf16.msra.mxu0 %v2770
    %3143 = vmatprep.subr.bf16.mxu0 %v2779
    %3144 = vmatpush1.bf16.msra.mxu0 %v2778
    %3145 = vmatprep.subr.bf16.mxu0 %v2787
    %3146 = vmatpush1.bf16.msra.mxu0 %v2786
    %3147 = vmatprep.subr.bf16.mxu0 %v2795
    %3148 = vmatpush1.bf16.msra.mxu0 %v2794
    %3149 = vmatprep.subr.bf16.mxu0 %v2803
    %3150 = vmatpush1.bf16.msra.mxu0 %v2802
    %3151 = vmatprep.subr.bf16.mxu0 %v2811
    %3152 = vmatpush1.bf16.msra.mxu0 %v2810
    %3153 = vmatprep.subr.bf16.mxu0 %v2819
    %3154 = vmatpush1.bf16.msra.mxu0 %v2818
    %3155 = vmatprep.subr.bf16.mxu0 %v2827
    %3156 = vmatpush1.bf16.msra.mxu0 %v2826
    %3157 = vmatprep.subr.bf16.mxu0 %v2835
    %3158 = vmatpush1.bf16.msra.mxu0 %v2834
    %3159 = vmatprep.mubr.bf16.mxu0 %v2071
    %3160 = vmatmul.mubr.bf16.gmra.mrb[0].mxu0 %v2070
    %v3161 = vpop.f32.mrb[0].mxu0
    %v3162 = vadd.f32 %v3121, %v3161
    %v3163 = vpop.f32.mrb[0].mxu0
    %v3164 = vadd.f32 %v3123, %v3163
    %v3165 = vpop.f32.mrb[0].mxu0
    %v3166 = vpop.f32.mrb[0].mxu0
    %3167 = vdwg.mxu0
    %3168 = vmatprep.subr.bf16.mxu0 %v2333
    %3169 = vmatpush1.bf16.msra.mxu0 %v2332
    %3170 = vmatprep.subr.bf16.mxu0 %v2341
    %3171 = vmatpush1.bf16.msra.mxu0 %v2340
    %3172 = vmatprep.subr.bf16.mxu0 %v2349
    %3173 = vmatpush1.bf16.msra.mxu0 %v2348
    %3174 = vmatprep.subr.bf16.mxu0 %v2357
    %3175 = vmatpush1.bf16.msra.mxu0 %v2356
    %3176 = vmatprep.subr.bf16.mxu0 %v2365
    %3177 = vmatpush1.bf16.msra.mxu0 %v2364
    %3178 = vmatprep.subr.bf16.mxu0 %v2373
    %3179 = vmatpush1.bf16.msra.mxu0 %v2372
    %3180 = vmatprep.subr.bf16.mxu0 %v2381
    %3181 = vmatpush1.bf16.msra.mxu0 %v2380
    %3182 = vmatprep.subr.bf16.mxu0 %v2389
    %3183 = vmatpush1.bf16.msra.mxu0 %v2388
    %3184 = vmatprep.subr.bf16.mxu0 %v2397
    %3185 = vmatpush1.bf16.msra.mxu0 %v2396
    %3186 = vmatprep.subr.bf16.mxu0 %v2405
    %3187 = vmatpush1.bf16.msra.mxu0 %v2404
    %3188 = vmatprep.subr.bf16.mxu0 %v2413
    %3189 = vmatpush1.bf16.msra.mxu0 %v2412
    %3190 = vmatprep.subr.bf16.mxu0 %v2421
    %3191 = vmatpush1.bf16.msra.mxu0 %v2420
    %3192 = vmatprep.subr.bf16.mxu0 %v2429
    %3193 = vmatpush1.bf16.msra.mxu0 %v2428
    %3194 = vmatprep.subr.bf16.mxu0 %v2437
    %3195 = vmatpush1.bf16.msra.mxu0 %v2436
    %3196 = vmatprep.subr.bf16.mxu0 %v2445
    %3197 = vmatpush1.bf16.msra.mxu0 %v2444
    %3198 = vmatprep.subr.bf16.mxu0 %v2453
    %3199 = vmatpush1.bf16.msra.mxu0 %v2452
    %3200 = vmatprep.mubr.bf16.mxu0 %v2065
    %3201 = vmatmul.mubr.bf16.gmra.mrb[0].mxu0 %v2064
    %v3202 = vpop.f32.mrb[0].mxu0
    %v3203 = vadd.f32 0.0, %v3202
    %v3204 = vpop.f32.mrb[0].mxu0
    %v3205 = vadd.f32 0.0, %v3204
    %v3206 = vpop.f32.mrb[0].mxu0
    %v3207 = vpop.f32.mrb[0].mxu0
    %3208 = vdwg.mxu0
    %3209 = vmatprep.subr.bf16.mxu0 %v2461
    %3210 = vmatpush1.bf16.msra.mxu0 %v2460
    %3211 = vmatprep.subr.bf16.mxu0 %v2469
    %3212 = vmatpush1.bf16.msra.mxu0 %v2468
    %3213 = vmatprep.subr.bf16.mxu0 %v2477
    %3214 = vmatpush1.bf16.msra.mxu0 %v2476
    %3215 = vmatprep.subr.bf16.mxu0 %v2485
    %3216 = vmatpush1.bf16.msra.mxu0 %v2484
    %3217 = vmatprep.subr.bf16.mxu0 %v2493
    %3218 = vmatpush1.bf16.msra.mxu0 %v2492
    %3219 = vmatprep.subr.bf16.mxu0 %v2501
    %3220 = vmatpush1.bf16.msra.mxu0 %v2500
    %3221 = vmatprep.subr.bf16.mxu0 %v2509
    %3222 = vmatpush1.bf16.msra.mxu0 %v2508
    %3223 = vmatprep.subr.bf16.mxu0 %v2517
    %3224 = vmatpush1.bf16.msra.mxu0 %v2516
    %3225 = vmatprep.subr.bf16.mxu0 %v2525
    %3226 = vmatpush1.bf16.msra.mxu0 %v2524
    %3227 = vmatprep.subr.bf16.mxu0 %v2533
    %3228 = vmatpush1.bf16.msra.mxu0 %v2532
    %3229 = vmatprep.subr.bf16.mxu0 %v2541
    %3230 = vmatpush1.bf16.msra.mxu0 %v2540
    %3231 = vmatprep.subr.bf16.mxu0 %v2549
    %3232 = vmatpush1.bf16.msra.mxu0 %v2548
    %3233 = vmatprep.subr.bf16.mxu0 %v2557
    %3234 = vmatpush1.bf16.msra.mxu0 %v2556
    %3235 = vmatprep.subr.bf16.mxu0 %v2565
    %3236 = vmatpush1.bf16.msra.mxu0 %v2564
    %3237 = vmatprep.subr.bf16.mxu0 %v2573
    %3238 = vmatpush1.bf16.msra.mxu0 %v2572
    %3239 = vmatprep.subr.bf16.mxu0 %v2581
    %3240 = vmatpush1.bf16.msra.mxu0 %v2580
    %3241 = vmatprep.mubr.bf16.mxu0 %v2067
    %3242 = vmatmul.mubr.bf16.gmra.mrb[0].mxu0 %v2066
    %v3243 = vpop.f32.mrb[0].mxu0
    %v3244 = vadd.f32 %v3203, %v3243
    %v3245 = vpop.f32.mrb[0].mxu0
    %v3246 = vadd.f32 %v3205, %v3245
    %v3247 = vpop.f32.mrb[0].mxu0
    %v3248 = vpop.f32.mrb[0].mxu0
    %3249 = vdwg.mxu0
    %3250 = vmatprep.subr.bf16.mxu0 %v2589
    %3251 = vmatpush1.bf16.msra.mxu0 %v2588
    %3252 = vmatprep.subr.bf16.mxu0 %v2597
    %3253 = vmatpush1.bf16.msra.mxu0 %v2596
    %3254 = vmatprep.subr.bf16.mxu0 %v2605
    %3255 = vmatpush1.bf16.msra.mxu0 %v2604
    %3256 = vmatprep.subr.bf16.mxu0 %v2613
    %3257 = vmatpush1.bf16.msra.mxu0 %v2612
    %3258 = vmatprep.subr.bf16.mxu0 %v2621
    %3259 = vmatpush1.bf16.msra.mxu0 %v2620
    %3260 = vmatprep.subr.bf16.mxu0 %v2629
    %3261 = vmatpush1.bf16.msra.mxu0 %v2628
    %3262 = vmatprep.subr.bf16.mxu0 %v2637
    %3263 = vmatpush1.bf16.msra.mxu0 %v2636
    %3264 = vmatprep.subr.bf16.mxu0 %v2645
    %3265 = vmatpush1.bf16.msra.mxu0 %v2644
    %3266 = vmatprep.subr.bf16.mxu0 %v2653
    %3267 = vmatpush1.bf16.msra.mxu0 %v2652
    %3268 = vmatprep.subr.bf16.mxu0 %v2661
    %3269 = vmatpush1.bf16.msra.mxu0 %v2660
    %3270 = vmatprep.subr.bf16.mxu0 %v2669
    %3271 = vmatpush1.bf16.msra.mxu0 %v2668
    %3272 = vmatprep.subr.bf16.mxu0 %v2677
    %3273 = vmatpush1.bf16.msra.mxu0 %v2676
    %3274 = vmatprep.subr.bf16.mxu0 %v2685
    %3275 = vmatpush1.bf16.msra.mxu0 %v2684
    %3276 = vmatprep.subr.bf16.mxu0 %v2693
    %3277 = vmatpush1.bf16.msra.mxu0 %v2692
    %3278 = vmatprep.subr.bf16.mxu0 %v2701
    %3279 = vmatpush1.bf16.msra.mxu0 %v2700
    %3280 = vmatprep.subr.bf16.mxu0 %v2709
    %3281 = vmatpush1.bf16.msra.mxu0 %v2708
    %3282 = vmatprep.mubr.bf16.mxu0 %v2069
    %3283 = vmatmul.mubr.bf16.gmra.mrb[0].mxu0 %v2068
    %v3284 = vpop.f32.mrb[0].mxu0
    %v3285 = vadd.f32 %v3244, %v3284
    %v3286 = vpop.f32.mrb[0].mxu0
    %v3287 = vadd.f32 %v3246, %v3286
    %v3288 = vpop.f32.mrb[0].mxu0
    %v3289 = vpop.f32.mrb[0].mxu0
    %3290 = vdwg.mxu0
    %3291 = vmatprep.subr.bf16.mxu0 %v2717
    %3292 = vmatpush1.bf16.msra.mxu0 %v2716
    %3293 = vmatprep.subr.bf16.mxu0 %v2725
    %3294 = vmatpush1.bf16.msra.mxu0 %v2724
    %3295 = vmatprep.subr.bf16.mxu0 %v2733
    %3296 = vmatpush1.bf16.msra.mxu0 %v2732
    %3297 = vmatprep.subr.bf16.mxu0 %v2741
    %3298 = vmatpush1.bf16.msra.mxu0 %v2740
    %3299 = vmatprep.subr.bf16.mxu0 %v2749
    %3300 = vmatpush1.bf16.msra.mxu0 %v2748
    %3301 = vmatprep.subr.bf16.mxu0 %v2757
    %3302 = vmatpush1.bf16.msra.mxu0 %v2756
    %3303 = vmatprep.subr.bf16.mxu0 %v2765
    %3304 = vmatpush1.bf16.msra.mxu0 %v2764
    %3305 = vmatprep.subr.bf16.mxu0 %v2773
    %3306 = vmatpush1.bf16.msra.mxu0 %v2772
    %3307 = vmatprep.subr.bf16.mxu0 %v2781
    %3308 = vmatpush1.bf16.msra.mxu0 %v2780
    %3309 = vmatprep.subr.bf16.mxu0 %v2789
    %3310 = vmatpush1.bf16.msra.mxu0 %v2788
    %3311 = vmatprep.subr.bf16.mxu0 %v2797
    %3312 = vmatpush1.bf16.msra.mxu0 %v2796
    %3313 = vmatprep.subr.bf16.mxu0 %v2805
    %3314 = vmatpush1.bf16.msra.mxu0 %v2804
    %3315 = vmatprep.subr.bf16.mxu0 %v2813
    %3316 = vmatpush1.bf16.msra.mxu0 %v2812
    %3317 = vmatprep.subr.bf16.mxu0 %v2821
    %3318 = vmatpush1.bf16.msra.mxu0 %v2820
    %3319 = vmatprep.subr.bf16.mxu0 %v2829
    %3320 = vmatpush1.bf16.msra.mxu0 %v2828
    %3321 = vmatprep.subr.bf16.mxu0 %v2837
    %3322 = vmatpush1.bf16.msra.mxu0 %v2836
    %3323 = vmatprep.mubr.bf16.mxu0 %v2071
    %3324 = vmatmul.mubr.bf16.gmra.mrb[0].mxu0 %v2070
    %v3325 = vpop.f32.mrb[0].mxu0
    %v3326 = vadd.f32 %v3285, %v3325
    %v3327 = vpop.f32.mrb[0].mxu0
    %v3328 = vadd.f32 %v3287, %v3327
    %v3329 = vpop.f32.mrb[0].mxu0
    %v3330 = vpop.f32.mrb[0].mxu0
    %3331 = vdwg.mxu0
    %3332 = vmatprep.subr.bf16.mxu0 %v2335
    %3333 = vmatpush1.bf16.msra.mxu0 %v2334
    %3334 = vmatprep.subr.bf16.mxu0 %v2343
    %3335 = vmatpush1.bf16.msra.mxu0 %v2342
    %3336 = vmatprep.subr.bf16.mxu0 %v2351
    %3337 = vmatpush1.bf16.msra.mxu0 %v2350
    %3338 = vmatprep.subr.bf16.mxu0 %v2359
    %3339 = vmatpush1.bf16.msra.mxu0 %v2358
    %3340 = vmatprep.subr.bf16.mxu0 %v2367
    %3341 = vmatpush1.bf16.msra.mxu0 %v2366
    %3342 = vmatprep.subr.bf16.mxu0 %v2375
    %3343 = vmatpush1.bf16.msra.mxu0 %v2374
    %3344 = vmatprep.subr.bf16.mxu0 %v2383
    %3345 = vmatpush1.bf16.msra.mxu0 %v2382
    %3346 = vmatprep.subr.bf16.mxu0 %v2391
    %3347 = vmatpush1.bf16.msra.mxu0 %v2390
    %3348 = vmatprep.subr.bf16.mxu0 %v2399
    %3349 = vmatpush1.bf16.msra.mxu0 %v2398
    %3350 = vmatprep.subr.bf16.mxu0 %v2407
    %3351 = vmatpush1.bf16.msra.mxu0 %v2406
    %3352 = vmatprep.subr.bf16.mxu0 %v2415
    %3353 = vmatpush1.bf16.msra.mxu0 %v2414
    %3354 = vmatprep.subr.bf16.mxu0 %v2423
    %3355 = vmatpush1.bf16.msra.mxu0 %v2422
    %3356 = vmatprep.subr.bf16.mxu0 %v2431
    %3357 = vmatpush1.bf16.msra.mxu0 %v2430
    %3358 = vmatprep.subr.bf16.mxu0 %v2439
    %3359 = vmatpush1.bf16.msra.mxu0 %v2438
    %3360 = vmatprep.subr.bf16.mxu0 %v2447
    %3361 = vmatpush1.bf16.msra.mxu0 %v2446
    %3362 = vmatprep.subr.bf16.mxu0 %v2455
    %3363 = vmatpush1.bf16.msra.mxu0 %v2454
    %3364 = vmatprep.mubr.bf16.mxu0 %v2065
    %3365 = vmatmul.mubr.bf16.gmra.mrb[0].mxu0 %v2064
    %v3366 = vpop.f32.mrb[0].mxu0
    %v3367 = vadd.f32 0.0, %v3366
    %v3368 = vpop.f32.mrb[0].mxu0
    %v3369 = vadd.f32 0.0, %v3368
    %v3370 = vpop.f32.mrb[0].mxu0
    %v3371 = vpop.f32.mrb[0].mxu0
    %3372 = vdwg.mxu0
    %3373 = vmatprep.subr.bf16.mxu0 %v2463
    %3374 = vmatpush1.bf16.msra.mxu0 %v2462
    %3375 = vmatprep.subr.bf16.mxu0 %v2471
    %3376 = vmatpush1.bf16.msra.mxu0 %v2470
    %3377 = vmatprep.subr.bf16.mxu0 %v2479
    %3378 = vmatpush1.bf16.msra.mxu0 %v2478
    %3379 = vmatprep.subr.bf16.mxu0 %v2487
    %3380 = vmatpush1.bf16.msra.mxu0 %v2486
    %3381 = vmatprep.subr.bf16.mxu0 %v2495
    %3382 = vmatpush1.bf16.msra.mxu0 %v2494
    %3383 = vmatprep.subr.bf16.mxu0 %v2503
    %3384 = vmatpush1.bf16.msra.mxu0 %v2502
    %3385 = vmatprep.subr.bf16.mxu0 %v2511
    %3386 = vmatpush1.bf16.msra.mxu0 %v2510
    %3387 = vmatprep.subr.bf16.mxu0 %v2519
    %3388 = vmatpush1.bf16.msra.mxu0 %v2518
    %3389 = vmatprep.subr.bf16.mxu0 %v2527
    %3390 = vmatpush1.bf16.msra.mxu0 %v2526
    %3391 = vmatprep.subr.bf16.mxu0 %v2535
    %3392 = vmatpush1.bf16.msra.mxu0 %v2534
    %3393 = vmatprep.subr.bf16.mxu0 %v2543
    %3394 = vmatpush1.bf16.msra.mxu0 %v2542
    %3395 = vmatprep.subr.bf16.mxu0 %v2551
    %3396 = vmatpush1.bf16.msra.mxu0 %v2550
    %3397 = vmatprep.subr.bf16.mxu0 %v2559
    %3398 = vmatpush1.bf16.msra.mxu0 %v2558
    %3399 = vmatprep.subr.bf16.mxu0 %v2567
    %3400 = vmatpush1.bf16.msra.mxu0 %v2566
    %3401 = vmatprep.subr.bf16.mxu0 %v2575
    %3402 = vmatpush1.bf16.msra.mxu0 %v2574
    %3403 = vmatprep.subr.bf16.mxu0 %v2583
    %3404 = vmatpush1.bf16.msra.mxu0 %v2582
    %3405 = vmatprep.mubr.bf16.mxu0 %v2067
    %3406 = vmatmul.mubr.bf16.gmra.mrb[0].mxu0 %v2066
    %v3407 = vpop.f32.mrb[0].mxu0
    %v3408 = vadd.f32 %v3367, %v3407
    %v3409 = vpop.f32.mrb[0].mxu0
    %v3410 = vadd.f32 %v3369, %v3409
    %v3411 = vpop.f32.mrb[0].mxu0
    %v3412 = vpop.f32.mrb[0].mxu0
    %3413 = vdwg.mxu0
    %3414 = vmatprep.subr.bf16.mxu0 %v2591
    %3415 = vmatpush1.bf16.msra.mxu0 %v2590
    %3416 = vmatprep.subr.bf16.mxu0 %v2599
    %3417 = vmatpush1.bf16.msra.mxu0 %v2598
    %3418 = vmatprep.subr.bf16.mxu0 %v2607
    %3419 = vmatpush1.bf16.msra.mxu0 %v2606
    %3420 = vmatprep.subr.bf16.mxu0 %v2615
    %3421 = vmatpush1.bf16.msra.mxu0 %v2614
    %3422 = vmatprep.subr.bf16.mxu0 %v2623
    %3423 = vmatpush1.bf16.msra.mxu0 %v2622
    %3424 = vmatprep.subr.bf16.mxu0 %v2631
    %3425 = vmatpush1.bf16.msra.mxu0 %v2630
    %3426 = vmatprep.subr.bf16.mxu0 %v2639
    %3427 = vmatpush1.bf16.msra.mxu0 %v2638
    %3428 = vmatprep.subr.bf16.mxu0 %v2647
    %3429 = vmatpush1.bf16.msra.mxu0 %v2646
    %3430 = vmatprep.subr.bf16.mxu0 %v2655
    %3431 = vmatpush1.bf16.msra.mxu0 %v2654
    %3432 = vmatprep.subr.bf16.mxu0 %v2663
    %3433 = vmatpush1.bf16.msra.mxu0 %v2662
    %3434 = vmatprep.subr.bf16.mxu0 %v2671
    %3435 = vmatpush1.bf16.msra.mxu0 %v2670
    %3436 = vmatprep.subr.bf16.mxu0 %v2679
    %3437 = vmatpush1.bf16.msra.mxu0 %v2678
    %3438 = vmatprep.subr.bf16.mxu0 %v2687
    %3439 = vmatpush1.bf16.msra.mxu0 %v2686
    %3440 = vmatprep.subr.bf16.mxu0 %v2695
    %3441 = vmatpush1.bf16.msra.mxu0 %v2694
    %3442 = vmatprep.subr.bf16.mxu0 %v2703
    %3443 = vmatpush1.bf16.msra.mxu0 %v2702
    %3444 = vmatprep.subr.bf16.mxu0 %v2711
    %3445 = vmatpush1.bf16.msra.mxu0 %v2710
    %3446 = vmatprep.mubr.bf16.mxu0 %v2069
    %3447 = vmatmul.mubr.bf16.gmra.mrb[0].mxu0 %v2068
    %v3448 = vpop.f32.mrb[0].mxu0
    %v3449 = vadd.f32 %v3408, %v3448
    %v3450 = vpop.f32.mrb[0].mxu0
    %v3451 = vadd.f32 %v3410, %v3450
    %v3452 = vpop.f32.mrb[0].mxu0
    %v3453 = vpop.f32.mrb[0].mxu0
    %3454 = vdwg.mxu0
    %3455 = vmatprep.subr.bf16.mxu0 %v2719
    %3456 = vmatpush1.bf16.msra.mxu0 %v2718
    %3457 = vmatprep.subr.bf16.mxu0 %v2727
    %3458 = vmatpush1.bf16.msra.mxu0 %v2726
    %3459 = vmatprep.subr.bf16.mxu0 %v2735
    %3460 = vmatpush1.bf16.msra.mxu0 %v2734
    %3461 = vmatprep.subr.bf16.mxu0 %v2743
    %3462 = vmatpush1.bf16.msra.mxu0 %v2742
    %3463 = vmatprep.subr.bf16.mxu0 %v2751
    %3464 = vmatpush1.bf16.msra.mxu0 %v2750
    %3465 = vmatprep.subr.bf16.mxu0 %v2759
    %3466 = vmatpush1.bf16.msra.mxu0 %v2758
    %3467 = vmatprep.subr.bf16.mxu0 %v2767
    %3468 = vmatpush1.bf16.msra.mxu0 %v2766
    %3469 = vmatprep.subr.bf16.mxu0 %v2775
    %3470 = vmatpush1.bf16.msra.mxu0 %v2774
    %3471 = vmatprep.subr.bf16.mxu0 %v2783
    %3472 = vmatpush1.bf16.msra.mxu0 %v2782
    %3473 = vmatprep.subr.bf16.mxu0 %v2791
    %3474 = vmatpush1.bf16.msra.mxu0 %v2790
    %3475 = vmatprep.subr.bf16.mxu0 %v2799
    %3476 = vmatpush1.bf16.msra.mxu0 %v2798
    %3477 = vmatprep.subr.bf16.mxu0 %v2807
    %3478 = vmatpush1.bf16.msra.mxu0 %v2806
    %3479 = vmatprep.subr.bf16.mxu0 %v2815
    %3480 = vmatpush1.bf16.msra.mxu0 %v2814
    %3481 = vmatprep.subr.bf16.mxu0 %v2823
    %3482 = vmatpush1.bf16.msra.mxu0 %v2822
    %3483 = vmatprep.subr.bf16.mxu0 %v2831
    %3484 = vmatpush1.bf16.msra.mxu0 %v2830
    %3485 = vmatprep.subr.bf16.mxu0 %v2839
    %3486 = vmatpush1.bf16.msra.mxu0 %v2838
    %3487 = vmatprep.mubr.bf16.mxu0 %v2071
    %3488 = vmatmul.mubr.bf16.gmra.mrb[0].mxu0 %v2070
    %v3489 = vpop.f32.mrb[0].mxu0
    %v3490 = vadd.f32 %v3449, %v3489
    %v3491 = vpop.f32.mrb[0].mxu0
    %v3492 = vadd.f32 %v3451, %v3491
    %v3493 = vpop.f32.mrb[0].mxu0
    %v3494 = vpop.f32.mrb[0].mxu0
    %3495 = vdwg.mxu0
    %v3496 = vld [vmem:[%s12] sm:$0xff]
    %v3498 = vlaneseq
    %v3499 = vshrl.u32 %v3498, 7
    %v3500 = vsub.s32 0, %v3499
    %v3501 = vrot.slane %v3496, %v3500
    %v3502 = vlaneseq
    %v3503 = vshrl.u32 %v3502, 7
    %v3504 = vsub.s32 1, %v3503
    %v3505 = vrot.slane %v3496, %v3504
    %v3506 = vlaneseq
    %v3507 = vshrl.u32 %v3506, 7
    %v3508 = vsub.s32 2, %v3507
    %v3509 = vrot.slane %v3496, %v3508
    %v3510 = vlaneseq
    %v3511 = vshrl.u32 %v3510, 7
    %v3512 = vsub.s32 3, %v3511
    %v3513 = vrot.slane %v3496, %v3512
    %v3514 = vlaneseq
    %v3515 = vshrl.u32 %v3514, 7
    %v3516 = vsub.s32 4, %v3515
    %v3517 = vrot.slane %v3496, %v3516
    %v3518 = vlaneseq
    %v3519 = vshrl.u32 %v3518, 7
    %v3520 = vsub.s32 5, %v3519
    %v3521 = vrot.slane %v3496, %v3520
    %v3522 = vlaneseq
    %v3523 = vshrl.u32 %v3522, 7
    %v3524 = vsub.s32 6, %v3523
    %v3525 = vrot.slane %v3496, %v3524
    %v3526 = vlaneseq
    %v3527 = vshrl.u32 %v3526, 7
    %v3528 = vsub.s32 7, %v3527
    %v3529 = vrot.slane %v3496, %v3528
    %v3538 = vmul.f32 %v2998, %v3501
    %v3539 = vmul.f32 %v3000, %v3505
    %v3540 = vmul.f32 %v3162, %v3509
    %v3541 = vmul.f32 %v3164, %v3513
    %v3542 = vmul.f32 %v3326, %v3517
    %v3543 = vmul.f32 %v3328, %v3521
    %v3544 = vmul.f32 %v3490, %v3525
    %v3545 = vmul.f32 %v3492, %v3529
    %v3546 = vld [vmem:[%s13] sm:$0xff]
    %v3548 = vlaneseq
    %v3549 = vshrl.u32 %v3548, 7
    %v3550 = vsub.s32 0, %v3549
    %v3551 = vrot.slane %v3546, %v3550
    %v3552 = vlaneseq
    %v3553 = vshrl.u32 %v3552, 7
    %v3554 = vsub.s32 1, %v3553
    %v3555 = vrot.slane %v3546, %v3554
    %v3556 = vlaneseq
    %v3557 = vshrl.u32 %v3556, 7
    %v3558 = vsub.s32 2, %v3557
    %v3559 = vrot.slane %v3546, %v3558
    %v3560 = vlaneseq
    %v3561 = vshrl.u32 %v3560, 7
    %v3562 = vsub.s32 3, %v3561
    %v3563 = vrot.slane %v3546, %v3562
    %v3564 = vlaneseq
    %v3565 = vshrl.u32 %v3564, 7
    %v3566 = vsub.s32 4, %v3565
    %v3567 = vrot.slane %v3546, %v3566
    %v3568 = vlaneseq
    %v3569 = vshrl.u32 %v3568, 7
    %v3570 = vsub.s32 5, %v3569
    %v3571 = vrot.slane %v3546, %v3570
    %v3572 = vlaneseq
    %v3573 = vshrl.u32 %v3572, 7
    %v3574 = vsub.s32 6, %v3573
    %v3575 = vrot.slane %v3546, %v3574
    %v3576 = vlaneseq
    %v3577 = vshrl.u32 %v3576, 7
    %v3578 = vsub.s32 7, %v3577
    %v3579 = vrot.slane %v3546, %v3578
    %v3588 = vadd.f32 %v3538, %v3551
    %v3589 = vadd.f32 %v3539, %v3555
    %v3590 = vadd.f32 %v3540, %v3559
    %v3591 = vadd.f32 %v3541, %v3563
    %v3592 = vadd.f32 %v3542, %v3567
    %v3593 = vadd.f32 %v3543, %v3571
    %v3594 = vadd.f32 %v3544, %v3575
    %v3595 = vadd.f32 %v3545, %v3579
    %v3596 = vpack.c.bf16 %v3588, %v3588
    %v3597 = vpack.c.bf16 %v3589, %v3589
    %v3598 = vpack.c.bf16 %v3590, %v3590
    %v3599 = vpack.c.bf16 %v3591, %v3591
    %v3600 = vpack.c.bf16 %v3592, %v3592
    %v3601 = vpack.c.bf16 %v3593, %v3593
    %v3602 = vpack.c.bf16 %v3594, %v3594
    %v3603 = vpack.c.bf16 %v3595, %v3595
    %v3604 = vld [vmem:[#allocation5] sm:$0xff]
    %v3605 = vld [vmem:[#allocation5 + $0x8] sm:$0xff]
    %v3606 = vld [vmem:[#allocation5 + $0x10] sm:$0xff]
    %v3607 = vld [vmem:[#allocation5 + $0x18] sm:$0xff]
    %v3608 = vld [vmem:[#allocation5 + $0x20] sm:$0xff]
    %v3609 = vld [vmem:[#allocation5 + $0x28] sm:$0xff]
    %v3610 = vld [vmem:[#allocation5 + $0x30] sm:$0xff]
    %v3611 = vld [vmem:[#allocation5 + $0x38] sm:$0xff]
    %v3612 = vld [vmem:[#allocation5 + $0x40] sm:$0xff]
    %v3613 = vld [vmem:[#allocation5 + $0x48] sm:$0xff]
    %v3614 = vld [vmem:[#allocation5 + $0x50] sm:$0xff]
    %v3615 = vld [vmem:[#allocation5 + $0x58] sm:$0xff]
    %v3616 = vld [vmem:[#allocation5 + $0x60] sm:$0xff]
    %v3617 = vld [vmem:[#allocation5 + $0x68] sm:$0xff]
    %v3618 = vld [vmem:[#allocation5 + $0x70] sm:$0xff]
    %v3619 = vld [vmem:[#allocation5 + $0x78] sm:$0xff]
    %v3620 = vld [vmem:[#allocation5 + $0x80] sm:$0xff]
    %v3621 = vld [vmem:[#allocation5 + $0x88] sm:$0xff]
    %v3622 = vld [vmem:[#allocation5 + $0x90] sm:$0xff]
    %v3623 = vld [vmem:[#allocation5 + $0x98] sm:$0xff]
    %v3624 = vld [vmem:[#allocation5 + $0xa0] sm:$0xff]
    %v3625 = vld [vmem:[#allocation5 + $0xa8] sm:$0xff]
    %v3626 = vld [vmem:[#allocation5 + $0xb0] sm:$0xff]
    %v3627 = vld [vmem:[#allocation5 + $0xb8] sm:$0xff]
    %v3628 = vld [vmem:[#allocation5 + $0xc0] sm:$0xff]
    %v3629 = vld [vmem:[#allocation5 + $0xc8] sm:$0xff]
    %v3630 = vld [vmem:[#allocation5 + $0xd0] sm:$0xff]
    %v3631 = vld [vmem:[#allocation5 + $0xd8] sm:$0xff]
    %v3632 = vld [vmem:[#allocation5 + $0xe0] sm:$0xff]
    %v3633 = vld [vmem:[#allocation5 + $0xe8] sm:$0xff]
    %v3634 = vld [vmem:[#allocation5 + $0xf0] sm:$0xff]
    %v3635 = vld [vmem:[#allocation5 + $0xf8] sm:$0xff]
    %v3636 = vld [vmem:[#allocation5 + $0x100] sm:$0xff]
    %v3637 = vld [vmem:[#allocation5 + $0x108] sm:$0xff]
    %v3638 = vld [vmem:[#allocation5 + $0x110] sm:$0xff]
    %v3639 = vld [vmem:[#allocation5 + $0x118] sm:$0xff]
    %v3640 = vld [vmem:[#allocation5 + $0x120] sm:$0xff]
    %v3641 = vld [vmem:[#allocation5 + $0x128] sm:$0xff]
    %v3642 = vld [vmem:[#allocation5 + $0x130] sm:$0xff]
    %v3643 = vld [vmem:[#allocation5 + $0x138] sm:$0xff]
    %v3644 = vld [vmem:[#allocation5 + $0x140] sm:$0xff]
    %v3645 = vld [vmem:[#allocation5 + $0x148] sm:$0xff]
    %v3646 = vld [vmem:[#allocation5 + $0x150] sm:$0xff]
    %v3647 = vld [vmem:[#allocation5 + $0x158] sm:$0xff]
    %v3648 = vld [vmem:[#allocation5 + $0x160] sm:$0xff]
    %v3649 = vld [vmem:[#allocation5 + $0x168] sm:$0xff]
    %v3650 = vld [vmem:[#allocation5 + $0x170] sm:$0xff]
    %v3651 = vld [vmem:[#allocation5 + $0x178] sm:$0xff]
    %v3652 = vld [vmem:[#allocation5 + $0x180] sm:$0xff]
    %v3653 = vld [vmem:[#allocation5 + $0x188] sm:$0xff]
    %v3654 = vld [vmem:[#allocation5 + $0x190] sm:$0xff]
    %v3655 = vld [vmem:[#allocation5 + $0x198] sm:$0xff]
    %v3656 = vld [vmem:[#allocation5 + $0x1a0] sm:$0xff]
    %v3657 = vld [vmem:[#allocation5 + $0x1a8] sm:$0xff]
    %v3658 = vld [vmem:[#allocation5 + $0x1b0] sm:$0xff]
    %v3659 = vld [vmem:[#allocation5 + $0x1b8] sm:$0xff]
    %v3660 = vld [vmem:[#allocation5 + $0x1c0] sm:$0xff]
    %v3661 = vld [vmem:[#allocation5 + $0x1c8] sm:$0xff]
    %v3662 = vld [vmem:[#allocation5 + $0x1d0] sm:$0xff]
    %v3663 = vld [vmem:[#allocation5 + $0x1d8] sm:$0xff]
    %v3664 = vld [vmem:[#allocation5 + $0x1e0] sm:$0xff]
    %v3665 = vld [vmem:[#allocation5 + $0x1e8] sm:$0xff]
    %v3666 = vld [vmem:[#allocation5 + $0x1f0] sm:$0xff]
    %v3667 = vld [vmem:[#allocation5 + $0x1f8] sm:$0xff]
    %v3668 = vld [vmem:[#allocation5 + $0x200] sm:$0xff]
    %v3669 = vld [vmem:[#allocation5 + $0x208] sm:$0xff]
    %v3670 = vld [vmem:[#allocation5 + $0x210] sm:$0xff]
    %v3671 = vld [vmem:[#allocation5 + $0x218] sm:$0xff]
    %v3672 = vld [vmem:[#allocation5 + $0x220] sm:$0xff]
    %v3673 = vld [vmem:[#allocation5 + $0x228] sm:$0xff]
    %v3674 = vld [vmem:[#allocation5 + $0x230] sm:$0xff]
    %v3675 = vld [vmem:[#allocation5 + $0x238] sm:$0xff]
    %v3676 = vld [vmem:[#allocation5 + $0x240] sm:$0xff]
    %v3677 = vld [vmem:[#allocation5 + $0x248] sm:$0xff]
    %v3678 = vld [vmem:[#allocation5 + $0x250] sm:$0xff]
    %v3679 = vld [vmem:[#allocation5 + $0x258] sm:$0xff]
    %v3680 = vld [vmem:[#allocation5 + $0x260] sm:$0xff]
    %v3681 = vld [vmem:[#allocation5 + $0x268] sm:$0xff]
    %v3682 = vld [vmem:[#allocation5 + $0x270] sm:$0xff]
    %v3683 = vld [vmem:[#allocation5 + $0x278] sm:$0xff]
    %v3684 = vld [vmem:[#allocation5 + $0x280] sm:$0xff]
    %v3685 = vld [vmem:[#allocation5 + $0x288] sm:$0xff]
    %v3686 = vld [vmem:[#allocation5 + $0x290] sm:$0xff]
    %v3687 = vld [vmem:[#allocation5 + $0x298] sm:$0xff]
    %v3688 = vld [vmem:[#allocation5 + $0x2a0] sm:$0xff]
    %v3689 = vld [vmem:[#allocation5 + $0x2a8] sm:$0xff]
    %v3690 = vld [vmem:[#allocation5 + $0x2b0] sm:$0xff]
    %v3691 = vld [vmem:[#allocation5 + $0x2b8] sm:$0xff]
    %v3692 = vld [vmem:[#allocation5 + $0x2c0] sm:$0xff]
    %v3693 = vld [vmem:[#allocation5 + $0x2c8] sm:$0xff]
    %v3694 = vld [vmem:[#allocation5 + $0x2d0] sm:$0xff]
    %v3695 = vld [vmem:[#allocation5 + $0x2d8] sm:$0xff]
    %v3696 = vld [vmem:[#allocation5 + $0x2e0] sm:$0xff]
    %v3697 = vld [vmem:[#allocation5 + $0x2e8] sm:$0xff]
    %v3698 = vld [vmem:[#allocation5 + $0x2f0] sm:$0xff]
    %v3699 = vld [vmem:[#allocation5 + $0x2f8] sm:$0xff]
    %v3700 = vunpack.c.l.s8.bf16 %v3604
    %v3701 = vunpack.c.l.s8.bf16 %v3605
    %v3702 = vunpack.c.l.s8.bf16 %v3606
    %v3703 = vunpack.c.h.s8.bf16 %v3604
    %v3704 = vunpack.c.h.s8.bf16 %v3605
    %v3705 = vunpack.c.h.s8.bf16 %v3606
    %v3706 = vunpack.c.l.s8.bf16 %v3607
    %v3707 = vunpack.c.l.s8.bf16 %v3608
    %v3708 = vunpack.c.l.s8.bf16 %v3609
    %v3709 = vunpack.c.h.s8.bf16 %v3607
    %v3710 = vunpack.c.h.s8.bf16 %v3608
    %v3711 = vunpack.c.h.s8.bf16 %v3609
    %v3712 = vunpack.c.l.s8.bf16 %v3610
    %v3713 = vunpack.c.l.s8.bf16 %v3611
    %v3714 = vunpack.c.l.s8.bf16 %v3612
    %v3715 = vunpack.c.h.s8.bf16 %v3610
    %v3716 = vunpack.c.h.s8.bf16 %v3611
    %v3717 = vunpack.c.h.s8.bf16 %v3612
    %v3718 = vunpack.c.l.s8.bf16 %v3613
    %v3719 = vunpack.c.l.s8.bf16 %v3614
    %v3720 = vunpack.c.l.s8.bf16 %v3615
    %v3721 = vunpack.c.h.s8.bf16 %v3613
    %v3722 = vunpack.c.h.s8.bf16 %v3614
    %v3723 = vunpack.c.h.s8.bf16 %v3615
    %v3724 = vunpack.c.l.s8.bf16 %v3616
    %v3725 = vunpack.c.l.s8.bf16 %v3617
    %v3726 = vunpack.c.l.s8.bf16 %v3618
    %v3727 = vunpack.c.h.s8.bf16 %v3616
    %v3728 = vunpack.c.h.s8.bf16 %v3617
    %v3729 = vunpack.c.h.s8.bf16 %v3618
    %v3730 = vunpack.c.l.s8.bf16 %v3619
    %v3731 = vunpack.c.l.s8.bf16 %v3620
    %v3732 = vunpack.c.l.s8.bf16 %v3621
    %v3733 = vunpack.c.h.s8.bf16 %v3619
    %v3734 = vunpack.c.h.s8.bf16 %v3620
    %v3735 = vunpack.c.h.s8.bf16 %v3621
    %v3736 = vunpack.c.l.s8.bf16 %v3622
    %v3737 = vunpack.c.l.s8.bf16 %v3623
    %v3738 = vunpack.c.l.s8.bf16 %v3624
    %v3739 = vunpack.c.h.s8.bf16 %v3622
    %v3740 = vunpack.c.h.s8.bf16 %v3623
    %v3741 = vunpack.c.h.s8.bf16 %v3624
    %v3742 = vunpack.c.l.s8.bf16 %v3625
    %v3743 = vunpack.c.l.s8.bf16 %v3626
    %v3744 = vunpack.c.l.s8.bf16 %v3627
    %v3745 = vunpack.c.h.s8.bf16 %v3625
    %v3746 = vunpack.c.h.s8.bf16 %v3626
    %v3747 = vunpack.c.h.s8.bf16 %v3627
    %v3748 = vunpack.c.l.s8.bf16 %v3628
    %v3749 = vunpack.c.l.s8.bf16 %v3629
    %v3750 = vunpack.c.l.s8.bf16 %v3630
    %v3751 = vunpack.c.h.s8.bf16 %v3628
    %v3752 = vunpack.c.h.s8.bf16 %v3629
    %v3753 = vunpack.c.h.s8.bf16 %v3630
    %v3754 = vunpack.c.l.s8.bf16 %v3631
    %v3755 = vunpack.c.l.s8.bf16 %v3632
    %v3756 = vunpack.c.l.s8.bf16 %v3633
    %v3757 = vunpack.c.h.s8.bf16 %v3631
    %v3758 = vunpack.c.h.s8.bf16 %v3632
    %v3759 = vunpack.c.h.s8.bf16 %v3633
    %v3760 = vunpack.c.l.s8.bf16 %v3634
    %v3761 = vunpack.c.l.s8.bf16 %v3635
    %v3762 = vunpack.c.l.s8.bf16 %v3636
    %v3763 = vunpack.c.h.s8.bf16 %v3634
    %v3764 = vunpack.c.h.s8.bf16 %v3635
    %v3765 = vunpack.c.h.s8.bf16 %v3636
    %v3766 = vunpack.c.l.s8.bf16 %v3637
    %v3767 = vunpack.c.l.s8.bf16 %v3638
    %v3768 = vunpack.c.l.s8.bf16 %v3639
    %v3769 = vunpack.c.h.s8.bf16 %v3637
    %v3770 = vunpack.c.h.s8.bf16 %v3638
    %v3771 = vunpack.c.h.s8.bf16 %v3639
    %v3772 = vunpack.c.l.s8.bf16 %v3640
    %v3773 = vunpack.c.l.s8.bf16 %v3641
    %v3774 = vunpack.c.l.s8.bf16 %v3642
    %v3775 = vunpack.c.h.s8.bf16 %v3640
    %v3776 = vunpack.c.h.s8.bf16 %v3641
    %v3777 = vunpack.c.h.s8.bf16 %v3642
    %v3778 = vunpack.c.l.s8.bf16 %v3643
    %v3779 = vunpack.c.l.s8.bf16 %v3644
    %v3780 = vunpack.c.l.s8.bf16 %v3645
    %v3781 = vunpack.c.h.s8.bf16 %v3643
    %v3782 = vunpack.c.h.s8.bf16 %v3644
    %v3783 = vunpack.c.h.s8.bf16 %v3645
    %v3784 = vunpack.c.l.s8.bf16 %v3646
    %v3785 = vunpack.c.l.s8.bf16 %v3647
    %v3786 = vunpack.c.l.s8.bf16 %v3648
    %v3787 = vunpack.c.h.s8.bf16 %v3646
    %v3788 = vunpack.c.h.s8.bf16 %v3647
    %v3789 = vunpack.c.h.s8.bf16 %v3648
    %v3790 = vunpack.c.l.s8.bf16 %v3649
    %v3791 = vunpack.c.l.s8.bf16 %v3650
    %v3792 = vunpack.c.l.s8.bf16 %v3651
    %v3793 = vunpack.c.h.s8.bf16 %v3649
    %v3794 = vunpack.c.h.s8.bf16 %v3650
    %v3795 = vunpack.c.h.s8.bf16 %v3651
    %v3796 = vunpack.c.l.s8.bf16 %v3652
    %v3797 = vunpack.c.l.s8.bf16 %v3653
    %v3798 = vunpack.c.l.s8.bf16 %v3654
    %v3799 = vunpack.c.h.s8.bf16 %v3652
    %v3800 = vunpack.c.h.s8.bf16 %v3653
    %v3801 = vunpack.c.h.s8.bf16 %v3654
    %v3802 = vunpack.c.l.s8.bf16 %v3655
    %v3803 = vunpack.c.l.s8.bf16 %v3656
    %v3804 = vunpack.c.l.s8.bf16 %v3657
    %v3805 = vunpack.c.h.s8.bf16 %v3655
    %v3806 = vunpack.c.h.s8.bf16 %v3656
    %v3807 = vunpack.c.h.s8.bf16 %v3657
    %v3808 = vunpack.c.l.s8.bf16 %v3658
    %v3809 = vunpack.c.l.s8.bf16 %v3659
    %v3810 = vunpack.c.l.s8.bf16 %v3660
    %v3811 = vunpack.c.h.s8.bf16 %v3658
    %v3812 = vunpack.c.h.s8.bf16 %v3659
    %v3813 = vunpack.c.h.s8.bf16 %v3660
    %v3814 = vunpack.c.l.s8.bf16 %v3661
    %v3815 = vunpack.c.l.s8.bf16 %v3662
    %v3816 = vunpack.c.l.s8.bf16 %v3663
    %v3817 = vunpack.c.h.s8.bf16 %v3661
    %v3818 = vunpack.c.h.s8.bf16 %v3662
    %v3819 = vunpack.c.h.s8.bf16 %v3663
    %v3820 = vunpack.c.l.s8.bf16 %v3664
    %v3821 = vunpack.c.l.s8.bf16 %v3665
    %v3822 = vunpack.c.l.s8.bf16 %v3666
    %v3823 = vunpack.c.h.s8.bf16 %v3664
    %v3824 = vunpack.c.h.s8.bf16 %v3665
    %v3825 = vunpack.c.h.s8.bf16 %v3666
    %v3826 = vunpack.c.l.s8.bf16 %v3667
    %v3827 = vunpack.c.l.s8.bf16 %v3668
    %v3828 = vunpack.c.l.s8.bf16 %v3669
    %v3829 = vunpack.c.h.s8.bf16 %v3667
    %v3830 = vunpack.c.h.s8.bf16 %v3668
    %v3831 = vunpack.c.h.s8.bf16 %v3669
    %v3832 = vunpack.c.l.s8.bf16 %v3670
    %v3833 = vunpack.c.l.s8.bf16 %v3671
    %v3834 = vunpack.c.l.s8.bf16 %v3672
    %v3835 = vunpack.c.h.s8.bf16 %v3670
    %v3836 = vunpack.c.h.s8.bf16 %v3671
    %v3837 = vunpack.c.h.s8.bf16 %v3672
    %v3838 = vunpack.c.l.s8.bf16 %v3673
    %v3839 = vunpack.c.l.s8.bf16 %v3674
    %v3840 = vunpack.c.l.s8.bf16 %v3675
    %v3841 = vunpack.c.h.s8.bf16 %v3673
    %v3842 = vunpack.c.h.s8.bf16 %v3674
    %v3843 = vunpack.c.h.s8.bf16 %v3675
    %v3844 = vunpack.c.l.s8.bf16 %v3676
    %v3845 = vunpack.c.l.s8.bf16 %v3677
    %v3846 = vunpack.c.l.s8.bf16 %v3678
    %v3847 = vunpack.c.h.s8.bf16 %v3676
    %v3848 = vunpack.c.h.s8.bf16 %v3677
    %v3849 = vunpack.c.h.s8.bf16 %v3678
    %v3850 = vunpack.c.l.s8.bf16 %v3679
    %v3851 = vunpack.c.l.s8.bf16 %v3680
    %v3852 = vunpack.c.l.s8.bf16 %v3681
    %v3853 = vunpack.c.h.s8.bf16 %v3679
    %v3854 = vunpack.c.h.s8.bf16 %v3680
    %v3855 = vunpack.c.h.s8.bf16 %v3681
    %v3856 = vunpack.c.l.s8.bf16 %v3682
    %v3857 = vunpack.c.l.s8.bf16 %v3683
    %v3858 = vunpack.c.l.s8.bf16 %v3684
    %v3859 = vunpack.c.h.s8.bf16 %v3682
    %v3860 = vunpack.c.h.s8.bf16 %v3683
    %v3861 = vunpack.c.h.s8.bf16 %v3684
    %v3862 = vunpack.c.l.s8.bf16 %v3685
    %v3863 = vunpack.c.l.s8.bf16 %v3686
    %v3864 = vunpack.c.l.s8.bf16 %v3687
    %v3865 = vunpack.c.h.s8.bf16 %v3685
    %v3866 = vunpack.c.h.s8.bf16 %v3686
    %v3867 = vunpack.c.h.s8.bf16 %v3687
    %v3868 = vunpack.c.l.s8.bf16 %v3688
    %v3869 = vunpack.c.l.s8.bf16 %v3689
    %v3870 = vunpack.c.l.s8.bf16 %v3690
    %v3871 = vunpack.c.h.s8.bf16 %v3688
    %v3872 = vunpack.c.h.s8.bf16 %v3689
    %v3873 = vunpack.c.h.s8.bf16 %v3690
    %v3874 = vunpack.c.l.s8.bf16 %v3691
    %v3875 = vunpack.c.l.s8.bf16 %v3692
    %v3876 = vunpack.c.l.s8.bf16 %v3693
    %v3877 = vunpack.c.h.s8.bf16 %v3691
    %v3878 = vunpack.c.h.s8.bf16 %v3692
    %v3879 = vunpack.c.h.s8.bf16 %v3693
    %v3880 = vunpack.c.l.s8.bf16 %v3694
    %v3881 = vunpack.c.l.s8.bf16 %v3695
    %v3882 = vunpack.c.l.s8.bf16 %v3696
    %v3883 = vunpack.c.h.s8.bf16 %v3694
    %v3884 = vunpack.c.h.s8.bf16 %v3695
    %v3885 = vunpack.c.h.s8.bf16 %v3696
    %v3886 = vunpack.c.l.s8.bf16 %v3697
    %v3887 = vunpack.c.l.s8.bf16 %v3698
    %v3888 = vunpack.c.l.s8.bf16 %v3699
    %v3889 = vunpack.c.h.s8.bf16 %v3697
    %v3890 = vunpack.c.h.s8.bf16 %v3698
    %v3891 = vunpack.c.h.s8.bf16 %v3699
    %3892 = vmatprep.subr.bf16.mxu0 %v3701
    %3893 = vmatpush1.bf16.msra.mxu0 %v3700
    %3894 = vmatprep.subr.bf16.mxu0 %v3704
    %3895 = vmatpush1.bf16.msra.mxu0 %v3703
    %3896 = vmatprep.subr.bf16.mxu0 %v3707
    %3897 = vmatpush1.bf16.msra.mxu0 %v3706
    %3898 = vmatprep.subr.bf16.mxu0 %v3710
    %3899 = vmatpush1.bf16.msra.mxu0 %v3709
    %3900 = vmatprep.subr.bf16.mxu0 %v3713
    %3901 = vmatpush1.bf16.msra.mxu0 %v3712
    %3902 = vmatprep.subr.bf16.mxu0 %v3716
    %3903 = vmatpush1.bf16.msra.mxu0 %v3715
    %3904 = vmatprep.subr.bf16.mxu0 %v3719
    %3905 = vmatpush1.bf16.msra.mxu0 %v3718
    %3906 = vmatprep.subr.bf16.mxu0 %v3722
    %3907 = vmatpush1.bf16.msra.mxu0 %v3721
    %3908 = vmatprep.subr.bf16.mxu0 %v3725
    %3909 = vmatpush1.bf16.msra.mxu0 %v3724
    %3910 = vmatprep.subr.bf16.mxu0 %v3728
    %3911 = vmatpush1.bf16.msra.mxu0 %v3727
    %3912 = vmatprep.subr.bf16.mxu0 %v3731
    %3913 = vmatpush1.bf16.msra.mxu0 %v3730
    %3914 = vmatprep.subr.bf16.mxu0 %v3734
    %3915 = vmatpush1.bf16.msra.mxu0 %v3733
    %3916 = vmatprep.subr.bf16.mxu0 %v3737
    %3917 = vmatpush1.bf16.msra.mxu0 %v3736
    %3918 = vmatprep.subr.bf16.mxu0 %v3740
    %3919 = vmatpush1.bf16.msra.mxu0 %v3739
    %3920 = vmatprep.subr.bf16.mxu0 %v3743
    %3921 = vmatpush1.bf16.msra.mxu0 %v3742
    %3922 = vmatprep.subr.bf16.mxu0 %v3746
    %3923 = vmatpush1.bf16.msra.mxu0 %v3745
    %3924 = vmatprep.mubr.bf16.mxu0 %v3597
    %3925 = vmatmul.mubr.bf16.gmra.mrb[0].mxu0 %v3596
    %v3926 = vpop.f32.mrb[0].mxu0
    %v3927 = vadd.f32 0.0, %v3926
    %v3928 = vpop.f32.mrb[0].mxu0
    %v3929 = vadd.f32 0.0, %v3928
    %v3930 = vpop.f32.mrb[0].mxu0
    %v3931 = vpop.f32.mrb[0].mxu0
    %3932 = vdwg.mxu0
    %3933 = vmatprep.subr.bf16.mxu0 %v3749
    %3934 = vmatpush1.bf16.msra.mxu0 %v3748
    %3935 = vmatprep.subr.bf16.mxu0 %v3752
    %3936 = vmatpush1.bf16.msra.mxu0 %v3751
    %3937 = vmatprep.subr.bf16.mxu0 %v3755
    %3938 = vmatpush1.bf16.msra.mxu0 %v3754
    %3939 = vmatprep.subr.bf16.mxu0 %v3758
    %3940 = vmatpush1.bf16.msra.mxu0 %v3757
    %3941 = vmatprep.subr.bf16.mxu0 %v3761
    %3942 = vmatpush1.bf16.msra.mxu0 %v3760
    %3943 = vmatprep.subr.bf16.mxu0 %v3764
    %3944 = vmatpush1.bf16.msra.mxu0 %v3763
    %3945 = vmatprep.subr.bf16.mxu0 %v3767
    %3946 = vmatpush1.bf16.msra.mxu0 %v3766
    %3947 = vmatprep.subr.bf16.mxu0 %v3770
    %3948 = vmatpush1.bf16.msra.mxu0 %v3769
    %3949 = vmatprep.subr.bf16.mxu0 %v3773
    %3950 = vmatpush1.bf16.msra.mxu0 %v3772
    %3951 = vmatprep.subr.bf16.mxu0 %v3776
    %3952 = vmatpush1.bf16.msra.mxu0 %v3775
    %3953 = vmatprep.subr.bf16.mxu0 %v3779
    %3954 = vmatpush1.bf16.msra.mxu0 %v3778
    %3955 = vmatprep.subr.bf16.mxu0 %v3782
    %3956 = vmatpush1.bf16.msra.mxu0 %v3781
    %3957 = vmatprep.subr.bf16.mxu0 %v3785
    %3958 = vmatpush1.bf16.msra.mxu0 %v3784
    %3959 = vmatprep.subr.bf16.mxu0 %v3788
    %3960 = vmatpush1.bf16.msra.mxu0 %v3787
    %3961 = vmatprep.subr.bf16.mxu0 %v3791
    %3962 = vmatpush1.bf16.msra.mxu0 %v3790
    %3963 = vmatprep.subr.bf16.mxu0 %v3794
    %3964 = vmatpush1.bf16.msra.mxu0 %v3793
    %3965 = vmatprep.mubr.bf16.mxu0 %v3599
    %3966 = vmatmul.mubr.bf16.gmra.mrb[0].mxu0 %v3598
    %v3967 = vpop.f32.mrb[0].mxu0
    %v3968 = vadd.f32 %v3927, %v3967
    %v3969 = vpop.f32.mrb[0].mxu0
    %v3970 = vadd.f32 %v3929, %v3969
    %v3971 = vpop.f32.mrb[0].mxu0
    %v3972 = vpop.f32.mrb[0].mxu0
    %3973 = vdwg.mxu0
    %3974 = vmatprep.subr.bf16.mxu0 %v3797
    %3975 = vmatpush1.bf16.msra.mxu0 %v3796
    %3976 = vmatprep.subr.bf16.mxu0 %v3800
    %3977 = vmatpush1.bf16.msra.mxu0 %v3799
    %3978 = vmatprep.subr.bf16.mxu0 %v3803
    %3979 = vmatpush1.bf16.msra.mxu0 %v3802
    %3980 = vmatprep.subr.bf16.mxu0 %v3806
    %3981 = vmatpush1.bf16.msra.mxu0 %v3805
    %3982 = vmatprep.subr.bf16.mxu0 %v3809
    %3983 = vmatpush1.bf16.msra.mxu0 %v3808
    %3984 = vmatprep.subr.bf16.mxu0 %v3812
    %3985 = vmatpush1.bf16.msra.mxu0 %v3811
    %3986 = vmatprep.subr.bf16.mxu0 %v3815
    %3987 = vmatpush1.bf16.msra.mxu0 %v3814
    %3988 = vmatprep.subr.bf16.mxu0 %v3818
    %3989 = vmatpush1.bf16.msra.mxu0 %v3817
    %3990 = vmatprep.subr.bf16.mxu0 %v3821
    %3991 = vmatpush1.bf16.msra.mxu0 %v3820
    %3992 = vmatprep.subr.bf16.mxu0 %v3824
    %3993 = vmatpush1.bf16.msra.mxu0 %v3823
    %3994 = vmatprep.subr.bf16.mxu0 %v3827
    %3995 = vmatpush1.bf16.msra.mxu0 %v3826
    %3996 = vmatprep.subr.bf16.mxu0 %v3830
    %3997 = vmatpush1.bf16.msra.mxu0 %v3829
    %3998 = vmatprep.subr.bf16.mxu0 %v3833
    %3999 = vmatpush1.bf16.msra.mxu0 %v3832
    %4000 = vmatprep.subr.bf16.mxu0 %v3836
    %4001 = vmatpush1.bf16.msra.mxu0 %v3835
    %4002 = vmatprep.subr.bf16.mxu0 %v3839
    %4003 = vmatpush1.bf16.msra.mxu0 %v3838
    %4004 = vmatprep.subr.bf16.mxu0 %v3842
    %4005 = vmatpush1.bf16.msra.mxu0 %v3841
    %4006 = vmatprep.mubr.bf16.mxu0 %v3601
    %4007 = vmatmul.mubr.bf16.gmra.mrb[0].mxu0 %v3600
    %v4008 = vpop.f32.mrb[0].mxu0
    %v4009 = vadd.f32 %v3968, %v4008
    %v4010 = vpop.f32.mrb[0].mxu0
    %v4011 = vadd.f32 %v3970, %v4010
    %v4012 = vpop.f32.mrb[0].mxu0
    %v4013 = vpop.f32.mrb[0].mxu0
    %4014 = vdwg.mxu0
    %4015 = vmatprep.subr.bf16.mxu0 %v3845
    %4016 = vmatpush1.bf16.msra.mxu0 %v3844
    %4017 = vmatprep.subr.bf16.mxu0 %v3848
    %4018 = vmatpush1.bf16.msra.mxu0 %v3847
    %4019 = vmatprep.subr.bf16.mxu0 %v3851
    %4020 = vmatpush1.bf16.msra.mxu0 %v3850
    %4021 = vmatprep.subr.bf16.mxu0 %v3854
    %4022 = vmatpush1.bf16.msra.mxu0 %v3853
    %4023 = vmatprep.subr.bf16.mxu0 %v3857
    %4024 = vmatpush1.bf16.msra.mxu0 %v3856
    %4025 = vmatprep.subr.bf16.mxu0 %v3860
    %4026 = vmatpush1.bf16.msra.mxu0 %v3859
    %4027 = vmatprep.subr.bf16.mxu0 %v3863
    %4028 = vmatpush1.bf16.msra.mxu0 %v3862
    %4029 = vmatprep.subr.bf16.mxu0 %v3866
    %4030 = vmatpush1.bf16.msra.mxu0 %v3865
    %4031 = vmatprep.subr.bf16.mxu0 %v3869
    %4032 = vmatpush1.bf16.msra.mxu0 %v3868
    %4033 = vmatprep.subr.bf16.mxu0 %v3872
    %4034 = vmatpush1.bf16.msra.mxu0 %v3871
    %4035 = vmatprep.subr.bf16.mxu0 %v3875
    %4036 = vmatpush1.bf16.msra.mxu0 %v3874
    %4037 = vmatprep.subr.bf16.mxu0 %v3878
    %4038 = vmatpush1.bf16.msra.mxu0 %v3877
    %4039 = vmatprep.subr.bf16.mxu0 %v3881
    %4040 = vmatpush1.bf16.msra.mxu0 %v3880
    %4041 = vmatprep.subr.bf16.mxu0 %v3884
    %4042 = vmatpush1.bf16.msra.mxu0 %v3883
    %4043 = vmatprep.subr.bf16.mxu0 %v3887
    %4044 = vmatpush1.bf16.msra.mxu0 %v3886
    %4045 = vmatprep.subr.bf16.mxu0 %v3890
    %4046 = vmatpush1.bf16.msra.mxu0 %v3889
    %4047 = vmatprep.mubr.bf16.mxu0 %v3603
    %4048 = vmatmul.mubr.bf16.gmra.mrb[0].mxu0 %v3602
    %v4049 = vpop.f32.mrb[0].mxu0
    %v4050 = vadd.f32 %v4009, %v4049
    %v4051 = vpop.f32.mrb[0].mxu0
    %v4052 = vadd.f32 %v4011, %v4051
    %v4053 = vpop.f32.mrb[0].mxu0
    %v4054 = vpop.f32.mrb[0].mxu0
    %4055 = vdwg.mxu0
    %4056 = vmatprep.subr.bf16.mxu0 0
    %4057 = vmatpush1.bf16.msra.mxu0 %v3702
    %4058 = vmatprep.subr.bf16.mxu0 0
    %4059 = vmatpush1.bf16.msra.mxu0 %v3705
    %4060 = vmatprep.subr.bf16.mxu0 0
    %4061 = vmatpush1.bf16.msra.mxu0 %v3708
    %4062 = vmatprep.subr.bf16.mxu0 0
    %4063 = vmatpush1.bf16.msra.mxu0 %v3711
    %4064 = vmatprep.subr.bf16.mxu0 0
    %4065 = vmatpush1.bf16.msra.mxu0 %v3714
    %4066 = vmatprep.subr.bf16.mxu0 0
    %4067 = vmatpush1.bf16.msra.mxu0 %v3717
    %4068 = vmatprep.subr.bf16.mxu0 0
    %4069 = vmatpush1.bf16.msra.mxu0 %v3720
    %4070 = vmatprep.subr.bf16.mxu0 0
    %4071 = vmatpush1.bf16.msra.mxu0 %v3723
    %4072 = vmatprep.subr.bf16.mxu0 0
    %4073 = vmatpush1.bf16.msra.mxu0 %v3726
    %4074 = vmatprep.subr.bf16.mxu0 0
    %4075 = vmatpush1.bf16.msra.mxu0 %v3729
    %4076 = vmatprep.subr.bf16.mxu0 0
    %4077 = vmatpush1.bf16.msra.mxu0 %v3732
    %4078 = vmatprep.subr.bf16.mxu0 0
    %4079 = vmatpush1.bf16.msra.mxu0 %v3735
    %4080 = vmatprep.subr.bf16.mxu0 0
    %4081 = vmatpush1.bf16.msra.mxu0 %v3738
    %4082 = vmatprep.subr.bf16.mxu0 0
    %4083 = vmatpush1.bf16.msra.mxu0 %v3741
    %4084 = vmatprep.subr.bf16.mxu0 0
    %4085 = vmatpush1.bf16.msra.mxu0 %v3744
    %4086 = vmatprep.subr.bf16.mxu0 0
    %4087 = vmatpush1.bf16.msra.mxu0 %v3747
    %4088 = vmatprep.mubr.bf16.mxu0 %v3597
    %4089 = vmatmul.mubr.bf16.gmra.mrb[0].mxu0 %v3596
    %v4090 = vpop.f32.mrb[0].mxu0
    %v4091 = vadd.f32 0.0, %v4090
    %v4092 = vpop.f32.mrb[0].mxu0
    %v4093 = vpop.f32.mrb[0].mxu0
    %v4094 = vpop.f32.mrb[0].mxu0
    %4095 = vdwg.mxu0
    %4096 = vmatprep.subr.bf16.mxu0 0
    %4097 = vmatpush1.bf16.msra.mxu0 %v3750
    %4098 = vmatprep.subr.bf16.mxu0 0
    %4099 = vmatpush1.bf16.msra.mxu0 %v3753
    %4100 = vmatprep.subr.bf16.mxu0 0
    %4101 = vmatpush1.bf16.msra.mxu0 %v3756
    %4102 = vmatprep.subr.bf16.mxu0 0
    %4103 = vmatpush1.bf16.msra.mxu0 %v3759
    %4104 = vmatprep.subr.bf16.mxu0 0
    %4105 = vmatpush1.bf16.msra.mxu0 %v3762
    %4106 = vmatprep.subr.bf16.mxu0 0
    %4107 = vmatpush1.bf16.msra.mxu0 %v3765
    %4108 = vmatprep.subr.bf16.mxu0 0
    %4109 = vmatpush1.bf16.msra.mxu0 %v3768
    %4110 = vmatprep.subr.bf16.mxu0 0
    %4111 = vmatpush1.bf16.msra.mxu0 %v3771
    %4112 = vmatprep.subr.bf16.mxu0 0
    %4113 = vmatpush1.bf16.msra.mxu0 %v3774
    %4114 = vmatprep.subr.bf16.mxu0 0
    %4115 = vmatpush1.bf16.msra.mxu0 %v3777
    %4116 = vmatprep.subr.bf16.mxu0 0
    %4117 = vmatpush1.bf16.msra.mxu0 %v3780
    %4118 = vmatprep.subr.bf16.mxu0 0
    %4119 = vmatpush1.bf16.msra.mxu0 %v3783
    %4120 = vmatprep.subr.bf16.mxu0 0
    %4121 = vmatpush1.bf16.msra.mxu0 %v3786
    %4122 = vmatprep.subr.bf16.mxu0 0
    %4123 = vmatpush1.bf16.msra.mxu0 %v3789
    %4124 = vmatprep.subr.bf16.mxu0 0
    %4125 = vmatpush1.bf16.msra.mxu0 %v3792
    %4126 = vmatprep.subr.bf16.mxu0 0
    %4127 = vmatpush1.bf16.msra.mxu0 %v3795
    %4128 = vmatprep.mubr.bf16.mxu0 %v3599
    %4129 = vmatmul.mubr.bf16.gmra.mrb[0].mxu0 %v3598
    %v4130 = vpop.f32.mrb[0].mxu0
    %v4131 = vadd.f32 %v4091, %v4130
    %v4132 = vpop.f32.mrb[0].mxu0
    %v4133 = vpop.f32.mrb[0].mxu0
    %v4134 = vpop.f32.mrb[0].mxu0
    %4135 = vdwg.mxu0
    %4136 = vmatprep.subr.bf16.mxu0 0
    %4137 = vmatpush1.bf16.msra.mxu0 %v3798
    %4138 = vmatprep.subr.bf16.mxu0 0
    %4139 = vmatpush1.bf16.msra.mxu0 %v3801
    %4140 = vmatprep.subr.bf16.mxu0 0
    %4141 = vmatpush1.bf16.msra.mxu0 %v3804
    %4142 = vmatprep.subr.bf16.mxu0 0
    %4143 = vmatpush1.bf16.msra.mxu0 %v3807
    %4144 = vmatprep.subr.bf16.mxu0 0
    %4145 = vmatpush1.bf16.msra.mxu0 %v3810
    %4146 = vmatprep.subr.bf16.mxu0 0
    %4147 = vmatpush1.bf16.msra.mxu0 %v3813
    %4148 = vmatprep.subr.bf16.mxu0 0
    %4149 = vmatpush1.bf16.msra.mxu0 %v3816
    %4150 = vmatprep.subr.bf16.mxu0 0
    %4151 = vmatpush1.bf16.msra.mxu0 %v3819
    %4152 = vmatprep.subr.bf16.mxu0 0
    %4153 = vmatpush1.bf16.msra.mxu0 %v3822
    %4154 = vmatprep.subr.bf16.mxu0 0
    %4155 = vmatpush1.bf16.msra.mxu0 %v3825
    %4156 = vmatprep.subr.bf16.mxu0 0
    %4157 = vmatpush1.bf16.msra.mxu0 %v3828
    %4158 = vmatprep.subr.bf16.mxu0 0
    %4159 = vmatpush1.bf16.msra.mxu0 %v3831
    %4160 = vmatprep.subr.bf16.mxu0 0
    %4161 = vmatpush1.bf16.msra.mxu0 %v3834
    %4162 = vmatprep.subr.bf16.mxu0 0
    %4163 = vmatpush1.bf16.msra.mxu0 %v3837
    %4164 = vmatprep.subr.bf16.mxu0 0
    %4165 = vmatpush1.bf16.msra.mxu0 %v3840
    %4166 = vmatprep.subr.bf16.mxu0 0
    %4167 = vmatpush1.bf16.msra.mxu0 %v3843
    %4168 = vmatprep.mubr.bf16.mxu0 %v3601
    %4169 = vmatmul.mubr.bf16.gmra.mrb[0].mxu0 %v3600
    %v4170 = vpop.f32.mrb[0].mxu0
    %v4171 = vadd.f32 %v4131, %v4170
    %v4172 = vpop.f32.mrb[0].mxu0
    %v4173 = vpop.f32.mrb[0].mxu0
    %v4174 = vpop.f32.mrb[0].mxu0
    %4175 = vdwg.mxu0
    %4176 = vmatprep.subr.bf16.mxu0 0
    %4177 = vmatpush1.bf16.msra.mxu0 %v3846
    %4178 = vmatprep.subr.bf16.mxu0 0
    %4179 = vmatpush1.bf16.msra.mxu0 %v3849
    %4180 = vmatprep.subr.bf16.mxu0 0
    %4181 = vmatpush1.bf16.msra.mxu0 %v3852
    %4182 = vmatprep.subr.bf16.mxu0 0
    %4183 = vmatpush1.bf16.msra.mxu0 %v3855
    %4184 = vmatprep.subr.bf16.mxu0 0
    %4185 = vmatpush1.bf16.msra.mxu0 %v3858
    %4186 = vmatprep.subr.bf16.mxu0 0
    %4187 = vmatpush1.bf16.msra.mxu0 %v3861
    %4188 = vmatprep.subr.bf16.mxu0 0
    %4189 = vmatpush1.bf16.msra.mxu0 %v3864
    %4190 = vmatprep.subr.bf16.mxu0 0
    %4191 = vmatpush1.bf16.msra.mxu0 %v3867
    %4192 = vmatprep.subr.bf16.mxu0 0
    %4193 = vmatpush1.bf16.msra.mxu0 %v3870
    %4194 = vmatprep.subr.bf16.mxu0 0
    %4195 = vmatpush1.bf16.msra.mxu0 %v3873
    %4196 = vmatprep.subr.bf16.mxu0 0
    %4197 = vmatpush1.bf16.msra.mxu0 %v3876
    %4198 = vmatprep.subr.bf16.mxu0 0
    %4199 = vmatpush1.bf16.msra.mxu0 %v3879
    %4200 = vmatprep.subr.bf16.mxu0 0
    %4201 = vmatpush1.bf16.msra.mxu0 %v3882
    %4202 = vmatprep.subr.bf16.mxu0 0
    %4203 = vmatpush1.bf16.msra.mxu0 %v3885
    %4204 = vmatprep.subr.bf16.mxu0 0
    %4205 = vmatpush1.bf16.msra.mxu0 %v3888
    %4206 = vmatprep.subr.bf16.mxu0 0
    %4207 = vmatpush1.bf16.msra.mxu0 %v3891
    %4208 = vmatprep.mubr.bf16.mxu0 %v3603
    %4209 = vmatmul.mubr.bf16.gmra.mrb[0].mxu0 %v3602
    %v4210 = vpop.f32.mrb[0].mxu0
    %v4211 = vadd.f32 %v4171, %v4210
    %v4212 = vpop.f32.mrb[0].mxu0
    %v4213 = vpop.f32.mrb[0].mxu0
    %v4214 = vpop.f32.mrb[0].mxu0
    %4215 = vdwg.mxu0
    %v4216 = vld [vmem:[%s15] sm:$0x7]
    %v4218 = vlaneseq
    %v4219 = vshrl.u32 %v4218, 7
    %v4220 = vsub.s32 0, %v4219
    %v4221 = vrot.slane %v4216, %v4220
    %v4222 = vlaneseq
    %v4223 = vshrl.u32 %v4222, 7
    %v4224 = vsub.s32 1, %v4223
    %v4225 = vrot.slane %v4216, %v4224
    %v4226 = vlaneseq
    %v4227 = vshrl.u32 %v4226, 7
    %v4228 = vsub.s32 2, %v4227
    %v4229 = vrot.slane %v4216, %v4228
    %v4233 = vmul.f32 %v4050, %v4221
    %v4234 = vmul.f32 %v4052, %v4225
    %v4235 = vmul.f32 %v4211, %v4229
    %v4236 = vld [vmem:[%s16] sm:$0x7]
    %v4238 = vlaneseq
    %v4239 = vshrl.u32 %v4238, 7
    %v4240 = vsub.s32 0, %v4239
    %v4241 = vrot.slane %v4236, %v4240
    %v4242 = vlaneseq
    %v4243 = vshrl.u32 %v4242, 7
    %v4244 = vsub.s32 1, %v4243
    %v4245 = vrot.slane %v4236, %v4244
    %v4246 = vlaneseq
    %v4247 = vshrl.u32 %v4246, 7
    %v4248 = vsub.s32 2, %v4247
    %v4249 = vrot.slane %v4236, %v4248
    %v4253 = vadd.f32 %v4233, %v4241
    %v4254 = vadd.f32 %v4234, %v4245
    %v4255 = vadd.f32 %v4235, %v4249
    %v4259 = vcombine.low %v4253, %v4254
    %v4261 = vunpack.c.l.s4 1983009808
    %v4262 = vunpack.c.0.s8 %v4261
    %v4263 = vlaneseq
    %v4264 = vshrl.u32 %v4263, 7
    %v4265 = vsub.s32 %v4262, %v4264
    %v4266 = vrot.slane %v4259, %v4265
    %v4268 = vunpack.c.l.s4 1983009808
    %v4269 = vunpack.c.0.s8 %v4268
    %v4270 = vlaneseq
    %v4271 = vshrl.u32 %v4270, 7
    %v4272 = vsub.s32 %v4269, %v4271
    %v4273 = vrot.slane %v4255, %v4272
    %v4274 = vcombine.low %v4266, %v4273
    %4276 = vst [vmem:[#allocation7] sm:$0x3f] %v4274
    // Predicated region
    $region78: #{model_forward.1} parent=1 // pred_check
      _
    $region79: #{model_forward.1} parent=1 // pred_check_branch
      %4278 = sbr.rel (0) target = $region81
    $region80: #{model_forward.1} parent=1 // pred_region
      %s4280 = ssub.s32 96, 96
      %4281 = vsyncadd [#allocation4], %s4280
      %s4283 = sshll.u32 [#allocation7], 4
      %s4284 = int_to_ptr.vmem [resolvable:$true] %s4283
      %4286 = dma.vmem_to_hbm [thread:$0]  %s4284, 96, %s17, [#allocation4]
    $region81: #{model_forward.1} parent=1 // pred_fallthru
      _
    // Predicated region
    $region82: #{model_forward.1} parent=1 // pred_check
      _
    $region83: #{model_forward.1} parent=1 // pred_check_branch
      %4288 = sbr.rel (0) target = $region85
    $region84: #{model_forward.1} parent=1 // pred_region
      %4289 = dma.done [#allocation4], 96
    $region85: #{model_forward.1} parent=1 // pred_fallthru
      _
    %4290 = vsyncpa [#allocation3], 1
    %4291 = vsyncpa [#allocation6], 1
    %4292 = vsyncpa [#allocation4], 1

</llo_original>
